<compile_context>
chip_gen: v7x
topology: tpu7x:2x2x1
jax: 0.10.0
libtpu: 0.0.40
codegen_flags: <defaults>
</compile_context>

<pallas_src>
import functools

import jax
import jax.numpy as jnp
import numpy as np
from jax import lax
from jax.experimental import pallas as pl
from jax.experimental.pallas import tpu as pltpu


# ---------- fused kernel: dist + top-k + gather + conv + BN + LReLU + max_k ----------

def fused_edgeconv_kernel(xyz_q_ref, xyz_all_ref, pp_ref, feat_q_ref,
                          fw1_ref, wds_ref, shift_ref, out_ref, *, k):
    # xyz_q_ref   : (1, TM, 3)      query-point coordinates (this row tile)
    # xyz_all_ref : (1, Np, 3)      all (padded) point coordinates
    # pp_ref      : (1, 1, Np)      column squared norms, +inf on padded columns
    # feat_q_ref  : (1, TM, C)      center features (this row tile)
    # fw1_ref     : (1, Np, U_pad)  precomputed feat_all @ (W1*bn_scale)
    # wds_ref     : (C, U_pad)      (W2 - W1) * bn_scale  (acts on the center feature)
    # shift_ref   : (1, U_pad)      folded BN shift
    # out_ref     : (1, TM, U_pad)
    q = xyz_q_ref[0]                                   # (TM, 3)
    p = xyz_all_ref[0]                                 # (Np, 3)
    n_pad = p.shape[0]

    # negative squared distance up to a per-row constant (ranking-preserving);
    # padded columns have pp = +inf -> dist = -inf -> never selected.
    qp2 = 2.0 * lax.dot_general(q, p, (((1,), (1,)), ((), ())),
                                preferred_element_type=jnp.float32)   # (TM, Np)
    dist = qp2 - pp_ref[0]                                            # (TM, Np)

    # center-side term with BN-folded (W2 - W1): tiny (TM,C)x(C,U_pad) matmul
    cw = jnp.dot(feat_q_ref[0], wds_ref[...],
                 preferred_element_type=jnp.float32)                  # (TM, U_pad)

    fw1 = fw1_ref[0]                                                  # (Np, U_pad)
    cols = lax.broadcasted_iota(jnp.int32, (1, n_pad), 1)             # (1, Np), broadcast only
    one = jnp.ones((), fw1.dtype)
    zero = jnp.zeros((), fw1.dtype)
    neg_inf = jnp.float32(-jnp.inf)
    acc0 = jnp.full((q.shape[0], fw1.shape[1]), neg_inf, dtype=jnp.float32)

    # TODO(synk): for very large N, replace the per-k one-hot matmul gather with a
    # direct per-row DMA gather of fw1, and add an N-chunked streaming top-k grid
    # axis (running dist/acc state in scratch) to bound VMEM on v7x (64 MiB).
    def select_one(_, carry):
        d, acc = carry
        rowmax = jnp.max(d, axis=1, keepdims=True)                        # (TM, 1)
        sel = jnp.min(jnp.where(d == rowmax, cols, n_pad),
                      axis=1, keepdims=True)                              # lowest tied idx
        onehot = cols == sel                                              # (TM, Np), one True/row
        gmat = jnp.where(onehot, one, zero)                               # matmul dtype directly
        nw = jnp.dot(gmat, fw1, preferred_element_type=jnp.float32)       # gathered (TM, U_pad)
        acc = jnp.maximum(acc, nw)                                        # running max over k
        d = jnp.where(onehot, neg_inf, d)                                 # mask chosen column
        return d, acc

    _, acc = lax.fori_loop(0, k, select_one, (dist, acc0), unroll=True)

    # shift + LeakyReLU(0.2) after the k-max (exact), on (TM, U_pad) only
    h = acc + cw + shift_ref[...]
    out_ref[0] = jnp.where(h > 0, h, 0.2 * h)


# ------------------------------ GCN layer forward (wrapper) ------------------------------

def gcn_layer_forward(inputs, xyz, params, k=8, last_layer=False,
                      gather_dtype=jnp.float32):
    """inputs: (B, N, C_in) f32, xyz: (B, 3, N) f32 -> (B, N, U)."""
    B, N, C = inputs.shape
    U = params["conv_w"].shape[0]
    assert k <= N, "k-NN requires k <= number of points"

    xyz_t = jnp.transpose(xyz.reshape(B, -1, N), (0, 2, 1)).astype(jnp.float32)  # (B, N, 3)

    # pad N up to a multiple of 128: keeps all tiles (8,128)-aligned, avoids the
    # quadratic-VMEM TM=N fallback.  Padded columns MUST get pp = +inf so their
    # negative distance is -inf and they are never selected; padded query rows
    # produce junk that is sliced off below.
    n_pad = ((N + 127) // 128) * 128
    xyz_p = jnp.pad(xyz_t, ((0, 0), (0, n_pad - N), (0, 0)))
    feat_p = jnp.pad(inputs.astype(jnp.float32), ((0, 0), (0, n_pad - N), (0, 0)))
    pp = jnp.sum(xyz_p * xyz_p, axis=-1)                                  # (B, n_pad)
    col_valid = (jnp.arange(n_pad) < N)[None, :]
    pp = jnp.where(col_valid, pp, jnp.inf)[:, None, :]                    # (B, 1, n_pad)

    # fold eval-mode BatchNorm2d(eps=1e-3) scale into the conv weights (exact,
    # commutes with the k-max since it is per output channel pre-max); shift
    # stays additive post-max.
    eps = 1e-3
    scale = params["bn_gamma"] / jnp.sqrt(params["bn_var"] + eps)         # (U,)
    shift = params["bn_beta"] - params["bn_mean"] * scale                 # (U,)
    w = params["conv_w"]                                                  # (U, 2C)
    w1 = jnp.transpose(w[:, :C])                                          # (C, U) acts on (neigh - center)
    w2 = jnp.transpose(w[:, C:])                                          # (C, U) acts on center
    w1s = w1 * scale[None, :]
    wds = (w2 - w1) * scale[None, :]

    # lane-dense output: pad channel dim to a multiple of 128, slice after the call
    u_pad = ((U + 127) // 128) * 128
    w1s_p = jnp.pad(w1s, ((0, 0), (0, u_pad - U)))
    wds_p = jnp.pad(wds, ((0, 0), (0, u_pad - U)))
    shift_p = jnp.pad(shift, (0, u_pad - U))[None, :]

    # HOISTED: fw1 depends only on the batch index, so compute it once per batch
    # as one XLA matmul instead of once per row tile inside the kernel.  Cast to
    # the gather dtype (bf16 halves HBM traffic and triples MXU throughput for
    # the dominant gather matmuls; f32 keeps the exact 1e-4 match).
    fw1 = jnp.einsum("bnc,cu->bnu", feat_p, w1s_p,
                     preferred_element_type=jnp.float32).astype(gather_dtype)

    # row-tile size: 256 fills the 256-row MXU on v6e/v7x; fall back to 128 for
    # large N to keep in-kernel (TM, N) temporaries within the VMEM budget.
    TM = 256 if (n_pad % 256 == 0 and n_pad <= 4096) else 128
    TM = min(TM, n_pad)
    grid = (B, n_pad // TM)

    gb = jnp.dtype(gather_dtype).itemsize
    flops = int(2 * B * n_pad * n_pad * 3                 # dist matmuls
                + 2 * B * n_pad * C * u_pad               # center matmuls
                + 2 * k * B * n_pad * n_pad * u_pad)      # one-hot gather matmuls
    bytes_per_step = (TM * 3 * 4 + n_pad * 3 * 4 + n_pad * 4 + TM * C * 4
                      + n_pad * u_pad * gb + C * u_pad * 4 + u_pad * 4
                      + TM * u_pad * 4)
    cost = pl.CostEstimate(flops=flops, transcendentals=0,
                           bytes_accessed=int(bytes_per_step * B * (n_pad // TM)))

    out_p = pl.pallas_call(
        functools.partial(fused_edgeconv_kernel, k=k),
        out_shape=jax.ShapeDtypeStruct((B, n_pad, u_pad), jnp.float32),
        grid=grid,
        in_specs=[
            pl.BlockSpec((1, TM, 3), lambda b, m: (b, m, 0)),       # query xyz tile
            pl.BlockSpec((1, n_pad, 3), lambda b, m: (b, 0, 0)),    # all xyz (padded)
            pl.BlockSpec((1, 1, n_pad), lambda b, m: (b, 0, 0)),    # column squared norms (+inf pad)
            pl.BlockSpec((1, TM, C), lambda b, m: (b, m, 0)),       # center features tile
            pl.BlockSpec((1, n_pad, u_pad), lambda b, m: (b, 0, 0)),  # hoisted fw1 (per batch)
            pl.BlockSpec((C, u_pad), lambda b, m: (0, 0)),          # (W2 - W1) * scale
            pl.BlockSpec((1, u_pad), lambda b, m: (0, 0)),          # shift
        ],
        out_specs=pl.BlockSpec((1, TM, u_pad), lambda b, m: (b, m, 0)),
        compiler_params=pltpu.CompilerParams(
            dimension_semantics=("parallel", "parallel"),
            vmem_limit_bytes=48 * 1024 * 1024,                      # fits v7x 64 MiB parts
        ),
        cost_estimate=cost,
    )(xyz_p, xyz_p, pp, feat_p, fw1, wds_p, shift_p)

    # TODO(synk): when chaining GCN layers (U << 128, e.g. the first layer), keep
    # the padded (n_pad, u_pad) output end-to-end (zero-pad the next layer's
    # weights) instead of slicing, so stores stay lane-dense with no extra traffic.
    # TODO(synk): for deep layers with U_pad >= 256, gather raw features instead
    # of fw1 (k one-hot matmuls into (TM,k,C) then one conv matmul) to cut the
    # dominant MXU work when C < U_pad.
    out = out_p[:, :N, :U]                                            # (B, N, U)
    if last_layer:
        out = jnp.transpose(jnp.max(out, axis=1, keepdims=True), (0, 2, 1))  # (B, U, 1)
    return out


# ------------------------------ pure-JAX reference (torch semantics) ------------------------------

def reference_forward(inputs, xyz, params, k=8):
    B, N, C = inputs.shape
    x = jnp.transpose(xyz.reshape(B, -1, N), (0, 2, 1))        # (B, N, 3)
    xx = jnp.sum(x * x, axis=-1, keepdims=True)
    inner2 = 2.0 * jnp.einsum("bnd,bmd->bnm", x, x)
    neg_dist = inner2 - xx - jnp.swapaxes(xx, 1, 2)
    idx = lax.top_k(neg_dist, k)[1]
    neigh = jax.vmap(lambda f, i: f[i])(inputs, idx)           # (B, N, k, C)
    center = jnp.broadcast_to(inputs[:, :, None, :], neigh.shape)
    edge = jnp.concatenate([neigh - center, center], axis=-1)  # (B, N, k, 2C)
    h = jnp.einsum("bnkc,uc->bnku", edge, params["conv_w"])
    eps = 1e-3
    scale = params["bn_gamma"] / jnp.sqrt(params["bn_var"] + eps)
    shift = params["bn_beta"] - params["bn_mean"] * scale
    h = h * scale + shift
    h = jnp.where(h > 0, h, 0.2 * h)
    return jnp.max(h, axis=2)                                  # (B, N, U)


# ------------------------------ main ------------------------------

if __name__ == "__main__":
    key = jax.random.PRNGKey(0)
    B, N, C_in, U, K = 2, 16, 4, 16, 8          # GCNLayer(in_channels=4, out_channels=16), k=8
    k1, k2, k3, k4, k5, k6, k7 = jax.random.split(key, 7)

    inputs = jax.random.normal(k1, (B, N, C_in), jnp.float32)   # point features
    xyz = jax.random.normal(k2, (B, 3, N), jnp.float32)         # point coordinates

    # deterministic synthetic parameters (Conv2d 1x1 no-bias + BatchNorm2d eval stats)
    params = {
        "conv_w": 0.1 * jax.random.normal(k3, (U, 2 * C_in), jnp.float32),
        "bn_gamma": 1.0 + 0.1 * jax.random.normal(k4, (U,), jnp.float32),
        "bn_beta": 0.05 * jax.random.normal(k5, (U,), jnp.float32),
        "bn_mean": 0.1 * jax.random.normal(k6, (U,), jnp.float32),
        "bn_var": 0.5 + jnp.abs(jax.random.normal(k7, (U,), jnp.float32)),
    }

    ref = reference_forward(inputs, xyz, params, k=K)

    # exact f32 path (gather matmuls in f32): matches the reference to 1e-4
    out = jax.block_until_ready(gcn_layer_forward(inputs, xyz, params, k=K))
    assert out.shape == (B, N, U)
    np.testing.assert_allclose(np.asarray(out), np.asarray(ref), rtol=1e-4, atol=1e-4)

    # bf16 gather path (deployment mode): one-hot + fw1 in bf16, f32 accumulate
    out_bf16 = jax.block_until_ready(
        gcn_layer_forward(inputs, xyz, params, k=K, gather_dtype=jnp.bfloat16))
    np.testing.assert_allclose(np.asarray(out_bf16), np.asarray(ref), rtol=3e-2, atol=3e-2)

    print("KERNEL_OK")
</pallas_src>

<mosaic_0001>
module attributes {stable_mosaic.version = 11 : i64} {
  func.func @fused_edgeconv_kernel(%arg0: i32, %arg1: i32, %arg2: memref<1x128x3xf32, #tpu.memory_space<vmem>>, %arg3: memref<1x128x3xf32, #tpu.memory_space<vmem>>, %arg4: memref<1x1x128xf32, #tpu.memory_space<vmem>>, %arg5: memref<1x128x4xf32, #tpu.memory_space<vmem>>, %arg6: memref<1x128x128xf32, #tpu.memory_space<vmem>>, %arg7: memref<4x128xf32, #tpu.memory_space<vmem>>, %arg8: memref<1x128xf32, #tpu.memory_space<vmem>>, %arg9: memref<1x128x128xf32, #tpu.memory_space<vmem>>) attributes {dimension_semantics = [#tpu.dimension_semantics<parallel>, #tpu.dimension_semantics<parallel>], iteration_bounds = array<i64: 2, 1>, scalar_prefetch = 0 : i64, scratch_operands = 0 : i64, tpu.core_type = #tpu.core_type<tc>, window_params = [{transform_indices = @transform_0, window_bounds = array<i64: 1, 128, 3>}, {transform_indices = @transform_1, window_bounds = array<i64: 1, 128, 3>}, {transform_indices = @transform_2, window_bounds = array<i64: 1, 1, 128>}, {transform_indices = @transform_3, window_bounds = array<i64: 1, 128, 4>}, {transform_indices = @transform_4, window_bounds = array<i64: 1, 128, 128>}, {pipeline_mode = #tpu.pipeline_mode<synchronous>, transform_indices = @transform_5, window_bounds = array<i64: 4, 128>}, {pipeline_mode = #tpu.pipeline_mode<synchronous>, transform_indices = @transform_6, window_bounds = array<i64: 1, 128>}, {transform_indices = @transform_7, window_bounds = array<i64: 1, 128, 128>}]} {
    %c0 = arith.constant 0 : index
    %c0_0 = arith.constant 0 : index
    %c0_1 = arith.constant 0 : index
    %0 = vector.load %arg2[%c0, %c0_0, %c0_1] : memref<1x128x3xf32, #tpu.memory_space<vmem>>, vector<1x128x3xf32>
    %1 = vector.shape_cast %0 : vector<1x128x3xf32> to vector<128x3xf32>
    %c0_2 = arith.constant 0 : index
    %c0_3 = arith.constant 0 : index
    %c0_4 = arith.constant 0 : index
    %2 = vector.load %arg3[%c0_2, %c0_3, %c0_4] : memref<1x128x3xf32, #tpu.memory_space<vmem>>, vector<1x128x3xf32>
    %3 = vector.shape_cast %2 : vector<1x128x3xf32> to vector<128x3xf32>
    %cst = arith.constant dense<0.000000e+00> : vector<128x128xf32>
    %4 = tpu.matmul %1, %3, %cst {dimension_numbers = #tpu.dot_dimension_numbers<[1], [1], [0], [0], [0, 0, 1, 0], [], []>} : vector<128x3xf32>, vector<128x3xf32>, vector<128x128xf32> -> vector<128x128xf32>
    %cst_5 = arith.constant 2.000000e+00 : f32
    %5 = vector.broadcast %cst_5 : f32 to vector<128x128xf32>
    %6 = arith.mulf %5, %4 : vector<128x128xf32>
    %c0_6 = arith.constant 0 : index
    %c0_7 = arith.constant 0 : index
    %c0_8 = arith.constant 0 : index
    %7 = vector.load %arg4[%c0_6, %c0_7, %c0_8] : memref<1x1x128xf32, #tpu.memory_space<vmem>>, vector<1x1x128xf32>
    %8 = vector.shape_cast %7 : vector<1x1x128xf32> to vector<1x128xf32>
    %9 = vector.broadcast %8 : vector<1x128xf32> to vector<128x128xf32>
    %10 = arith.subf %6, %9 : vector<128x128xf32>
    %c0_9 = arith.constant 0 : index
    %c0_10 = arith.constant 0 : index
    %c0_11 = arith.constant 0 : index
    %11 = vector.load %arg5[%c0_9, %c0_10, %c0_11] : memref<1x128x4xf32, #tpu.memory_space<vmem>>, vector<1x128x4xf32>
    %12 = vector.shape_cast %11 : vector<1x128x4xf32> to vector<128x4xf32>
    %c0_12 = arith.constant 0 : index
    %c0_13 = arith.constant 0 : index
    %13 = vector.load %arg7[%c0_12, %c0_13] : memref<4x128xf32, #tpu.memory_space<vmem>>, vector<4x128xf32>
    %cst_14 = arith.constant dense<0.000000e+00> : vector<128x128xf32>
    %14 = tpu.matmul %12, %13, %cst_14 {dimension_numbers = #tpu.dot_dimension_numbers<[1], [0], [0], [1], [0, 0, 1, 1], [], []>} : vector<128x4xf32>, vector<4x128xf32>, vector<128x128xf32> -> vector<128x128xf32>
    %c0_15 = arith.constant 0 : index
    %c0_16 = arith.constant 0 : index
    %c0_17 = arith.constant 0 : index
    %15 = vector.load %arg6[%c0_15, %c0_16, %c0_17] : memref<1x128x128xf32, #tpu.memory_space<vmem>>, vector<1x128x128xf32>
    %16 = vector.shape_cast %15 : vector<1x128x128xf32> to vector<128x128xf32>
    %17 = tpu.iota {dimensions = array<i32: 1>} : vector<1x128xi32>
    %cst_18 = arith.constant 0xFF800000 : f32
    %18 = vector.broadcast %cst_18 : f32 to vector<128x128xf32>
    %cst_19 = arith.constant 1.000000e+00 : f32
    %cst_20 = arith.constant 0.000000e+00 : f32
    %cst_21 = arith.constant 0xFF800000 : f32
    %c0_i32 = arith.constant 0 : i32
    %cst_22 = arith.constant dense<0xFF800000> : vector<128xf32>
    %19 = vector.multi_reduction <maximumf>, %10, %cst_22 [1] : vector<128x128xf32> to vector<128xf32>
    %20 = vector.shape_cast %19 : vector<128xf32> to vector<128x1xf32>
    %21 = vector.broadcast %20 : vector<128x1xf32> to vector<128x128xf32>
    %22 = arith.cmpf oeq, %10, %21 : vector<128x128xf32>
    %c128_i32 = arith.constant 128 : i32
    %23 = vector.shape_cast %17 : vector<1x128xi32> to vector<1x128xi32>
    %24 = vector.broadcast %23 : vector<1x128xi32> to vector<128x128xi32>
    %25 = vector.broadcast %c128_i32 : i32 to vector<128x128xi32>
    %26 = arith.select %22, %24, %25 : vector<128x128xi1>, vector<128x128xi32>
    %cst_23 = arith.constant dense<2147483647> : vector<128xi32>
    %27 = vector.multi_reduction <minsi>, %26, %cst_23 [1] : vector<128x128xi32> to vector<128xi32>
    %28 = vector.shape_cast %27 : vector<128xi32> to vector<128x1xi32>
    %29 = vector.broadcast %17 : vector<1x128xi32> to vector<128x128xi32>
    %30 = vector.broadcast %28 : vector<128x1xi32> to vector<128x128xi32>
    %31 = arith.cmpi eq, %29, %30 : vector<128x128xi32>
    %32 = vector.broadcast %cst_19 : f32 to vector<128x128xf32>
    %33 = vector.broadcast %cst_20 : f32 to vector<128x128xf32>
    %34 = arith.select %31, %32, %33 : vector<128x128xi1>, vector<128x128xf32>
    %cst_24 = arith.constant dense<0.000000e+00> : vector<128x128xf32>
    %35 = tpu.matmul %34, %16, %cst_24 {dimension_numbers = #tpu.dot_dimension_numbers<[1], [0], [0], [1], [0, 0, 1, 1], [], []>} : vector<128x128xf32>, vector<128x128xf32>, vector<128x128xf32> -> vector<128x128xf32>
    %36 = arith.maximumf %18, %35 : vector<128x128xf32>
    %37 = vector.broadcast %cst_21 : f32 to vector<128x128xf32>
    %38 = arith.select %31, %37, %10 : vector<128x128xi1>, vector<128x128xf32>
    %c1_i32 = arith.constant 1 : i32
    %cst_25 = arith.constant dense<0xFF800000> : vector<128xf32>
    %39 = vector.multi_reduction <maximumf>, %38, %cst_25 [1] : vector<128x128xf32> to vector<128xf32>
    %40 = vector.shape_cast %39 : vector<128xf32> to vector<128x1xf32>
    %41 = vector.broadcast %40 : vector<128x1xf32> to vector<128x128xf32>
    %42 = arith.cmpf oeq, %38, %41 : vector<128x128xf32>
    %c128_i32_26 = arith.constant 128 : i32
    %43 = vector.shape_cast %17 : vector<1x128xi32> to vector<1x128xi32>
    %44 = vector.broadcast %43 : vector<1x128xi32> to vector<128x128xi32>
    %45 = vector.broadcast %c128_i32_26 : i32 to vector<128x128xi32>
    %46 = arith.select %42, %44, %45 : vector<128x128xi1>, vector<128x128xi32>
    %cst_27 = arith.constant dense<2147483647> : vector<128xi32>
    %47 = vector.multi_reduction <minsi>, %46, %cst_27 [1] : vector<128x128xi32> to vector<128xi32>
    %48 = vector.shape_cast %47 : vector<128xi32> to vector<128x1xi32>
    %49 = vector.broadcast %17 : vector<1x128xi32> to vector<128x128xi32>
    %50 = vector.broadcast %48 : vector<128x1xi32> to vector<128x128xi32>
    %51 = arith.cmpi eq, %49, %50 : vector<128x128xi32>
    %52 = vector.broadcast %cst_19 : f32 to vector<128x128xf32>
    %53 = vector.broadcast %cst_20 : f32 to vector<128x128xf32>
    %54 = arith.select %51, %52, %53 : vector<128x128xi1>, vector<128x128xf32>
    %cst_28 = arith.constant dense<0.000000e+00> : vector<128x128xf32>
    %55 = tpu.matmul %54, %16, %cst_28 {dimension_numbers = #tpu.dot_dimension_numbers<[1], [0], [0], [1], [0, 0, 1, 1], [], []>} : vector<128x128xf32>, vector<128x128xf32>, vector<128x128xf32> -> vector<128x128xf32>
    %56 = arith.maximumf %36, %55 : vector<128x128xf32>
    %57 = vector.broadcast %cst_21 : f32 to vector<128x128xf32>
    %58 = arith.select %51, %57, %38 : vector<128x128xi1>, vector<128x128xf32>
    %c2_i32 = arith.constant 2 : i32
    %cst_29 = arith.constant dense<0xFF800000> : vector<128xf32>
    %59 = vector.multi_reduction <maximumf>, %58, %cst_29 [1] : vector<128x128xf32> to vector<128xf32>
    %60 = vector.shape_cast %59 : vector<128xf32> to vector<128x1xf32>
    %61 = vector.broadcast %60 : vector<128x1xf32> to vector<128x128xf32>
    %62 = arith.cmpf oeq, %58, %61 : vector<128x128xf32>
    %c128_i32_30 = arith.constant 128 : i32
    %63 = vector.shape_cast %17 : vector<1x128xi32> to vector<1x128xi32>
    %64 = vector.broadcast %63 : vector<1x128xi32> to vector<128x128xi32>
    %65 = vector.broadcast %c128_i32_30 : i32 to vector<128x128xi32>
    %66 = arith.select %62, %64, %65 : vector<128x128xi1>, vector<128x128xi32>
    %cst_31 = arith.constant dense<2147483647> : vector<128xi32>
    %67 = vector.multi_reduction <minsi>, %66, %cst_31 [1] : vector<128x128xi32> to vector<128xi32>
    %68 = vector.shape_cast %67 : vector<128xi32> to vector<128x1xi32>
    %69 = vector.broadcast %17 : vector<1x128xi32> to vector<128x128xi32>
    %70 = vector.broadcast %68 : vector<128x1xi32> to vector<128x128xi32>
    %71 = arith.cmpi eq, %69, %70 : vector<128x128xi32>
    %72 = vector.broadcast %cst_19 : f32 to vector<128x128xf32>
    %73 = vector.broadcast %cst_20 : f32 to vector<128x128xf32>
    %74 = arith.select %71, %72, %73 : vector<128x128xi1>, vector<128x128xf32>
    %cst_32 = arith.constant dense<0.000000e+00> : vector<128x128xf32>
    %75 = tpu.matmul %74, %16, %cst_32 {dimension_numbers = #tpu.dot_dimension_numbers<[1], [0], [0], [1], [0, 0, 1, 1], [], []>} : vector<128x128xf32>, vector<128x128xf32>, vector<128x128xf32> -> vector<128x128xf32>
    %76 = arith.maximumf %56, %75 : vector<128x128xf32>
    %77 = vector.broadcast %cst_21 : f32 to vector<128x128xf32>
    %78 = arith.select %71, %77, %58 : vector<128x128xi1>, vector<128x128xf32>
    %c3_i32 = arith.constant 3 : i32
    %cst_33 = arith.constant dense<0xFF800000> : vector<128xf32>
    %79 = vector.multi_reduction <maximumf>, %78, %cst_33 [1] : vector<128x128xf32> to vector<128xf32>
    %80 = vector.shape_cast %79 : vector<128xf32> to vector<128x1xf32>
    %81 = vector.broadcast %80 : vector<128x1xf32> to vector<128x128xf32>
    %82 = arith.cmpf oeq, %78, %81 : vector<128x128xf32>
    %c128_i32_34 = arith.constant 128 : i32
    %83 = vector.shape_cast %17 : vector<1x128xi32> to vector<1x128xi32>
    %84 = vector.broadcast %83 : vector<1x128xi32> to vector<128x128xi32>
    %85 = vector.broadcast %c128_i32_34 : i32 to vector<128x128xi32>
    %86 = arith.select %82, %84, %85 : vector<128x128xi1>, vector<128x128xi32>
    %cst_35 = arith.constant dense<2147483647> : vector<128xi32>
    %87 = vector.multi_reduction <minsi>, %86, %cst_35 [1] : vector<128x128xi32> to vector<128xi32>
    %88 = vector.shape_cast %87 : vector<128xi32> to vector<128x1xi32>
    %89 = vector.broadcast %17 : vector<1x128xi32> to vector<128x128xi32>
    %90 = vector.broadcast %88 : vector<128x1xi32> to vector<128x128xi32>
    %91 = arith.cmpi eq, %89, %90 : vector<128x128xi32>
    %92 = vector.broadcast %cst_19 : f32 to vector<128x128xf32>
    %93 = vector.broadcast %cst_20 : f32 to vector<128x128xf32>
    %94 = arith.select %91, %92, %93 : vector<128x128xi1>, vector<128x128xf32>
    %cst_36 = arith.constant dense<0.000000e+00> : vector<128x128xf32>
    %95 = tpu.matmul %94, %16, %cst_36 {dimension_numbers = #tpu.dot_dimension_numbers<[1], [0], [0], [1], [0, 0, 1, 1], [], []>} : vector<128x128xf32>, vector<128x128xf32>, vector<128x128xf32> -> vector<128x128xf32>
    %96 = arith.maximumf %76, %95 : vector<128x128xf32>
    %97 = vector.broadcast %cst_21 : f32 to vector<128x128xf32>
    %98 = arith.select %91, %97, %78 : vector<128x128xi1>, vector<128x128xf32>
    %c4_i32 = arith.constant 4 : i32
    %cst_37 = arith.constant dense<0xFF800000> : vector<128xf32>
    %99 = vector.multi_reduction <maximumf>, %98, %cst_37 [1] : vector<128x128xf32> to vector<128xf32>
    %100 = vector.shape_cast %99 : vector<128xf32> to vector<128x1xf32>
    %101 = vector.broadcast %100 : vector<128x1xf32> to vector<128x128xf32>
    %102 = arith.cmpf oeq, %98, %101 : vector<128x128xf32>
    %c128_i32_38 = arith.constant 128 : i32
    %103 = vector.shape_cast %17 : vector<1x128xi32> to vector<1x128xi32>
    %104 = vector.broadcast %103 : vector<1x128xi32> to vector<128x128xi32>
    %105 = vector.broadcast %c128_i32_38 : i32 to vector<128x128xi32>
    %106 = arith.select %102, %104, %105 : vector<128x128xi1>, vector<128x128xi32>
    %cst_39 = arith.constant dense<2147483647> : vector<128xi32>
    %107 = vector.multi_reduction <minsi>, %106, %cst_39 [1] : vector<128x128xi32> to vector<128xi32>
    %108 = vector.shape_cast %107 : vector<128xi32> to vector<128x1xi32>
    %109 = vector.broadcast %17 : vector<1x128xi32> to vector<128x128xi32>
    %110 = vector.broadcast %108 : vector<128x1xi32> to vector<128x128xi32>
    %111 = arith.cmpi eq, %109, %110 : vector<128x128xi32>
    %112 = vector.broadcast %cst_19 : f32 to vector<128x128xf32>
    %113 = vector.broadcast %cst_20 : f32 to vector<128x128xf32>
    %114 = arith.select %111, %112, %113 : vector<128x128xi1>, vector<128x128xf32>
    %cst_40 = arith.constant dense<0.000000e+00> : vector<128x128xf32>
    %115 = tpu.matmul %114, %16, %cst_40 {dimension_numbers = #tpu.dot_dimension_numbers<[1], [0], [0], [1], [0, 0, 1, 1], [], []>} : vector<128x128xf32>, vector<128x128xf32>, vector<128x128xf32> -> vector<128x128xf32>
    %116 = arith.maximumf %96, %115 : vector<128x128xf32>
    %117 = vector.broadcast %cst_21 : f32 to vector<128x128xf32>
    %118 = arith.select %111, %117, %98 : vector<128x128xi1>, vector<128x128xf32>
    %c5_i32 = arith.constant 5 : i32
    %cst_41 = arith.constant dense<0xFF800000> : vector<128xf32>
    %119 = vector.multi_reduction <maximumf>, %118, %cst_41 [1] : vector<128x128xf32> to vector<128xf32>
    %120 = vector.shape_cast %119 : vector<128xf32> to vector<128x1xf32>
    %121 = vector.broadcast %120 : vector<128x1xf32> to vector<128x128xf32>
    %122 = arith.cmpf oeq, %118, %121 : vector<128x128xf32>
    %c128_i32_42 = arith.constant 128 : i32
    %123 = vector.shape_cast %17 : vector<1x128xi32> to vector<1x128xi32>
    %124 = vector.broadcast %123 : vector<1x128xi32> to vector<128x128xi32>
    %125 = vector.broadcast %c128_i32_42 : i32 to vector<128x128xi32>
    %126 = arith.select %122, %124, %125 : vector<128x128xi1>, vector<128x128xi32>
    %cst_43 = arith.constant dense<2147483647> : vector<128xi32>
    %127 = vector.multi_reduction <minsi>, %126, %cst_43 [1] : vector<128x128xi32> to vector<128xi32>
    %128 = vector.shape_cast %127 : vector<128xi32> to vector<128x1xi32>
    %129 = vector.broadcast %17 : vector<1x128xi32> to vector<128x128xi32>
    %130 = vector.broadcast %128 : vector<128x1xi32> to vector<128x128xi32>
    %131 = arith.cmpi eq, %129, %130 : vector<128x128xi32>
    %132 = vector.broadcast %cst_19 : f32 to vector<128x128xf32>
    %133 = vector.broadcast %cst_20 : f32 to vector<128x128xf32>
    %134 = arith.select %131, %132, %133 : vector<128x128xi1>, vector<128x128xf32>
    %cst_44 = arith.constant dense<0.000000e+00> : vector<128x128xf32>
    %135 = tpu.matmul %134, %16, %cst_44 {dimension_numbers = #tpu.dot_dimension_numbers<[1], [0], [0], [1], [0, 0, 1, 1], [], []>} : vector<128x128xf32>, vector<128x128xf32>, vector<128x128xf32> -> vector<128x128xf32>
    %136 = arith.maximumf %116, %135 : vector<128x128xf32>
    %137 = vector.broadcast %cst_21 : f32 to vector<128x128xf32>
    %138 = arith.select %131, %137, %118 : vector<128x128xi1>, vector<128x128xf32>
    %c6_i32 = arith.constant 6 : i32
    %cst_45 = arith.constant dense<0xFF800000> : vector<128xf32>
    %139 = vector.multi_reduction <maximumf>, %138, %cst_45 [1] : vector<128x128xf32> to vector<128xf32>
    %140 = vector.shape_cast %139 : vector<128xf32> to vector<128x1xf32>
    %141 = vector.broadcast %140 : vector<128x1xf32> to vector<128x128xf32>
    %142 = arith.cmpf oeq, %138, %141 : vector<128x128xf32>
    %c128_i32_46 = arith.constant 128 : i32
    %143 = vector.shape_cast %17 : vector<1x128xi32> to vector<1x128xi32>
    %144 = vector.broadcast %143 : vector<1x128xi32> to vector<128x128xi32>
    %145 = vector.broadcast %c128_i32_46 : i32 to vector<128x128xi32>
    %146 = arith.select %142, %144, %145 : vector<128x128xi1>, vector<128x128xi32>
    %cst_47 = arith.constant dense<2147483647> : vector<128xi32>
    %147 = vector.multi_reduction <minsi>, %146, %cst_47 [1] : vector<128x128xi32> to vector<128xi32>
    %148 = vector.shape_cast %147 : vector<128xi32> to vector<128x1xi32>
    %149 = vector.broadcast %17 : vector<1x128xi32> to vector<128x128xi32>
    %150 = vector.broadcast %148 : vector<128x1xi32> to vector<128x128xi32>
    %151 = arith.cmpi eq, %149, %150 : vector<128x128xi32>
    %152 = vector.broadcast %cst_19 : f32 to vector<128x128xf32>
    %153 = vector.broadcast %cst_20 : f32 to vector<128x128xf32>
    %154 = arith.select %151, %152, %153 : vector<128x128xi1>, vector<128x128xf32>
    %cst_48 = arith.constant dense<0.000000e+00> : vector<128x128xf32>
    %155 = tpu.matmul %154, %16, %cst_48 {dimension_numbers = #tpu.dot_dimension_numbers<[1], [0], [0], [1], [0, 0, 1, 1], [], []>} : vector<128x128xf32>, vector<128x128xf32>, vector<128x128xf32> -> vector<128x128xf32>
    %156 = arith.maximumf %136, %155 : vector<128x128xf32>
    %157 = vector.broadcast %cst_21 : f32 to vector<128x128xf32>
    %158 = arith.select %151, %157, %138 : vector<128x128xi1>, vector<128x128xf32>
    %c7_i32 = arith.constant 7 : i32
    %cst_49 = arith.constant dense<0xFF800000> : vector<128xf32>
    %159 = vector.multi_reduction <maximumf>, %158, %cst_49 [1] : vector<128x128xf32> to vector<128xf32>
    %160 = vector.shape_cast %159 : vector<128xf32> to vector<128x1xf32>
    %161 = vector.broadcast %160 : vector<128x1xf32> to vector<128x128xf32>
    %162 = arith.cmpf oeq, %158, %161 : vector<128x128xf32>
    %c128_i32_50 = arith.constant 128 : i32
    %163 = vector.shape_cast %17 : vector<1x128xi32> to vector<1x128xi32>
    %164 = vector.broadcast %163 : vector<1x128xi32> to vector<128x128xi32>
    %165 = vector.broadcast %c128_i32_50 : i32 to vector<128x128xi32>
    %166 = arith.select %162, %164, %165 : vector<128x128xi1>, vector<128x128xi32>
    %cst_51 = arith.constant dense<2147483647> : vector<128xi32>
    %167 = vector.multi_reduction <minsi>, %166, %cst_51 [1] : vector<128x128xi32> to vector<128xi32>
    %168 = vector.shape_cast %167 : vector<128xi32> to vector<128x1xi32>
    %169 = vector.broadcast %17 : vector<1x128xi32> to vector<128x128xi32>
    %170 = vector.broadcast %168 : vector<128x1xi32> to vector<128x128xi32>
    %171 = arith.cmpi eq, %169, %170 : vector<128x128xi32>
    %172 = vector.broadcast %cst_19 : f32 to vector<128x128xf32>
    %173 = vector.broadcast %cst_20 : f32 to vector<128x128xf32>
    %174 = arith.select %171, %172, %173 : vector<128x128xi1>, vector<128x128xf32>
    %cst_52 = arith.constant dense<0.000000e+00> : vector<128x128xf32>
    %175 = tpu.matmul %174, %16, %cst_52 {dimension_numbers = #tpu.dot_dimension_numbers<[1], [0], [0], [1], [0, 0, 1, 1], [], []>} : vector<128x128xf32>, vector<128x128xf32>, vector<128x128xf32> -> vector<128x128xf32>
    %176 = arith.maximumf %156, %175 : vector<128x128xf32>
    %177 = vector.broadcast %cst_21 : f32 to vector<128x128xf32>
    %178 = arith.select %171, %177, %158 : vector<128x128xi1>, vector<128x128xf32>
    %179 = arith.addf %176, %14 : vector<128x128xf32>
    %c0_53 = arith.constant 0 : index
    %c0_54 = arith.constant 0 : index
    %180 = vector.load %arg8[%c0_53, %c0_54] : memref<1x128xf32, #tpu.memory_space<vmem>>, vector<1x128xf32>
    %181 = vector.broadcast %180 : vector<1x128xf32> to vector<128x128xf32>
    %182 = arith.addf %179, %181 : vector<128x128xf32>
    %cst_55 = arith.constant 0.000000e+00 : f32
    %183 = vector.broadcast %cst_55 : f32 to vector<128x128xf32>
    %184 = arith.cmpf ogt, %182, %183 : vector<128x128xf32>
    %cst_56 = arith.constant 2.000000e-01 : f32
    %185 = vector.broadcast %cst_56 : f32 to vector<128x128xf32>
    %186 = arith.mulf %185, %182 : vector<128x128xf32>
    %187 = arith.select %184, %182, %186 : vector<128x128xi1>, vector<128x128xf32>
    %c0_57 = arith.constant 0 : index
    %c0_58 = arith.constant 0 : index
    %c0_59 = arith.constant 0 : index
    %188 = vector.load %arg9[%c0_57, %c0_58, %c0_59] : memref<1x128x128xf32, #tpu.memory_space<vmem>>, vector<1x128x128xf32>
    %189 = vector.shape_cast %188 : vector<1x128x128xf32> to vector<128x128xf32>
    %190 = vector.shape_cast %187 : vector<128x128xf32> to vector<1x128x128xf32>
    tpu.vector_store %arg9[%c0_57, %c0_58, %c0_59], %190 {strides = array<i32>} : memref<1x128x128xf32, #tpu.memory_space<vmem>>, vector<1x128x128xf32>,
    return
  }
  func.func @transform_0(%arg0: i32, %arg1: i32) -> (i32, i32, i32) {
    %c0_i32 = arith.constant 0 : i32
    %c0_i32_0 = arith.constant 0 : i32
    return %arg0, %arg1, %c0_i32 : i32, i32, i32
  }
  func.func @transform_1(%arg0: i32, %arg1: i32) -> (i32, i32, i32) {
    %c0_i32 = arith.constant 0 : i32
    %c0_i32_0 = arith.constant 0 : i32
    %c0_i32_1 = arith.constant 0 : i32
    return %arg0, %c0_i32, %c0_i32_0 : i32, i32, i32
  }
  func.func @transform_2(%arg0: i32, %arg1: i32) -> (i32, i32, i32) {
    %c0_i32 = arith.constant 0 : i32
    %c0_i32_0 = arith.constant 0 : i32
    %c0_i32_1 = arith.constant 0 : i32
    return %arg0, %c0_i32, %c0_i32_0 : i32, i32, i32
  }
  func.func @transform_3(%arg0: i32, %arg1: i32) -> (i32, i32, i32) {
    %c0_i32 = arith.constant 0 : i32
    %c0_i32_0 = arith.constant 0 : i32
    return %arg0, %arg1, %c0_i32 : i32, i32, i32
  }
  func.func @transform_4(%arg0: i32, %arg1: i32) -> (i32, i32, i32) {
    %c0_i32 = arith.constant 0 : i32
    %c0_i32_0 = arith.constant 0 : i32
    %c0_i32_1 = arith.constant 0 : i32
    return %arg0, %c0_i32, %c0_i32_0 : i32, i32, i32
  }
  func.func @transform_5(%arg0: i32, %arg1: i32) -> (i32, i32) {
    %c0_i32 = arith.constant 0 : i32
    %c0_i32_0 = arith.constant 0 : i32
    %c0_i32_1 = arith.constant 0 : i32
    return %c0_i32, %c0_i32_0 : i32, i32
  }
  func.func @transform_6(%arg0: i32, %arg1: i32) -> (i32, i32) {
    %c0_i32 = arith.constant 0 : i32
    %c0_i32_0 = arith.constant 0 : i32
    %c0_i32_1 = arith.constant 0 : i32
    return %c0_i32, %c0_i32_0 : i32, i32
  }
  func.func @transform_7(%arg0: i32, %arg1: i32) -> (i32, i32, i32) {
    %c0_i32 = arith.constant 0 : i32
    %c0_i32_0 = arith.constant 0 : i32
    return %arg0, %arg1, %c0_i32 : i32, i32, i32
  }
}

</mosaic_0001>

<llo_original>
// kernel: tpu_custom_call.1
$region0: #{tpu_custom_call.1}
  #allocation0 [shape = 'u32[]', space=smem, size = 0x4, offset = 0x4, fixed_abs, tag = 'smem constant byte address 0x4 - core index']
  #allocation1 [shape = 'u32[144,128]{1,0:T(1,128)}', space=vmem, size = 0x12000, scoped, tag = 'internal scratch']
  %s0 = inlined_call_operand.vmem [shape: f32[2,128,3], index: 0, kind: input, shape index: {}]
  %s1 = inlined_call_operand.vmem [shape: f32[2,128,3], index: 1, kind: input, shape index: {}]
  %s2 = inlined_call_operand.vmem [shape: f32[2,1,128], index: 2, kind: input, shape index: {}]
  %s3 = inlined_call_operand.vmem [shape: f32[2,128,4], index: 3, kind: input, shape index: {}]
  %s4 = inlined_call_operand.vmem [shape: f32[2,128,128], index: 4, kind: input, shape index: {}]
  %s5 = inlined_call_operand.vmem [shape: f32[4,128], index: 5, kind: input, shape index: {}]
  %s6 = inlined_call_operand.vmem [shape: f32[1,128], index: 6, kind: input, shape index: {}]
  %s7 = inlined_call_operand.hbm [shape: f32[2,128,128], index: 7, kind: output, shape index: {}]
  %s8 = sld [smem:[#allocation0]]
  $region61: #{tpu_custom_call.1} parent=0
    _
  %s10 = ssub.s32 1, %s8
  %s11 = scalar_select 0, %s10, %s8
  $region1: #{tpu_custom_call.1} parent=0
    #allocation2 [shape = 'u8[131072]{0}', space=vmem, size = 0x20000, scoped, tag = 'output window, operand 0']
    #allocation3 [shape = 's32[2]{0}', space=sflag, size = 0x8, scoped, tag = 'scoped memory for tpu_custom_call.1']
    %12 = vsyncpa [#allocation3], 0
    %s13 = scalar_lea.sflag [#allocation3], 1
    %14 = vsyncpa %s13, 0
    loop: start=0, step=1, limit=4
    $region2: #{tpu_custom_call.1} parent=1 // loop_pre_header
      _
    $region3: #{tpu_custom_call.1} parent=1 // loop_header
      %s16 = sphi 0, %s20
      %p17 = scmp.ge.s32.totalorder %s16, 4
      %s23 = sphi 0, %s35
      %s24 = sphi 0, %s31
      %s25 = sphi 0, %s23
      %s26 = sphi 0, %s24
      %s27 = sphi 0, %s25
      %s28 = sphi 0, %s26
      %s40 = sphi 0, %s42
      %s43 = sphi 0, %s40
      %s44 = sphi 0, %s43
      %s60 = sphi 0, %s44
      %s66 = sphi 0, %s68
      %s69 = sphi 0, %s66
      %s70 = sphi 0, %s69
      %s86 = sphi 0, %s70
      %s92 = sphi 0, %s94
      %s95 = sphi 0, %s92
      %s96 = sphi 0, %s95
      %s112 = sphi 0, %s96
      %s120 = sphi 0, %s122
      %s123 = sphi 0, %s120
      %s124 = sphi 0, %s123
      %s140 = sphi 0, %s124
      %s146 = sphi 0, %s148
      %s149 = sphi 0, %s146
      %s150 = sphi 0, %s149
      %s166 = sphi 0, %s150
      %s170 = sphi 0, %s170
      %s172 = sphi 0, %s170
      %s173 = sphi 0, %s172
      %s187 = sphi 0, %s173
      %s191 = sphi 0, %s191
      %s193 = sphi 0, %s191
      %s194 = sphi 0, %s193
      %s208 = sphi 0, %s194
      %s216 = sphi 0, %s218
      %s219 = sphi 0, %s216
      %s220 = sphi 0, %s219
      %s236 = sphi 0, %s220
    $region4: #{tpu_custom_call.1} parent=1 // loop_header_branch
      %19 = sbr.rel (%p17) target = $region8
    $region5: #{tpu_custom_call.1} parent=1 // loop_body
      %s21 = ssub.s32 %s16, 1
      %s22 = ssub.s32 %s16, 2
      %s29 = sadd.s32 1, %s24
      %p30 = scmp.ge.s32.totalorder %s29, 1
      %s31 = scalar_select %p30, 0, %s29
      %s32 = sadd.s32 1, %s23
      %s33 = scalar_select %p30, %s32, %s23
      %p34 = scmp.ge.s32.totalorder %s33, 2
      %s35 = scalar_select %p34, 0, %s33
      %s36 = ssub.s32 %s23, %s35
      %s37 = ssub.s32 %s24, %s31
      %s38 = sor.u32 %s36, %s37
      %p39 = scmp.eq.s32.totalorder %s38, 0
      %s41 = sadd.s32 %s40, 1
      %s42 = scalar_select %p39, %s40, %s41
      %p45 = pneg %p39
      %p46 = scmp.eq.s32.totalorder %s16, 1
      %p47 = por %p45, %p46
      %p48 = scmp.ne.s32.totalorder %s40, %s43
      %p49 = scmp.eq.s32.totalorder %s16, 0
      %p50 = por %p48, %p49
      %p51 = scmp.ne.s32.totalorder %s40, %s43
      %p52 = scmp.eq.s32.totalorder %s21, 1
      %p53 = por %p51, %p52
      %p54 = scmp.ne.s32.totalorder %s43, %s44
      %p55 = scmp.eq.s32.totalorder %s21, 0
      %p56 = por %p54, %p55
      %p57 = scmp.ne.s32.totalorder %s43, %s44
      %p58 = scmp.eq.s32.totalorder %s22, 1
      %p59 = por %p57, %p58
      %p61 = scmp.ne.s32.totalorder %s44, %s60
      %p62 = scmp.eq.s32.totalorder %s22, 0
      %p63 = por %p61, %p62
      %s64 = ssub.s32 %s23, %s35
      %p65 = scmp.eq.s32.totalorder %s64, 0
      %s67 = sadd.s32 %s66, 1
      %s68 = scalar_select %p65, %s66, %s67
      %p71 = pneg %p65
      %p72 = scmp.eq.s32.totalorder %s16, 1
      %p73 = por %p71, %p72
      %p74 = scmp.ne.s32.totalorder %s66, %s69
      %p75 = scmp.eq.s32.totalorder %s16, 0
      %p76 = por %p74, %p75
      %p77 = scmp.ne.s32.totalorder %s66, %s69
      %p78 = scmp.eq.s32.totalorder %s21, 1
      %p79 = por %p77, %p78
      %p80 = scmp.ne.s32.totalorder %s69, %s70
      %p81 = scmp.eq.s32.totalorder %s21, 0
      %p82 = por %p80, %p81
      %p83 = scmp.ne.s32.totalorder %s69, %s70
      %p84 = scmp.eq.s32.totalorder %s22, 1
      %p85 = por %p83, %p84
      %p87 = scmp.ne.s32.totalorder %s70, %s86
      %p88 = scmp.eq.s32.totalorder %s22, 0
      %p89 = por %p87, %p88
      %s90 = ssub.s32 %s23, %s35
      %p91 = scmp.eq.s32.totalorder %s90, 0
      %s93 = sadd.s32 %s92, 1
      %s94 = scalar_select %p91, %s92, %s93
      %p97 = pneg %p91
      %p98 = scmp.eq.s32.totalorder %s16, 1
      %p99 = por %p97, %p98
      %p100 = scmp.ne.s32.totalorder %s92, %s95
      %p101 = scmp.eq.s32.totalorder %s16, 0
      %p102 = por %p100, %p101
      %p103 = scmp.ne.s32.totalorder %s92, %s95
      %p104 = scmp.eq.s32.totalorder %s21, 1
      %p105 = por %p103, %p104
      %p106 = scmp.ne.s32.totalorder %s95, %s96
      %p107 = scmp.eq.s32.totalorder %s21, 0
      %p108 = por %p106, %p107
      %p109 = scmp.ne.s32.totalorder %s95, %s96
      %p110 = scmp.eq.s32.totalorder %s22, 1
      %p111 = por %p109, %p110
      %p113 = scmp.ne.s32.totalorder %s96, %s112
      %p114 = scmp.eq.s32.totalorder %s22, 0
      %p115 = por %p113, %p114
      %s116 = ssub.s32 %s23, %s35
      %s117 = ssub.s32 %s24, %s31
      %s118 = sor.u32 %s116, %s117
      %p119 = scmp.eq.s32.totalorder %s118, 0
      %s121 = sadd.s32 %s120, 1
      %s122 = scalar_select %p119, %s120, %s121
      %p125 = pneg %p119
      %p126 = scmp.eq.s32.totalorder %s16, 1
      %p127 = por %p125, %p126
      %p128 = scmp.ne.s32.totalorder %s120, %s123
      %p129 = scmp.eq.s32.totalorder %s16, 0
      %p130 = por %p128, %p129
      %p131 = scmp.ne.s32.totalorder %s120, %s123
      %p132 = scmp.eq.s32.totalorder %s21, 1
      %p133 = por %p131, %p132
      %p134 = scmp.ne.s32.totalorder %s123, %s124
      %p135 = scmp.eq.s32.totalorder %s21, 0
      %p136 = por %p134, %p135
      %p137 = scmp.ne.s32.totalorder %s123, %s124
      %p138 = scmp.eq.s32.totalorder %s22, 1
      %p139 = por %p137, %p138
      %p141 = scmp.ne.s32.totalorder %s124, %s140
      %p142 = scmp.eq.s32.totalorder %s22, 0
      %p143 = por %p141, %p142
      %s144 = ssub.s32 %s23, %s35
      %p145 = scmp.eq.s32.totalorder %s144, 0
      %s147 = sadd.s32 %s146, 1
      %s148 = scalar_select %p145, %s146, %s147
      %p151 = pneg %p145
      %p152 = scmp.eq.s32.totalorder %s16, 1
      %p153 = por %p151, %p152
      %p154 = scmp.ne.s32.totalorder %s146, %s149
      %p155 = scmp.eq.s32.totalorder %s16, 0
      %p156 = por %p154, %p155
      %p157 = scmp.ne.s32.totalorder %s146, %s149
      %p158 = scmp.eq.s32.totalorder %s21, 1
      %p159 = por %p157, %p158
      %p160 = scmp.ne.s32.totalorder %s149, %s150
      %p161 = scmp.eq.s32.totalorder %s21, 0
      %p162 = por %p160, %p161
      %p163 = scmp.ne.s32.totalorder %s149, %s150
      %p164 = scmp.eq.s32.totalorder %s22, 1
      %p165 = por %p163, %p164
      %p167 = scmp.ne.s32.totalorder %s150, %s166
      %p168 = scmp.eq.s32.totalorder %s22, 0
      %p169 = por %p167, %p168
      %s171 = sadd.s32 %s170, 1
      %p174 = scmp.eq.s32.totalorder %s16, 1
      %p175 = scmp.ne.s32.totalorder %s170, %s172
      %p176 = scmp.eq.s32.totalorder %s16, 0
      %p177 = por %p175, %p176
      %p178 = scmp.ne.s32.totalorder %s170, %s172
      %p179 = scmp.eq.s32.totalorder %s21, 1
      %p180 = por %p178, %p179
      %p181 = scmp.ne.s32.totalorder %s172, %s173
      %p182 = scmp.eq.s32.totalorder %s21, 0
      %p183 = por %p181, %p182
      %p184 = scmp.ne.s32.totalorder %s172, %s173
      %p185 = scmp.eq.s32.totalorder %s22, 1
      %p186 = por %p184, %p185
      %p188 = scmp.ne.s32.totalorder %s173, %s187
      %p189 = scmp.eq.s32.totalorder %s22, 0
      %p190 = por %p188, %p189
      %s192 = sadd.s32 %s191, 1
      %p195 = scmp.eq.s32.totalorder %s16, 1
      %p196 = scmp.ne.s32.totalorder %s191, %s193
      %p197 = scmp.eq.s32.totalorder %s16, 0
      %p198 = por %p196, %p197
      %p199 = scmp.ne.s32.totalorder %s191, %s193
      %p200 = scmp.eq.s32.totalorder %s21, 1
      %p201 = por %p199, %p200
      %p202 = scmp.ne.s32.totalorder %s193, %s194
      %p203 = scmp.eq.s32.totalorder %s21, 0
      %p204 = por %p202, %p203
      %p205 = scmp.ne.s32.totalorder %s193, %s194
      %p206 = scmp.eq.s32.totalorder %s22, 1
      %p207 = por %p205, %p206
      %p209 = scmp.ne.s32.totalorder %s194, %s208
      %p210 = scmp.eq.s32.totalorder %s22, 0
      %p211 = por %p209, %p210
      %s212 = ssub.s32 %s23, %s35
      %s213 = ssub.s32 %s24, %s31
      %s214 = sor.u32 %s212, %s213
      %p215 = scmp.eq.s32.totalorder %s214, 0
      %s217 = sadd.s32 %s216, 1
      %s218 = scalar_select %p215, %s216, %s217
      %p221 = pneg %p215
      %p222 = scmp.eq.s32.totalorder %s16, 1
      %p223 = por %p221, %p222
      %p224 = scmp.ne.s32.totalorder %s216, %s219
      %p225 = scmp.eq.s32.totalorder %s16, 0
      %p226 = por %p224, %p225
      %p227 = scmp.ne.s32.totalorder %s216, %s219
      %p228 = scmp.eq.s32.totalorder %s21, 1
      %p229 = por %p227, %p228
      %p230 = scmp.ne.s32.totalorder %s219, %s220
      %p231 = scmp.eq.s32.totalorder %s21, 0
      %p232 = por %p230, %p231
      %p233 = scmp.ne.s32.totalorder %s219, %s220
      %p234 = scmp.eq.s32.totalorder %s22, 1
      %p235 = por %p233, %p234
      %p237 = scmp.ne.s32.totalorder %s220, %s236
      %p238 = scmp.eq.s32.totalorder %s22, 0
      %p239 = por %p237, %p238
      %p240 = scmp.le.s32.totalorder 1, %s16
      %p241 = scmp.lt.s32.totalorder %s16, 3
      %p242 = pnand %p240, %p241
      %p243 = pneg %p242
      // Predicated region
      $region9: #{tpu_custom_call.1} parent=5 // pred_check
        _
      $region10: #{tpu_custom_call.1} parent=5 // pred_check_branch
        %245 = sbr.rel (%p242) target = $region12
      $region11: #{tpu_custom_call.1} parent=5 // pred_region
        %s246 = ssub.s32 %s16, 1
        // Predicated region
        $region13: #{tpu_custom_call.1} parent=11 // pred_check
          %p247 = pneg %p183
        $region14: #{tpu_custom_call.1} parent=11 // pred_check_branch
          %249 = sbr.rel (%p247) target = $region16
        $region15: #{tpu_custom_call.1} parent=11 // pred_region
          _
        $region16: #{tpu_custom_call.1} parent=11 // pred_fallthru
          _
        // Predicated region
        $region17: #{tpu_custom_call.1} parent=11 // pred_check
          %p250 = pneg %p204
        $region18: #{tpu_custom_call.1} parent=11 // pred_check_branch
          %252 = sbr.rel (%p250) target = $region20
        $region19: #{tpu_custom_call.1} parent=11 // pred_region
          _
        $region20: #{tpu_custom_call.1} parent=11 // pred_fallthru
          _
      $region12: #{tpu_custom_call.1} parent=5 // pred_fallthru
        _
      %p253 = scmp.lt.s32.totalorder %s16, 2
      // Predicated region
      $region21: #{tpu_custom_call.1} parent=5 // pred_check
        %p254 = pneg %p253
      $region22: #{tpu_custom_call.1} parent=5 // pred_check_branch
        %256 = sbr.rel (%p254) target = $region24
      $region23: #{tpu_custom_call.1} parent=5 // pred_region
        // Predicated region
        $region25: #{tpu_custom_call.1} parent=23 // pred_check
          %p257 = pneg %p50
        $region26: #{tpu_custom_call.1} parent=23 // pred_check_branch
          %259 = sbr.rel (%p257) target = $region28
        $region27: #{tpu_custom_call.1} parent=23 // pred_region
          %s260 = smul.u32 16, %s24
          %p261 = scmp.lt.s32.totalorder %s23, 1
          %s262 = scalar_select %p261, %s23, 1
          %p263 = scmp.lt.s32.totalorder %s260, 15
          %s264 = scalar_select %p263, %s260, 15
          %s265 = smul.addr %s262, 16
          %s266 = sadd.s32 %s264, %s265
          %s267 = smul.addr %s266, 8
          %s268 = scalar_lea.vmem %s0, %s267
          %s269 = smul.u32 16, %s24
        $region28: #{tpu_custom_call.1} parent=23 // pred_fallthru
          _
        // Predicated region
        $region29: #{tpu_custom_call.1} parent=23 // pred_check
          %p270 = pneg %p76
        $region30: #{tpu_custom_call.1} parent=23 // pred_check_branch
          %272 = sbr.rel (%p270) target = $region32
        $region31: #{tpu_custom_call.1} parent=23 // pred_region
          %p273 = scmp.lt.s32.totalorder %s23, 1
          %s274 = scalar_select %p273, %s23, 1
          %s275 = smul.addr %s274, 16
          %s276 = smul.addr %s275, 8
          %s277 = scalar_lea.vmem %s1, %s276
        $region32: #{tpu_custom_call.1} parent=23 // pred_fallthru
          _
        // Predicated region
        $region33: #{tpu_custom_call.1} parent=23 // pred_check
          %p278 = pneg %p102
        $region34: #{tpu_custom_call.1} parent=23 // pred_check_branch
          %280 = sbr.rel (%p278) target = $region36
        $region35: #{tpu_custom_call.1} parent=23 // pred_region
          %p281 = scmp.lt.s32.totalorder %s23, 1
          %s282 = scalar_select %p281, %s23, 1
          %s283 = scalar_lea.vmem %s2, %s282
        $region36: #{tpu_custom_call.1} parent=23 // pred_fallthru
          _
        // Predicated region
        $region37: #{tpu_custom_call.1} parent=23 // pred_check
          %p284 = pneg %p130
        $region38: #{tpu_custom_call.1} parent=23 // pred_check_branch
          %286 = sbr.rel (%p284) target = $region40
        $region39: #{tpu_custom_call.1} parent=23 // pred_region
          %s287 = smul.u32 16, %s24
          %p288 = scmp.lt.s32.totalorder %s23, 1
          %s289 = scalar_select %p288, %s23, 1
          %p290 = scmp.lt.s32.totalorder %s287, 15
          %s291 = scalar_select %p290, %s287, 15
          %s292 = smul.addr %s289, 16
          %s293 = sadd.s32 %s291, %s292
          %s294 = smul.addr %s293, 8
          %s295 = scalar_lea.vmem %s3, %s294
          %s296 = smul.u32 16, %s24
        $region40: #{tpu_custom_call.1} parent=23 // pred_fallthru
          _
        // Predicated region
        $region41: #{tpu_custom_call.1} parent=23 // pred_check
          %p297 = pneg %p156
        $region42: #{tpu_custom_call.1} parent=23 // pred_check_branch
          %299 = sbr.rel (%p297) target = $region44
        $region43: #{tpu_custom_call.1} parent=23 // pred_region
          %p300 = scmp.lt.s32.totalorder %s23, 1
          %s301 = scalar_select %p300, %s23, 1
          %s302 = smul.addr %s301, 16
          %s303 = smul.addr %s302, 8
          %s304 = scalar_lea.vmem %s4, %s303
        $region44: #{tpu_custom_call.1} parent=23 // pred_fallthru
          _
      $region24: #{tpu_custom_call.1} parent=5 // pred_fallthru
        _
      %p305 = scmp.le.s32.totalorder 1, %s16
      %p306 = scmp.lt.s32.totalorder %s16, 3
      %p307 = pnand %p305, %p306
      %p308 = pneg %p307
      // Predicated region
      $region45: #{tpu_custom_call.1} parent=5 // pred_check
        _
      $region46: #{tpu_custom_call.1} parent=5 // pred_check_branch
        %310 = sbr.rel (%p307) target = $region48
      $region47: #{tpu_custom_call.1} parent=5 // pred_region
        %s311 = ssub.s32 %s16, 1
        %s312 = smul.u32 16, %s26
        %p313 = scmp.lt.s32.totalorder %s25, 1
        %s314 = scalar_select %p313, %s25, 1
        %p315 = scmp.lt.s32.totalorder %s312, 15
        %s316 = scalar_select %p315, %s312, 15
        %s317 = smul.addr %s314, 16
        %s318 = sadd.s32 %s316, %s317
        %s319 = smul.addr %s318, 8
        %s320 = scalar_lea.vmem %s0, %s319
        %p321 = pneg %p56
        %p322 = pneg %p53
        %p323 = scmp.lt.s32.totalorder %s25, 1
        %s324 = scalar_select %p323, %s25, 1
        %s325 = smul.addr %s324, 16
        %s326 = smul.addr %s325, 8
        %s327 = scalar_lea.vmem %s1, %s326
        %p328 = pneg %p82
        %p329 = pneg %p79
        %p330 = scmp.lt.s32.totalorder %s25, 1
        %s331 = scalar_select %p330, %s25, 1
        %s332 = scalar_lea.vmem %s2, %s331
        %p333 = pneg %p108
        %p334 = pneg %p105
        %s335 = smul.u32 16, %s26
        %p336 = scmp.lt.s32.totalorder %s25, 1
        %s337 = scalar_select %p336, %s25, 1
        %p338 = scmp.lt.s32.totalorder %s335, 15
        %s339 = scalar_select %p338, %s335, 15
        %s340 = smul.addr %s337, 16
        %s341 = sadd.s32 %s339, %s340
        %s342 = smul.addr %s341, 8
        %s343 = scalar_lea.vmem %s3, %s342
        %p344 = pneg %p136
        %p345 = pneg %p133
        %p346 = scmp.lt.s32.totalorder %s25, 1
        %s347 = scalar_select %p346, %s25, 1
        %s348 = smul.addr %s347, 16
        %s349 = smul.addr %s348, 8
        %s350 = scalar_lea.vmem %s4, %s349
        %p351 = pneg %p162
        %p352 = pneg %p159
        %p353 = pneg %p183
        %p354 = pneg %p180
        %p355 = pneg %p204
        %p356 = pneg %p201
        %p357 = pneg %p232
        %p358 = pneg %p229
        %s359 = sand.u32 %s219, 1
        %s360 = scalar_lea.sflag [#allocation3], %s359
        %s361 = sand.u32 %s219, 1
        %s362 = smul.addr %s361, 128
        %s363 = scalar_lea.vmem [#allocation2], %s362
        %s364 = smul.u32 16, %s26
        %p365 = scmp.lt.s32.totalorder %s25, 1
        %s366 = scalar_select %p365, %s25, 1
        %p367 = scmp.lt.s32.totalorder %s364, 15
        %s368 = scalar_select %p367, %s364, 15
        %s369 = smul.addr %s366, 16
        %s370 = sadd.s32 %s368, %s369
        %s371 = smul.addr %s370, 8
        %s372 = scalar_lea.vmem %s0, %s371
        %s373 = smul.u32 16, %s26
        %p374 = scmp.lt.s32.totalorder %s25, 1
        %s375 = scalar_select %p374, %s25, 1
        %s376 = smul.addr %s375, 16
        %s377 = smul.addr %s376, 8
        %s378 = scalar_lea.vmem %s1, %s377
        %p379 = scmp.lt.s32.totalorder %s25, 1
        %s380 = scalar_select %p379, %s25, 1
        %s381 = scalar_lea.vmem %s2, %s380
        %s382 = smul.u32 16, %s26
        %p383 = scmp.lt.s32.totalorder %s25, 1
        %s384 = scalar_select %p383, %s25, 1
        %p385 = scmp.lt.s32.totalorder %s382, 15
        %s386 = scalar_select %p385, %s382, 15
        %s387 = smul.addr %s384, 16
        %s388 = sadd.s32 %s386, %s387
        %s389 = smul.addr %s388, 8
        %s390 = scalar_lea.vmem %s3, %s389
        %s391 = smul.u32 16, %s26
        %p392 = scmp.lt.s32.totalorder %s25, 1
        %s393 = scalar_select %p392, %s25, 1
        %s394 = smul.addr %s393, 16
        %s395 = smul.addr %s394, 8
        %s396 = scalar_lea.vmem %s4, %s395
        %s397 = smul.u32 16, %s26
        %v398 = vld [vmem:[%s372] sm:$0xff]
        %v399 = vld [vmem:[%s372 + $0x8] sm:$0xff]
        %v400 = vld [vmem:[%s372 + $0x10] sm:$0xff]
        %v401 = vld [vmem:[%s372 + $0x18] sm:$0xff]
        %v402 = vld [vmem:[%s372 + $0x20] sm:$0xff]
        %v403 = vld [vmem:[%s372 + $0x28] sm:$0xff]
        %v404 = vld [vmem:[%s372 + $0x30] sm:$0xff]
        %v405 = vld [vmem:[%s372 + $0x38] sm:$0xff]
        %v406 = vld [vmem:[%s372 + $0x40] sm:$0xff]
        %v407 = vld [vmem:[%s372 + $0x48] sm:$0xff]
        %v408 = vld [vmem:[%s372 + $0x50] sm:$0xff]
        %v409 = vld [vmem:[%s372 + $0x58] sm:$0xff]
        %v410 = vld [vmem:[%s372 + $0x60] sm:$0xff]
        %v411 = vld [vmem:[%s372 + $0x68] sm:$0xff]
        %v412 = vld [vmem:[%s372 + $0x70] sm:$0xff]
        %v413 = vld [vmem:[%s372 + $0x78] sm:$0xff]
        %v414 = vld [vmem:[%s378] sm:$0xff]
        %v415 = vld [vmem:[%s378 + $0x8] sm:$0xff]
        %v416 = vld [vmem:[%s378 + $0x10] sm:$0xff]
        %v417 = vld [vmem:[%s378 + $0x18] sm:$0xff]
        %v418 = vld [vmem:[%s378 + $0x20] sm:$0xff]
        %v419 = vld [vmem:[%s378 + $0x28] sm:$0xff]
        %v420 = vld [vmem:[%s378 + $0x30] sm:$0xff]
        %v421 = vld [vmem:[%s378 + $0x38] sm:$0xff]
        %v422 = vld [vmem:[%s378 + $0x40] sm:$0xff]
        %v423 = vld [vmem:[%s378 + $0x48] sm:$0xff]
        %v424 = vld [vmem:[%s378 + $0x50] sm:$0xff]
        %v425 = vld [vmem:[%s378 + $0x58] sm:$0xff]
        %v426 = vld [vmem:[%s378 + $0x60] sm:$0xff]
        %v427 = vld [vmem:[%s378 + $0x68] sm:$0xff]
        %v428 = vld [vmem:[%s378 + $0x70] sm:$0xff]
        %v429 = vld [vmem:[%s378 + $0x78] sm:$0xff]
        %vm430 = vcmask 23552
        %v432 = vsel %vm430, %v398, 0
        %v435 = vsel %vm430, %v399, 0
        %v438 = vsel %vm430, %v400, 0
        %v441 = vsel %vm430, %v401, 0
        %v444 = vsel %vm430, %v402, 0
        %v447 = vsel %vm430, %v403, 0
        %v450 = vsel %vm430, %v404, 0
        %v453 = vsel %vm430, %v405, 0
        %v456 = vsel %vm430, %v406, 0
        %v459 = vsel %vm430, %v407, 0
        %v462 = vsel %vm430, %v408, 0
        %v465 = vsel %vm430, %v409, 0
        %v468 = vsel %vm430, %v410, 0
        %v471 = vsel %vm430, %v411, 0
        %v474 = vsel %vm430, %v412, 0
        %v477 = vsel %vm430, %v413, 0
        %v480 = vsel %vm430, %v414, 0
        %v483 = vsel %vm430, %v415, 0
        %v486 = vsel %vm430, %v416, 0
        %v489 = vsel %vm430, %v417, 0
        %v492 = vsel %vm430, %v418, 0
        %v495 = vsel %vm430, %v419, 0
        %v498 = vsel %vm430, %v420, 0
        %v501 = vsel %vm430, %v421, 0
        %v504 = vsel %vm430, %v422, 0
        %v507 = vsel %vm430, %v423, 0
        %v510 = vsel %vm430, %v424, 0
        %v513 = vsel %vm430, %v425, 0
        %v516 = vsel %vm430, %v426, 0
        %v519 = vsel %vm430, %v427, 0
        %v522 = vsel %vm430, %v428, 0
        %v525 = vsel %vm430, %v429, 0
        %527 = vmatprep.subr.mxu0 0.0
        %528 = vmatpush1.xpose.msra.mxu0 %v480
        %529 = vmatprep.subr.mxu0 0.0
        %530 = vmatpush1.xpose.msra.mxu0 %v483
        %531 = vmatprep.subr.mxu0 0.0
        %532 = vmatpush1.xpose.msra.mxu0 %v486
        %533 = vmatprep.subr.mxu0 0.0
        %534 = vmatpush1.xpose.msra.mxu0 %v489
        %535 = vmatprep.subr.mxu0 0.0
        %536 = vmatpush1.xpose.msra.mxu0 %v492
        %537 = vmatprep.subr.mxu0 0.0
        %538 = vmatpush1.xpose.msra.mxu0 %v495
        %539 = vmatprep.subr.mxu0 0.0
        %540 = vmatpush1.xpose.msra.mxu0 %v498
        %541 = vmatprep.subr.mxu0 0.0
        %542 = vmatpush1.xpose.msra.mxu0 %v501
        %543 = vmatprep.subr.mxu0 0.0
        %544 = vmatpush1.xpose.msra.mxu0 %v504
        %545 = vmatprep.subr.mxu0 0.0
        %546 = vmatpush1.xpose.msra.mxu0 %v507
        %547 = vmatprep.subr.mxu0 0.0
        %548 = vmatpush1.xpose.msra.mxu0 %v510
        %549 = vmatprep.subr.mxu0 0.0
        %550 = vmatpush1.xpose.msra.mxu0 %v513
        %551 = vmatprep.subr.mxu0 0.0
        %552 = vmatpush1.xpose.msra.mxu0 %v516
        %553 = vmatprep.subr.mxu0 0.0
        %554 = vmatpush1.xpose.msra.mxu0 %v519
        %555 = vmatprep.subr.mxu0 0.0
        %556 = vmatpush1.xpose.msra.mxu0 %v522
        %557 = vmatprep.subr.mxu0 0.0
        %558 = vmatpush1.xpose.msra.mxu0 %v525
        %559 = vmatprep.subr.mxu0 0.0
        %560 = vmatpush1.xpose.msra.mxu0 0.0
        %561 = vmatprep.subr.mxu0 0.0
        %562 = vmatpush1.xpose.msra.mxu0 0.0
        %563 = vmatprep.subr.mxu0 0.0
        %564 = vmatpush1.xpose.msra.mxu0 0.0
        %565 = vmatprep.subr.mxu0 0.0
        %566 = vmatpush1.xpose.msra.mxu0 0.0
        %567 = vmatprep.subr.mxu0 0.0
        %568 = vmatpush1.xpose.msra.mxu0 0.0
        %569 = vmatprep.subr.mxu0 0.0
        %570 = vmatpush1.xpose.msra.mxu0 0.0
        %571 = vmatprep.subr.mxu0 0.0
        %572 = vmatpush1.xpose.msra.mxu0 0.0
        %573 = vmatprep.subr.mxu0 0.0
        %574 = vmatpush1.xpose.msra.mxu0 0.0
        %575 = vmatprep.subr.mxu0 0.0
        %576 = vmatpush1.xpose.msra.mxu0 0.0
        %577 = vmatprep.subr.mxu0 0.0
        %578 = vmatpush1.xpose.msra.mxu0 0.0
        %579 = vmatprep.subr.mxu0 0.0
        %580 = vmatpush1.xpose.msra.mxu0 0.0
        %581 = vmatprep.subr.mxu0 0.0
        %582 = vmatpush1.xpose.msra.mxu0 0.0
        %583 = vmatprep.subr.mxu0 0.0
        %584 = vmatpush1.xpose.msra.mxu0 0.0
        %585 = vmatprep.subr.mxu0 0.0
        %586 = vmatpush1.xpose.msra.mxu0 0.0
        %587 = vmatprep.subr.mxu0 0.0
        %588 = vmatpush1.xpose.msra.mxu0 0.0
        %589 = vmatprep.subr.mxu0 0.0
        %590 = vmatpush1.xpose.msra.mxu0 0.0
        %591 = vmatprep.mubr.f32.mxu0 0.0
        %592 = vmatmul.mubr.f32.gmra.mrb[0].mxu0 %v432
        %v593 = vpop.f32.mrb[0].mxu0
        %v594 = vadd.f32 0.0, %v593
        %v595 = vpop.f32.mrb[0].mxu0
        %596 = vmatprep.mubr.f32.mxu0 0.0
        %597 = vmatmul.mubr.f32.gmra.mrb[0].mxu0 %v435
        %v598 = vpop.f32.mrb[0].mxu0
        %v599 = vadd.f32 0.0, %v598
        %v600 = vpop.f32.mrb[0].mxu0
        %601 = vmatprep.mubr.f32.mxu0 0.0
        %602 = vmatmul.mubr.f32.gmra.mrb[0].mxu0 %v438
        %v603 = vpop.f32.mrb[0].mxu0
        %v604 = vadd.f32 0.0, %v603
        %v605 = vpop.f32.mrb[0].mxu0
        %606 = vmatprep.mubr.f32.mxu0 0.0
        %607 = vmatmul.mubr.f32.gmra.mrb[0].mxu0 %v441
        %v608 = vpop.f32.mrb[0].mxu0
        %v609 = vadd.f32 0.0, %v608
        %v610 = vpop.f32.mrb[0].mxu0
        %611 = vmatprep.mubr.f32.mxu0 0.0
        %612 = vmatmul.mubr.f32.gmra.mrb[0].mxu0 %v444
        %v613 = vpop.f32.mrb[0].mxu0
        %v614 = vadd.f32 0.0, %v613
        %v615 = vpop.f32.mrb[0].mxu0
        %616 = vmatprep.mubr.f32.mxu0 0.0
        %617 = vmatmul.mubr.f32.gmra.mrb[0].mxu0 %v447
        %v618 = vpop.f32.mrb[0].mxu0
        %v619 = vadd.f32 0.0, %v618
        %v620 = vpop.f32.mrb[0].mxu0
        %621 = vmatprep.mubr.f32.mxu0 0.0
        %622 = vmatmul.mubr.f32.gmra.mrb[0].mxu0 %v450
        %v623 = vpop.f32.mrb[0].mxu0
        %v624 = vadd.f32 0.0, %v623
        %v625 = vpop.f32.mrb[0].mxu0
        %626 = vmatprep.mubr.f32.mxu0 0.0
        %627 = vmatmul.mubr.f32.gmra.mrb[0].mxu0 %v453
        %v628 = vpop.f32.mrb[0].mxu0
        %v629 = vadd.f32 0.0, %v628
        %v630 = vpop.f32.mrb[0].mxu0
        %631 = vmatprep.mubr.f32.mxu0 0.0
        %632 = vmatmul.mubr.f32.gmra.mrb[0].mxu0 %v456
        %v633 = vpop.f32.mrb[0].mxu0
        %v634 = vadd.f32 0.0, %v633
        %v635 = vpop.f32.mrb[0].mxu0
        %636 = vmatprep.mubr.f32.mxu0 0.0
        %637 = vmatmul.mubr.f32.gmra.mrb[0].mxu0 %v459
        %v638 = vpop.f32.mrb[0].mxu0
        %v639 = vadd.f32 0.0, %v638
        %v640 = vpop.f32.mrb[0].mxu0
        %641 = vmatprep.mubr.f32.mxu0 0.0
        %642 = vmatmul.mubr.f32.gmra.mrb[0].mxu0 %v462
        %v643 = vpop.f32.mrb[0].mxu0
        %v644 = vadd.f32 0.0, %v643
        %v645 = vpop.f32.mrb[0].mxu0
        %646 = vmatprep.mubr.f32.mxu0 0.0
        %647 = vmatmul.mubr.f32.gmra.mrb[0].mxu0 %v465
        %v648 = vpop.f32.mrb[0].mxu0
        %v649 = vadd.f32 0.0, %v648
        %v650 = vpop.f32.mrb[0].mxu0
        %651 = vmatprep.mubr.f32.mxu0 0.0
        %652 = vmatmul.mubr.f32.gmra.mrb[0].mxu0 %v468
        %v653 = vpop.f32.mrb[0].mxu0
        %v654 = vadd.f32 0.0, %v653
        %v655 = vpop.f32.mrb[0].mxu0
        %656 = vmatprep.mubr.f32.mxu0 0.0
        %657 = vmatmul.mubr.f32.gmra.mrb[0].mxu0 %v471
        %v658 = vpop.f32.mrb[0].mxu0
        %v659 = vadd.f32 0.0, %v658
        %v660 = vpop.f32.mrb[0].mxu0
        %661 = vmatprep.mubr.f32.mxu0 0.0
        %662 = vmatmul.mubr.f32.gmra.mrb[0].mxu0 %v474
        %v663 = vpop.f32.mrb[0].mxu0
        %v664 = vadd.f32 0.0, %v663
        %v665 = vpop.f32.mrb[0].mxu0
        %666 = vmatprep.mubr.f32.mxu0 0.0
        %667 = vmatmul.mubr.f32.gmra.mrb[0].mxu0 %v477
        %v668 = vpop.f32.mrb[0].mxu0
        %v669 = vadd.f32 0.0, %v668
        %v670 = vpop.f32.mrb[0].mxu0
        %671 = vdwg.mxu0
        %v672 = vmul.f32 %v594, 2.0
        %v673 = vmul.f32 %v599, 2.0
        %v674 = vmul.f32 %v604, 2.0
        %v675 = vmul.f32 %v609, 2.0
        %v676 = vmul.f32 %v614, 2.0
        %v677 = vmul.f32 %v619, 2.0
        %v678 = vmul.f32 %v624, 2.0
        %v679 = vmul.f32 %v629, 2.0
        %v680 = vmul.f32 %v634, 2.0
        %v681 = vmul.f32 %v639, 2.0
        %v682 = vmul.f32 %v644, 2.0
        %v683 = vmul.f32 %v649, 2.0
        %v684 = vmul.f32 %v654, 2.0
        %v685 = vmul.f32 %v659, 2.0
        %v686 = vmul.f32 %v664, 2.0
        %v687 = vmul.f32 %v669, 2.0
        %v688 = vld [vmem:[%s381] sm:$0x1]
        %v690 = vlaneseq
        %v691 = vshrl.u32 %v690, 7
        %v692 = vsub.s32 0, %v691
        %v693 = vrot.slane %v688, %v692
        %v695 = vsub.f32 %v672, %v693
        %v696 = vsub.f32 %v673, %v693
        %v697 = vsub.f32 %v674, %v693
        %v698 = vsub.f32 %v675, %v693
        %v699 = vsub.f32 %v676, %v693
        %v700 = vsub.f32 %v677, %v693
        %v701 = vsub.f32 %v678, %v693
        %v702 = vsub.f32 %v679, %v693
        %v703 = vsub.f32 %v680, %v693
        %v704 = vsub.f32 %v681, %v693
        %v705 = vsub.f32 %v682, %v693
        %v706 = vsub.f32 %v683, %v693
        %v707 = vsub.f32 %v684, %v693
        %v708 = vsub.f32 %v685, %v693
        %v709 = vsub.f32 %v686, %v693
        %v710 = vsub.f32 %v687, %v693
        %v711 = vld [vmem:[%s390] sm:$0xff]
        %v712 = vld [vmem:[%s390 + $0x8] sm:$0xff]
        %v713 = vld [vmem:[%s390 + $0x10] sm:$0xff]
        %v714 = vld [vmem:[%s390 + $0x18] sm:$0xff]
        %v715 = vld [vmem:[%s390 + $0x20] sm:$0xff]
        %v716 = vld [vmem:[%s390 + $0x28] sm:$0xff]
        %v717 = vld [vmem:[%s390 + $0x30] sm:$0xff]
        %v718 = vld [vmem:[%s390 + $0x38] sm:$0xff]
        %v719 = vld [vmem:[%s390 + $0x40] sm:$0xff]
        %v720 = vld [vmem:[%s390 + $0x48] sm:$0xff]
        %v721 = vld [vmem:[%s390 + $0x50] sm:$0xff]
        %v722 = vld [vmem:[%s390 + $0x58] sm:$0xff]
        %v723 = vld [vmem:[%s390 + $0x60] sm:$0xff]
        %v724 = vld [vmem:[%s390 + $0x68] sm:$0xff]
        %v725 = vld [vmem:[%s390 + $0x70] sm:$0xff]
        %v726 = vld [vmem:[%s390 + $0x78] sm:$0xff]
        %v727 = vld [vmem:[%s5] sm:$0xf]
        %vm728 = vcmask 31744
        %v730 = vsel %vm728, %v711, 0
        %v733 = vsel %vm728, %v712, 0
        %v736 = vsel %vm728, %v713, 0
        %v739 = vsel %vm728, %v714, 0
        %v742 = vsel %vm728, %v715, 0
        %v745 = vsel %vm728, %v716, 0
        %v748 = vsel %vm728, %v717, 0
        %v751 = vsel %vm728, %v718, 0
        %v754 = vsel %vm728, %v719, 0
        %v757 = vsel %vm728, %v720, 0
        %v760 = vsel %vm728, %v721, 0
        %v763 = vsel %vm728, %v722, 0
        %v766 = vsel %vm728, %v723, 0
        %v769 = vsel %vm728, %v724, 0
        %v772 = vsel %vm728, %v725, 0
        %v775 = vsel %vm728, %v726, 0
        %vm777 = vcmask 1043456
        %v779 = vsel %vm777, %v727, 0
        %781 = vmatprep.subr.mxu0 0.0
        %782 = vmatpush1.msra.mxu0 %v779
        %783 = vmatprep.subr.mxu0 0.0
        %784 = vmatpush1.msra.mxu0 0.0
        %785 = vmatprep.subr.mxu0 0.0
        %786 = vmatpush1.msra.mxu0 0.0
        %787 = vmatprep.subr.mxu0 0.0
        %788 = vmatpush1.msra.mxu0 0.0
        %789 = vmatprep.subr.mxu0 0.0
        %790 = vmatpush1.msra.mxu0 0.0
        %791 = vmatprep.subr.mxu0 0.0
        %792 = vmatpush1.msra.mxu0 0.0
        %793 = vmatprep.subr.mxu0 0.0
        %794 = vmatpush1.msra.mxu0 0.0
        %795 = vmatprep.subr.mxu0 0.0
        %796 = vmatpush1.msra.mxu0 0.0
        %797 = vmatprep.subr.mxu0 0.0
        %798 = vmatpush1.msra.mxu0 0.0
        %799 = vmatprep.subr.mxu0 0.0
        %800 = vmatpush1.msra.mxu0 0.0
        %801 = vmatprep.subr.mxu0 0.0
        %802 = vmatpush1.msra.mxu0 0.0
        %803 = vmatprep.subr.mxu0 0.0
        %804 = vmatpush1.msra.mxu0 0.0
        %805 = vmatprep.subr.mxu0 0.0
        %806 = vmatpush1.msra.mxu0 0.0
        %807 = vmatprep.subr.mxu0 0.0
        %808 = vmatpush1.msra.mxu0 0.0
        %809 = vmatprep.subr.mxu0 0.0
        %810 = vmatpush1.msra.mxu0 0.0
        %811 = vmatprep.subr.mxu0 0.0
        %812 = vmatpush1.msra.mxu0 0.0
        %813 = vmatprep.subr.mxu0 0.0
        %814 = vmatpush1.msra.mxu0 0.0
        %815 = vmatprep.subr.mxu0 0.0
        %816 = vmatpush1.msra.mxu0 0.0
        %817 = vmatprep.subr.mxu0 0.0
        %818 = vmatpush1.msra.mxu0 0.0
        %819 = vmatprep.subr.mxu0 0.0
        %820 = vmatpush1.msra.mxu0 0.0
        %821 = vmatprep.subr.mxu0 0.0
        %822 = vmatpush1.msra.mxu0 0.0
        %823 = vmatprep.subr.mxu0 0.0
        %824 = vmatpush1.msra.mxu0 0.0
        %825 = vmatprep.subr.mxu0 0.0
        %826 = vmatpush1.msra.mxu0 0.0
        %827 = vmatprep.subr.mxu0 0.0
        %828 = vmatpush1.msra.mxu0 0.0
        %829 = vmatprep.subr.mxu0 0.0
        %830 = vmatpush1.msra.mxu0 0.0
        %831 = vmatprep.subr.mxu0 0.0
        %832 = vmatpush1.msra.mxu0 0.0
        %833 = vmatprep.subr.mxu0 0.0
        %834 = vmatpush1.msra.mxu0 0.0
        %835 = vmatprep.subr.mxu0 0.0
        %836 = vmatpush1.msra.mxu0 0.0
        %837 = vmatprep.subr.mxu0 0.0
        %838 = vmatpush1.msra.mxu0 0.0
        %839 = vmatprep.subr.mxu0 0.0
        %840 = vmatpush1.msra.mxu0 0.0
        %841 = vmatprep.subr.mxu0 0.0
        %842 = vmatpush1.msra.mxu0 0.0
        %843 = vmatprep.subr.mxu0 0.0
        %844 = vmatpush1.msra.mxu0 0.0
        %845 = vmatprep.mubr.f32.mxu0 0.0
        %846 = vmatmul.mubr.f32.gmra.mrb[0].mxu0 %v730
        %v847 = vpop.f32.mrb[0].mxu0
        %v848 = vadd.f32 0.0, %v847
        %v849 = vpop.f32.mrb[0].mxu0
        %850 = vmatprep.mubr.f32.mxu0 0.0
        %851 = vmatmul.mubr.f32.gmra.mrb[0].mxu0 %v733
        %v852 = vpop.f32.mrb[0].mxu0
        %v853 = vadd.f32 0.0, %v852
        %v854 = vpop.f32.mrb[0].mxu0
        %855 = vmatprep.mubr.f32.mxu0 0.0
        %856 = vmatmul.mubr.f32.gmra.mrb[0].mxu0 %v736
        %v857 = vpop.f32.mrb[0].mxu0
        %v858 = vadd.f32 0.0, %v857
        %v859 = vpop.f32.mrb[0].mxu0
        %860 = vmatprep.mubr.f32.mxu0 0.0
        %861 = vmatmul.mubr.f32.gmra.mrb[0].mxu0 %v739
        %v862 = vpop.f32.mrb[0].mxu0
        %v863 = vadd.f32 0.0, %v862
        %v864 = vpop.f32.mrb[0].mxu0
        %865 = vmatprep.mubr.f32.mxu0 0.0
        %866 = vmatmul.mubr.f32.gmra.mrb[0].mxu0 %v742
        %v867 = vpop.f32.mrb[0].mxu0
        %v868 = vadd.f32 0.0, %v867
        %v869 = vpop.f32.mrb[0].mxu0
        %870 = vmatprep.mubr.f32.mxu0 0.0
        %871 = vmatmul.mubr.f32.gmra.mrb[0].mxu0 %v745
        %v872 = vpop.f32.mrb[0].mxu0
        %v873 = vadd.f32 0.0, %v872
        %v874 = vpop.f32.mrb[0].mxu0
        %875 = vmatprep.mubr.f32.mxu0 0.0
        %876 = vmatmul.mubr.f32.gmra.mrb[0].mxu0 %v748
        %v877 = vpop.f32.mrb[0].mxu0
        %v878 = vadd.f32 0.0, %v877
        %v879 = vpop.f32.mrb[0].mxu0
        %880 = vmatprep.mubr.f32.mxu0 0.0
        %881 = vmatmul.mubr.f32.gmra.mrb[0].mxu0 %v751
        %v882 = vpop.f32.mrb[0].mxu0
        %v883 = vadd.f32 0.0, %v882
        %v884 = vpop.f32.mrb[0].mxu0
        %885 = vmatprep.mubr.f32.mxu0 0.0
        %886 = vmatmul.mubr.f32.gmra.mrb[0].mxu0 %v754
        %v887 = vpop.f32.mrb[0].mxu0
        %v888 = vadd.f32 0.0, %v887
        %v889 = vpop.f32.mrb[0].mxu0
        %890 = vmatprep.mubr.f32.mxu0 0.0
        %891 = vmatmul.mubr.f32.gmra.mrb[0].mxu0 %v757
        %v892 = vpop.f32.mrb[0].mxu0
        %v893 = vadd.f32 0.0, %v892
        %v894 = vpop.f32.mrb[0].mxu0
        %895 = vmatprep.mubr.f32.mxu0 0.0
        %896 = vmatmul.mubr.f32.gmra.mrb[0].mxu0 %v760
        %v897 = vpop.f32.mrb[0].mxu0
        %v898 = vadd.f32 0.0, %v897
        %v899 = vpop.f32.mrb[0].mxu0
        %900 = vmatprep.mubr.f32.mxu0 0.0
        %901 = vmatmul.mubr.f32.gmra.mrb[0].mxu0 %v763
        %v902 = vpop.f32.mrb[0].mxu0
        %v903 = vadd.f32 0.0, %v902
        %v904 = vpop.f32.mrb[0].mxu0
        %905 = vmatprep.mubr.f32.mxu0 0.0
        %906 = vmatmul.mubr.f32.gmra.mrb[0].mxu0 %v766
        %v907 = vpop.f32.mrb[0].mxu0
        %v908 = vadd.f32 0.0, %v907
        %v909 = vpop.f32.mrb[0].mxu0
        %910 = vmatprep.mubr.f32.mxu0 0.0
        %911 = vmatmul.mubr.f32.gmra.mrb[0].mxu0 %v769
        %v912 = vpop.f32.mrb[0].mxu0
        %v913 = vadd.f32 0.0, %v912
        %v914 = vpop.f32.mrb[0].mxu0
        %915 = vmatprep.mubr.f32.mxu0 0.0
        %916 = vmatmul.mubr.f32.gmra.mrb[0].mxu0 %v772
        %v917 = vpop.f32.mrb[0].mxu0
        %v918 = vadd.f32 0.0, %v917
        %v919 = vpop.f32.mrb[0].mxu0
        %920 = vmatprep.mubr.f32.mxu0 0.0
        %921 = vmatmul.mubr.f32.gmra.mrb[0].mxu0 %v775
        %v922 = vpop.f32.mrb[0].mxu0
        %v923 = vadd.f32 0.0, %v922
        %v924 = vpop.f32.mrb[0].mxu0
        %925 = vdwg.mxu0
        %v926 = vld [vmem:[%s396] sm:$0xff]
        %v927 = vld [vmem:[%s396 + $0x8] sm:$0xff]
        %v928 = vld [vmem:[%s396 + $0x10] sm:$0xff]
        %v929 = vld [vmem:[%s396 + $0x18] sm:$0xff]
        %v930 = vld [vmem:[%s396 + $0x20] sm:$0xff]
        %v931 = vld [vmem:[%s396 + $0x28] sm:$0xff]
        %v932 = vld [vmem:[%s396 + $0x30] sm:$0xff]
        %v933 = vld [vmem:[%s396 + $0x38] sm:$0xff]
        %v934 = vld [vmem:[%s396 + $0x40] sm:$0xff]
        %v935 = vld [vmem:[%s396 + $0x48] sm:$0xff]
        %v936 = vld [vmem:[%s396 + $0x50] sm:$0xff]
        %v937 = vld [vmem:[%s396 + $0x58] sm:$0xff]
        %v938 = vld [vmem:[%s396 + $0x60] sm:$0xff]
        %v939 = vld [vmem:[%s396 + $0x68] sm:$0xff]
        %v940 = vld [vmem:[%s396 + $0x70] sm:$0xff]
        %v941 = vld [vmem:[%s396 + $0x78] sm:$0xff]
        %v942 = vlaneseq
        %v943 = vand.u32 %v942, 127
        %944 = vmax.xlane.f32.xlu0 %v695
        %v945 = vpop.xlane.xlu0 %944
        %946 = vmax.xlane.f32.xlu0 %v696
        %v947 = vpop.xlane.xlu0 %946
        %948 = vmax.xlane.f32.xlu0 %v697
        %v949 = vpop.xlane.xlu0 %948
        %950 = vmax.xlane.f32.xlu0 %v698
        %v951 = vpop.xlane.xlu0 %950
        %952 = vmax.xlane.f32.xlu0 %v699
        %v953 = vpop.xlane.xlu0 %952
        %954 = vmax.xlane.f32.xlu0 %v700
        %v955 = vpop.xlane.xlu0 %954
        %956 = vmax.xlane.f32.xlu0 %v701
        %v957 = vpop.xlane.xlu0 %956
        %958 = vmax.xlane.f32.xlu0 %v702
        %v959 = vpop.xlane.xlu0 %958
        %960 = vmax.xlane.f32.xlu0 %v703
        %v961 = vpop.xlane.xlu0 %960
        %962 = vmax.xlane.f32.xlu0 %v704
        %v963 = vpop.xlane.xlu0 %962
        %964 = vmax.xlane.f32.xlu0 %v705
        %v965 = vpop.xlane.xlu0 %964
        %966 = vmax.xlane.f32.xlu0 %v706
        %v967 = vpop.xlane.xlu0 %966
        %968 = vmax.xlane.f32.xlu0 %v707
        %v969 = vpop.xlane.xlu0 %968
        %970 = vmax.xlane.f32.xlu0 %v708
        %v971 = vpop.xlane.xlu0 %970
        %972 = vmax.xlane.f32.xlu0 %v709
        %v973 = vpop.xlane.xlu0 %972
        %974 = vmax.xlane.f32.xlu0 %v710
        %v975 = vpop.xlane.xlu0 %974
        %vm976 = vcmp.eq.f32.partialorder %v695, %v945
        %vm977 = vcmp.eq.f32.partialorder %v696, %v947
        %vm978 = vcmp.eq.f32.partialorder %v697, %v949
        %vm979 = vcmp.eq.f32.partialorder %v698, %v951
        %vm980 = vcmp.eq.f32.partialorder %v699, %v953
        %vm981 = vcmp.eq.f32.partialorder %v700, %v955
        %vm982 = vcmp.eq.f32.partialorder %v701, %v957
        %vm983 = vcmp.eq.f32.partialorder %v702, %v959
        %vm984 = vcmp.eq.f32.partialorder %v703, %v961
        %vm985 = vcmp.eq.f32.partialorder %v704, %v963
        %vm986 = vcmp.eq.f32.partialorder %v705, %v965
        %vm987 = vcmp.eq.f32.partialorder %v706, %v967
        %vm988 = vcmp.eq.f32.partialorder %v707, %v969
        %vm989 = vcmp.eq.f32.partialorder %v708, %v971
        %vm990 = vcmp.eq.f32.partialorder %v709, %v973
        %vm991 = vcmp.eq.f32.partialorder %v710, %v975
        %v992 = vsel %vm976, %v943, 128
        %v993 = vsel %vm977, %v943, 128
        %v994 = vsel %vm978, %v943, 128
        %v995 = vsel %vm979, %v943, 128
        %v996 = vsel %vm980, %v943, 128
        %v997 = vsel %vm981, %v943, 128
        %v998 = vsel %vm982, %v943, 128
        %v999 = vsel %vm983, %v943, 128
        %v1000 = vsel %vm984, %v943, 128
        %v1001 = vsel %vm985, %v943, 128
        %v1002 = vsel %vm986, %v943, 128
        %v1003 = vsel %vm987, %v943, 128
        %v1004 = vsel %vm988, %v943, 128
        %v1005 = vsel %vm989, %v943, 128
        %v1006 = vsel %vm990, %v943, 128
        %v1007 = vsel %vm991, %v943, 128
        %v1008 = vand.u32 %v992, 65535
        %v1009 = vshra.s32 %v992, 16
        %v1010 = vcvt.s32.f32 %v1008
        %v1011 = vcvt.s32.f32 %v1009
        %1012 = vmin.xlane.f32.xlu0 %v1011
        %v1013 = vpop.xlane.xlu0 %1012
        %vm1014 = vcmp.eq.f32.partialorder %v1011, %v1013
        %v1015 = vsel %vm1014, %v1010, inf
        %1016 = vmin.xlane.f32.xlu0 %v1015
        %v1017 = vpop.xlane.xlu0 %1016
        %v1018 = vcvt.f32.s32 %v1017
        %v1019 = vcvt.f32.s32 %v1013
        %v1020 = vshll.u32 %v1019, 16
        %v1021 = vadd.s32 %v1020, %v1018
        %v1022 = vand.u32 %v993, 65535
        %v1023 = vshra.s32 %v993, 16
        %v1024 = vcvt.s32.f32 %v1022
        %v1025 = vcvt.s32.f32 %v1023
        %1026 = vmin.xlane.f32.xlu0 %v1025
        %v1027 = vpop.xlane.xlu0 %1026
        %vm1028 = vcmp.eq.f32.partialorder %v1025, %v1027
        %v1029 = vsel %vm1028, %v1024, inf
        %1030 = vmin.xlane.f32.xlu0 %v1029
        %v1031 = vpop.xlane.xlu0 %1030
        %v1032 = vcvt.f32.s32 %v1031
        %v1033 = vcvt.f32.s32 %v1027
        %v1034 = vshll.u32 %v1033, 16
        %v1035 = vadd.s32 %v1034, %v1032
        %v1036 = vand.u32 %v994, 65535
        %v1037 = vshra.s32 %v994, 16
        %v1038 = vcvt.s32.f32 %v1036
        %v1039 = vcvt.s32.f32 %v1037
        %1040 = vmin.xlane.f32.xlu0 %v1039
        %v1041 = vpop.xlane.xlu0 %1040
        %vm1042 = vcmp.eq.f32.partialorder %v1039, %v1041
        %v1043 = vsel %vm1042, %v1038, inf
        %1044 = vmin.xlane.f32.xlu0 %v1043
        %v1045 = vpop.xlane.xlu0 %1044
        %v1046 = vcvt.f32.s32 %v1045
        %v1047 = vcvt.f32.s32 %v1041
        %v1048 = vshll.u32 %v1047, 16
        %v1049 = vadd.s32 %v1048, %v1046
        %v1050 = vand.u32 %v995, 65535
        %v1051 = vshra.s32 %v995, 16
        %v1052 = vcvt.s32.f32 %v1050
        %v1053 = vcvt.s32.f32 %v1051
        %1054 = vmin.xlane.f32.xlu0 %v1053
        %v1055 = vpop.xlane.xlu0 %1054
        %vm1056 = vcmp.eq.f32.partialorder %v1053, %v1055
        %v1057 = vsel %vm1056, %v1052, inf
        %1058 = vmin.xlane.f32.xlu0 %v1057
        %v1059 = vpop.xlane.xlu0 %1058
        %v1060 = vcvt.f32.s32 %v1059
        %v1061 = vcvt.f32.s32 %v1055
        %v1062 = vshll.u32 %v1061, 16
        %v1063 = vadd.s32 %v1062, %v1060
        %v1064 = vand.u32 %v996, 65535
        %v1065 = vshra.s32 %v996, 16
        %v1066 = vcvt.s32.f32 %v1064
        %v1067 = vcvt.s32.f32 %v1065
        %1068 = vmin.xlane.f32.xlu0 %v1067
        %v1069 = vpop.xlane.xlu0 %1068
        %vm1070 = vcmp.eq.f32.partialorder %v1067, %v1069
        %v1071 = vsel %vm1070, %v1066, inf
        %1072 = vmin.xlane.f32.xlu0 %v1071
        %v1073 = vpop.xlane.xlu0 %1072
        %v1074 = vcvt.f32.s32 %v1073
        %v1075 = vcvt.f32.s32 %v1069
        %v1076 = vshll.u32 %v1075, 16
        %v1077 = vadd.s32 %v1076, %v1074
        %v1078 = vand.u32 %v997, 65535
        %v1079 = vshra.s32 %v997, 16
        %v1080 = vcvt.s32.f32 %v1078
        %v1081 = vcvt.s32.f32 %v1079
        %1082 = vmin.xlane.f32.xlu0 %v1081
        %v1083 = vpop.xlane.xlu0 %1082
        %vm1084 = vcmp.eq.f32.partialorder %v1081, %v1083
        %v1085 = vsel %vm1084, %v1080, inf
        %1086 = vmin.xlane.f32.xlu0 %v1085
        %v1087 = vpop.xlane.xlu0 %1086
        %v1088 = vcvt.f32.s32 %v1087
        %v1089 = vcvt.f32.s32 %v1083
        %v1090 = vshll.u32 %v1089, 16
        %v1091 = vadd.s32 %v1090, %v1088
        %v1092 = vand.u32 %v998, 65535
        %v1093 = vshra.s32 %v998, 16
        %v1094 = vcvt.s32.f32 %v1092
        %v1095 = vcvt.s32.f32 %v1093
        %1096 = vmin.xlane.f32.xlu0 %v1095
        %v1097 = vpop.xlane.xlu0 %1096
        %vm1098 = vcmp.eq.f32.partialorder %v1095, %v1097
        %v1099 = vsel %vm1098, %v1094, inf
        %1100 = vmin.xlane.f32.xlu0 %v1099
        %v1101 = vpop.xlane.xlu0 %1100
        %v1102 = vcvt.f32.s32 %v1101
        %v1103 = vcvt.f32.s32 %v1097
        %v1104 = vshll.u32 %v1103, 16
        %v1105 = vadd.s32 %v1104, %v1102
        %v1106 = vand.u32 %v999, 65535
        %v1107 = vshra.s32 %v999, 16
        %v1108 = vcvt.s32.f32 %v1106
        %v1109 = vcvt.s32.f32 %v1107
        %1110 = vmin.xlane.f32.xlu0 %v1109
        %v1111 = vpop.xlane.xlu0 %1110
        %vm1112 = vcmp.eq.f32.partialorder %v1109, %v1111
        %v1113 = vsel %vm1112, %v1108, inf
        %1114 = vmin.xlane.f32.xlu0 %v1113
        %v1115 = vpop.xlane.xlu0 %1114
        %v1116 = vcvt.f32.s32 %v1115
        %v1117 = vcvt.f32.s32 %v1111
        %v1118 = vshll.u32 %v1117, 16
        %v1119 = vadd.s32 %v1118, %v1116
        %v1120 = vand.u32 %v1000, 65535
        %v1121 = vshra.s32 %v1000, 16
        %v1122 = vcvt.s32.f32 %v1120
        %v1123 = vcvt.s32.f32 %v1121
        %1124 = vmin.xlane.f32.xlu0 %v1123
        %v1125 = vpop.xlane.xlu0 %1124
        %vm1126 = vcmp.eq.f32.partialorder %v1123, %v1125
        %v1127 = vsel %vm1126, %v1122, inf
        %1128 = vmin.xlane.f32.xlu0 %v1127
        %v1129 = vpop.xlane.xlu0 %1128
        %v1130 = vcvt.f32.s32 %v1129
        %v1131 = vcvt.f32.s32 %v1125
        %v1132 = vshll.u32 %v1131, 16
        %v1133 = vadd.s32 %v1132, %v1130
        %v1134 = vand.u32 %v1001, 65535
        %v1135 = vshra.s32 %v1001, 16
        %v1136 = vcvt.s32.f32 %v1134
        %v1137 = vcvt.s32.f32 %v1135
        %1138 = vmin.xlane.f32.xlu0 %v1137
        %v1139 = vpop.xlane.xlu0 %1138
        %vm1140 = vcmp.eq.f32.partialorder %v1137, %v1139
        %v1141 = vsel %vm1140, %v1136, inf
        %1142 = vmin.xlane.f32.xlu0 %v1141
        %v1143 = vpop.xlane.xlu0 %1142
        %v1144 = vcvt.f32.s32 %v1143
        %v1145 = vcvt.f32.s32 %v1139
        %v1146 = vshll.u32 %v1145, 16
        %v1147 = vadd.s32 %v1146, %v1144
        %v1148 = vand.u32 %v1002, 65535
        %v1149 = vshra.s32 %v1002, 16
        %v1150 = vcvt.s32.f32 %v1148
        %v1151 = vcvt.s32.f32 %v1149
        %1152 = vmin.xlane.f32.xlu0 %v1151
        %v1153 = vpop.xlane.xlu0 %1152
        %vm1154 = vcmp.eq.f32.partialorder %v1151, %v1153
        %v1155 = vsel %vm1154, %v1150, inf
        %1156 = vmin.xlane.f32.xlu0 %v1155
        %v1157 = vpop.xlane.xlu0 %1156
        %v1158 = vcvt.f32.s32 %v1157
        %v1159 = vcvt.f32.s32 %v1153
        %v1160 = vshll.u32 %v1159, 16
        %v1161 = vadd.s32 %v1160, %v1158
        %v1162 = vand.u32 %v1003, 65535
        %v1163 = vshra.s32 %v1003, 16
        %v1164 = vcvt.s32.f32 %v1162
        %v1165 = vcvt.s32.f32 %v1163
        %1166 = vmin.xlane.f32.xlu0 %v1165
        %v1167 = vpop.xlane.xlu0 %1166
        %vm1168 = vcmp.eq.f32.partialorder %v1165, %v1167
        %v1169 = vsel %vm1168, %v1164, inf
        %1170 = vmin.xlane.f32.xlu0 %v1169
        %v1171 = vpop.xlane.xlu0 %1170
        %v1172 = vcvt.f32.s32 %v1171
        %v1173 = vcvt.f32.s32 %v1167
        %v1174 = vshll.u32 %v1173, 16
        %v1175 = vadd.s32 %v1174, %v1172
        %v1176 = vand.u32 %v1004, 65535
        %v1177 = vshra.s32 %v1004, 16
        %v1178 = vcvt.s32.f32 %v1176
        %v1179 = vcvt.s32.f32 %v1177
        %1180 = vmin.xlane.f32.xlu0 %v1179
        %v1181 = vpop.xlane.xlu0 %1180
        %vm1182 = vcmp.eq.f32.partialorder %v1179, %v1181
        %v1183 = vsel %vm1182, %v1178, inf
        %1184 = vmin.xlane.f32.xlu0 %v1183
        %v1185 = vpop.xlane.xlu0 %1184
        %v1186 = vcvt.f32.s32 %v1185
        %v1187 = vcvt.f32.s32 %v1181
        %v1188 = vshll.u32 %v1187, 16
        %v1189 = vadd.s32 %v1188, %v1186
        %v1190 = vand.u32 %v1005, 65535
        %v1191 = vshra.s32 %v1005, 16
        %v1192 = vcvt.s32.f32 %v1190
        %v1193 = vcvt.s32.f32 %v1191
        %1194 = vmin.xlane.f32.xlu0 %v1193
        %v1195 = vpop.xlane.xlu0 %1194
        %vm1196 = vcmp.eq.f32.partialorder %v1193, %v1195
        %v1197 = vsel %vm1196, %v1192, inf
        %1198 = vmin.xlane.f32.xlu0 %v1197
        %v1199 = vpop.xlane.xlu0 %1198
        %v1200 = vcvt.f32.s32 %v1199
        %v1201 = vcvt.f32.s32 %v1195
        %v1202 = vshll.u32 %v1201, 16
        %v1203 = vadd.s32 %v1202, %v1200
        %v1204 = vand.u32 %v1006, 65535
        %v1205 = vshra.s32 %v1006, 16
        %v1206 = vcvt.s32.f32 %v1204
        %v1207 = vcvt.s32.f32 %v1205
        %1208 = vmin.xlane.f32.xlu0 %v1207
        %v1209 = vpop.xlane.xlu0 %1208
        %vm1210 = vcmp.eq.f32.partialorder %v1207, %v1209
        %v1211 = vsel %vm1210, %v1206, inf
        %1212 = vmin.xlane.f32.xlu0 %v1211
        %v1213 = vpop.xlane.xlu0 %1212
        %v1214 = vcvt.f32.s32 %v1213
        %v1215 = vcvt.f32.s32 %v1209
        %v1216 = vshll.u32 %v1215, 16
        %v1217 = vadd.s32 %v1216, %v1214
        %v1218 = vand.u32 %v1007, 65535
        %v1219 = vshra.s32 %v1007, 16
        %v1220 = vcvt.s32.f32 %v1218
        %v1221 = vcvt.s32.f32 %v1219
        %1222 = vmin.xlane.f32.xlu0 %v1221
        %v1223 = vpop.xlane.xlu0 %1222
        %vm1224 = vcmp.eq.f32.partialorder %v1221, %v1223
        %v1225 = vsel %vm1224, %v1220, inf
        %1226 = vmin.xlane.f32.xlu0 %v1225
        %v1227 = vpop.xlane.xlu0 %1226
        %v1228 = vcvt.f32.s32 %v1227
        %v1229 = vcvt.f32.s32 %v1223
        %v1230 = vshll.u32 %v1229, 16
        %v1231 = vadd.s32 %v1230, %v1228
        %vm1232 = vcmp.eq.s32.totalorder %v943, %v1021
        %vm1233 = vcmp.eq.s32.totalorder %v943, %v1035
        %vm1234 = vcmp.eq.s32.totalorder %v943, %v1049
        %vm1235 = vcmp.eq.s32.totalorder %v943, %v1063
        %vm1236 = vcmp.eq.s32.totalorder %v943, %v1077
        %vm1237 = vcmp.eq.s32.totalorder %v943, %v1091
        %vm1238 = vcmp.eq.s32.totalorder %v943, %v1105
        %vm1239 = vcmp.eq.s32.totalorder %v943, %v1119
        %vm1240 = vcmp.eq.s32.totalorder %v943, %v1133
        %vm1241 = vcmp.eq.s32.totalorder %v943, %v1147
        %vm1242 = vcmp.eq.s32.totalorder %v943, %v1161
        %vm1243 = vcmp.eq.s32.totalorder %v943, %v1175
        %vm1244 = vcmp.eq.s32.totalorder %v943, %v1189
        %vm1245 = vcmp.eq.s32.totalorder %v943, %v1203
        %vm1246 = vcmp.eq.s32.totalorder %v943, %v1217
        %vm1247 = vcmp.eq.s32.totalorder %v943, %v1231
        %v1248 = vsel %vm1232, 1.0, 0.0
        %v1249 = vsel %vm1233, 1.0, 0.0
        %v1250 = vsel %vm1234, 1.0, 0.0
        %v1251 = vsel %vm1235, 1.0, 0.0
        %v1252 = vsel %vm1236, 1.0, 0.0
        %v1253 = vsel %vm1237, 1.0, 0.0
        %v1254 = vsel %vm1238, 1.0, 0.0
        %v1255 = vsel %vm1239, 1.0, 0.0
        %v1256 = vsel %vm1240, 1.0, 0.0
        %v1257 = vsel %vm1241, 1.0, 0.0
        %v1258 = vsel %vm1242, 1.0, 0.0
        %v1259 = vsel %vm1243, 1.0, 0.0
        %v1260 = vsel %vm1244, 1.0, 0.0
        %v1261 = vsel %vm1245, 1.0, 0.0
        %v1262 = vsel %vm1246, 1.0, 0.0
        %v1263 = vsel %vm1247, 1.0, 0.0
        %1264 = vmatprep.subr.mxu0 0.0
        %1265 = vmatpush1.msra.mxu0 %v926
        %1266 = vmatprep.subr.mxu0 0.0
        %1267 = vmatpush1.msra.mxu0 %v927
        %1268 = vmatprep.subr.mxu0 0.0
        %1269 = vmatpush1.msra.mxu0 %v928
        %1270 = vmatprep.subr.mxu0 0.0
        %1271 = vmatpush1.msra.mxu0 %v929
        %1272 = vmatprep.subr.mxu0 0.0
        %1273 = vmatpush1.msra.mxu0 %v930
        %1274 = vmatprep.subr.mxu0 0.0
        %1275 = vmatpush1.msra.mxu0 %v931
        %1276 = vmatprep.subr.mxu0 0.0
        %1277 = vmatpush1.msra.mxu0 %v932
        %1278 = vmatprep.subr.mxu0 0.0
        %1279 = vmatpush1.msra.mxu0 %v933
        %1280 = vmatprep.subr.mxu0 0.0
        %1281 = vmatpush1.msra.mxu0 %v934
        %1282 = vmatprep.subr.mxu0 0.0
        %1283 = vmatpush1.msra.mxu0 %v935
        %1284 = vmatprep.subr.mxu0 0.0
        %1285 = vmatpush1.msra.mxu0 %v936
        %1286 = vmatprep.subr.mxu0 0.0
        %1287 = vmatpush1.msra.mxu0 %v937
        %1288 = vmatprep.subr.mxu0 0.0
        %1289 = vmatpush1.msra.mxu0 %v938
        %1290 = vmatprep.subr.mxu0 0.0
        %1291 = vmatpush1.msra.mxu0 %v939
        %1292 = vmatprep.subr.mxu0 0.0
        %1293 = vmatpush1.msra.mxu0 %v940
        %1294 = vmatprep.subr.mxu0 0.0
        %1295 = vmatpush1.msra.mxu0 %v941
        %1296 = vmatprep.subr.mxu0 0.0
        %1297 = vmatpush1.msra.mxu0 0.0
        %1298 = vmatprep.subr.mxu0 0.0
        %1299 = vmatpush1.msra.mxu0 0.0
        %1300 = vmatprep.subr.mxu0 0.0
        %1301 = vmatpush1.msra.mxu0 0.0
        %1302 = vmatprep.subr.mxu0 0.0
        %1303 = vmatpush1.msra.mxu0 0.0
        %1304 = vmatprep.subr.mxu0 0.0
        %1305 = vmatpush1.msra.mxu0 0.0
        %1306 = vmatprep.subr.mxu0 0.0
        %1307 = vmatpush1.msra.mxu0 0.0
        %1308 = vmatprep.subr.mxu0 0.0
        %1309 = vmatpush1.msra.mxu0 0.0
        %1310 = vmatprep.subr.mxu0 0.0
        %1311 = vmatpush1.msra.mxu0 0.0
        %1312 = vmatprep.subr.mxu0 0.0
        %1313 = vmatpush1.msra.mxu0 0.0
        %1314 = vmatprep.subr.mxu0 0.0
        %1315 = vmatpush1.msra.mxu0 0.0
        %1316 = vmatprep.subr.mxu0 0.0
        %1317 = vmatpush1.msra.mxu0 0.0
        %1318 = vmatprep.subr.mxu0 0.0
        %1319 = vmatpush1.msra.mxu0 0.0
        %1320 = vmatprep.subr.mxu0 0.0
        %1321 = vmatpush1.msra.mxu0 0.0
        %1322 = vmatprep.subr.mxu0 0.0
        %1323 = vmatpush1.msra.mxu0 0.0
        %1324 = vmatprep.subr.mxu0 0.0
        %1325 = vmatpush1.msra.mxu0 0.0
        %1326 = vmatprep.subr.mxu0 0.0
        %1327 = vmatpush1.msra.mxu0 0.0
        %1328 = vmatprep.mubr.f32.mxu0 0.0
        %1329 = vmatmul.mubr.f32.gmra.mrb[0].mxu0 %v1248
        %v1330 = vpop.f32.mrb[0].mxu0
        %v1331 = vadd.f32 0.0, %v1330
        %v1332 = vpop.f32.mrb[0].mxu0
        %1333 = vmatprep.mubr.f32.mxu0 0.0
        %1334 = vmatmul.mubr.f32.gmra.mrb[0].mxu0 %v1249
        %v1335 = vpop.f32.mrb[0].mxu0
        %v1336 = vadd.f32 0.0, %v1335
        %v1337 = vpop.f32.mrb[0].mxu0
        %1338 = vmatprep.mubr.f32.mxu0 0.0
        %1339 = vmatmul.mubr.f32.gmra.mrb[0].mxu0 %v1250
        %v1340 = vpop.f32.mrb[0].mxu0
        %v1341 = vadd.f32 0.0, %v1340
        %v1342 = vpop.f32.mrb[0].mxu0
        %1343 = vmatprep.mubr.f32.mxu0 0.0
        %1344 = vmatmul.mubr.f32.gmra.mrb[0].mxu0 %v1251
        %v1345 = vpop.f32.mrb[0].mxu0
        %v1346 = vadd.f32 0.0, %v1345
        %v1347 = vpop.f32.mrb[0].mxu0
        %1348 = vmatprep.mubr.f32.mxu0 0.0
        %1349 = vmatmul.mubr.f32.gmra.mrb[0].mxu0 %v1252
        %v1350 = vpop.f32.mrb[0].mxu0
        %v1351 = vadd.f32 0.0, %v1350
        %v1352 = vpop.f32.mrb[0].mxu0
        %1353 = vmatprep.mubr.f32.mxu0 0.0
        %1354 = vmatmul.mubr.f32.gmra.mrb[0].mxu0 %v1253
        %v1355 = vpop.f32.mrb[0].mxu0
        %v1356 = vadd.f32 0.0, %v1355
        %v1357 = vpop.f32.mrb[0].mxu0
        %1358 = vmatprep.mubr.f32.mxu0 0.0
        %1359 = vmatmul.mubr.f32.gmra.mrb[0].mxu0 %v1254
        %v1360 = vpop.f32.mrb[0].mxu0
        %v1361 = vadd.f32 0.0, %v1360
        %v1362 = vpop.f32.mrb[0].mxu0
        %1363 = vmatprep.mubr.f32.mxu0 0.0
        %1364 = vmatmul.mubr.f32.gmra.mrb[0].mxu0 %v1255
        %v1365 = vpop.f32.mrb[0].mxu0
        %v1366 = vadd.f32 0.0, %v1365
        %v1367 = vpop.f32.mrb[0].mxu0
        %1368 = vmatprep.mubr.f32.mxu0 0.0
        %1369 = vmatmul.mubr.f32.gmra.mrb[0].mxu0 %v1256
        %v1370 = vpop.f32.mrb[0].mxu0
        %v1371 = vadd.f32 0.0, %v1370
        %v1372 = vpop.f32.mrb[0].mxu0
        %1373 = vmatprep.mubr.f32.mxu0 0.0
        %1374 = vmatmul.mubr.f32.gmra.mrb[0].mxu0 %v1257
        %v1375 = vpop.f32.mrb[0].mxu0
        %v1376 = vadd.f32 0.0, %v1375
        %v1377 = vpop.f32.mrb[0].mxu0
        %1378 = vmatprep.mubr.f32.mxu0 0.0
        %1379 = vmatmul.mubr.f32.gmra.mrb[0].mxu0 %v1258
        %v1380 = vpop.f32.mrb[0].mxu0
        %v1381 = vadd.f32 0.0, %v1380
        %v1382 = vpop.f32.mrb[0].mxu0
        %1383 = vmatprep.mubr.f32.mxu0 0.0
        %1384 = vmatmul.mubr.f32.gmra.mrb[0].mxu0 %v1259
        %v1385 = vpop.f32.mrb[0].mxu0
        %v1386 = vadd.f32 0.0, %v1385
        %v1387 = vpop.f32.mrb[0].mxu0
        %1388 = vmatprep.mubr.f32.mxu0 0.0
        %1389 = vmatmul.mubr.f32.gmra.mrb[0].mxu0 %v1260
        %v1390 = vpop.f32.mrb[0].mxu0
        %v1391 = vadd.f32 0.0, %v1390
        %v1392 = vpop.f32.mrb[0].mxu0
        %1393 = vmatprep.mubr.f32.mxu0 0.0
        %1394 = vmatmul.mubr.f32.gmra.mrb[0].mxu0 %v1261
        %v1395 = vpop.f32.mrb[0].mxu0
        %v1396 = vadd.f32 0.0, %v1395
        %v1397 = vpop.f32.mrb[0].mxu0
        %1398 = vmatprep.mubr.f32.mxu0 0.0
        %1399 = vmatmul.mubr.f32.gmra.mrb[0].mxu0 %v1262
        %v1400 = vpop.f32.mrb[0].mxu0
        %v1401 = vadd.f32 0.0, %v1400
        %v1402 = vpop.f32.mrb[0].mxu0
        %1403 = vmatprep.mubr.f32.mxu0 0.0
        %1404 = vmatmul.mubr.f32.gmra.mrb[0].mxu0 %v1263
        %v1405 = vpop.f32.mrb[0].mxu0
        %v1406 = vadd.f32 0.0, %v1405
        %v1407 = vpop.f32.mrb[0].mxu0
        %1408 = vdwg.mxu0
        %v1409 = vsel %vm1232, -inf, %v695
        %v1410 = vsel %vm1233, -inf, %v696
        %v1411 = vsel %vm1234, -inf, %v697
        %v1412 = vsel %vm1235, -inf, %v698
        %v1413 = vsel %vm1236, -inf, %v699
        %v1414 = vsel %vm1237, -inf, %v700
        %v1415 = vsel %vm1238, -inf, %v701
        %v1416 = vsel %vm1239, -inf, %v702
        %v1417 = vsel %vm1240, -inf, %v703
        %v1418 = vsel %vm1241, -inf, %v704
        %v1419 = vsel %vm1242, -inf, %v705
        %v1420 = vsel %vm1243, -inf, %v706
        %v1421 = vsel %vm1244, -inf, %v707
        %v1422 = vsel %vm1245, -inf, %v708
        %v1423 = vsel %vm1246, -inf, %v709
        %v1424 = vsel %vm1247, -inf, %v710
        %1425 = vmax.xlane.f32.xlu0 %v1409
        %v1426 = vpop.xlane.xlu0 %1425
        %1427 = vmax.xlane.f32.xlu0 %v1410
        %v1428 = vpop.xlane.xlu0 %1427
        %1429 = vmax.xlane.f32.xlu0 %v1411
        %v1430 = vpop.xlane.xlu0 %1429
        %1431 = vmax.xlane.f32.xlu0 %v1412
        %v1432 = vpop.xlane.xlu0 %1431
        %1433 = vmax.xlane.f32.xlu0 %v1413
        %v1434 = vpop.xlane.xlu0 %1433
        %1435 = vmax.xlane.f32.xlu0 %v1414
        %v1436 = vpop.xlane.xlu0 %1435
        %1437 = vmax.xlane.f32.xlu0 %v1415
        %v1438 = vpop.xlane.xlu0 %1437
        %1439 = vmax.xlane.f32.xlu0 %v1416
        %v1440 = vpop.xlane.xlu0 %1439
        %1441 = vmax.xlane.f32.xlu0 %v1417
        %v1442 = vpop.xlane.xlu0 %1441
        %1443 = vmax.xlane.f32.xlu0 %v1418
        %v1444 = vpop.xlane.xlu0 %1443
        %1445 = vmax.xlane.f32.xlu0 %v1419
        %v1446 = vpop.xlane.xlu0 %1445
        %1447 = vmax.xlane.f32.xlu0 %v1420
        %v1448 = vpop.xlane.xlu0 %1447
        %1449 = vmax.xlane.f32.xlu0 %v1421
        %v1450 = vpop.xlane.xlu0 %1449
        %1451 = vmax.xlane.f32.xlu0 %v1422
        %v1452 = vpop.xlane.xlu0 %1451
        %1453 = vmax.xlane.f32.xlu0 %v1423
        %v1454 = vpop.xlane.xlu0 %1453
        %1455 = vmax.xlane.f32.xlu0 %v1424
        %v1456 = vpop.xlane.xlu0 %1455
        %vm1457 = vcmp.eq.f32.partialorder %v1409, %v1426
        %vm1458 = vcmp.eq.f32.partialorder %v1410, %v1428
        %vm1459 = vcmp.eq.f32.partialorder %v1411, %v1430
        %vm1460 = vcmp.eq.f32.partialorder %v1412, %v1432
        %vm1461 = vcmp.eq.f32.partialorder %v1413, %v1434
        %vm1462 = vcmp.eq.f32.partialorder %v1414, %v1436
        %vm1463 = vcmp.eq.f32.partialorder %v1415, %v1438
        %vm1464 = vcmp.eq.f32.partialorder %v1416, %v1440
        %vm1465 = vcmp.eq.f32.partialorder %v1417, %v1442
        %vm1466 = vcmp.eq.f32.partialorder %v1418, %v1444
        %vm1467 = vcmp.eq.f32.partialorder %v1419, %v1446
        %vm1468 = vcmp.eq.f32.partialorder %v1420, %v1448
        %vm1469 = vcmp.eq.f32.partialorder %v1421, %v1450
        %vm1470 = vcmp.eq.f32.partialorder %v1422, %v1452
        %vm1471 = vcmp.eq.f32.partialorder %v1423, %v1454
        %vm1472 = vcmp.eq.f32.partialorder %v1424, %v1456
        %v1473 = vsel %vm1457, %v943, 128
        %v1474 = vsel %vm1458, %v943, 128
        %v1475 = vsel %vm1459, %v943, 128
        %v1476 = vsel %vm1460, %v943, 128
        %v1477 = vsel %vm1461, %v943, 128
        %v1478 = vsel %vm1462, %v943, 128
        %v1479 = vsel %vm1463, %v943, 128
        %v1480 = vsel %vm1464, %v943, 128
        %v1481 = vsel %vm1465, %v943, 128
        %v1482 = vsel %vm1466, %v943, 128
        %v1483 = vsel %vm1467, %v943, 128
        %v1484 = vsel %vm1468, %v943, 128
        %v1485 = vsel %vm1469, %v943, 128
        %v1486 = vsel %vm1470, %v943, 128
        %v1487 = vsel %vm1471, %v943, 128
        %v1488 = vsel %vm1472, %v943, 128
        %v1489 = vand.u32 %v1473, 65535
        %v1490 = vshra.s32 %v1473, 16
        %v1491 = vcvt.s32.f32 %v1489
        %v1492 = vcvt.s32.f32 %v1490
        %1493 = vmin.xlane.f32.xlu0 %v1492
        %v1494 = vpop.xlane.xlu0 %1493
        %vm1495 = vcmp.eq.f32.partialorder %v1492, %v1494
        %v1496 = vsel %vm1495, %v1491, inf
        %1497 = vmin.xlane.f32.xlu0 %v1496
        %v1498 = vpop.xlane.xlu0 %1497
        %v1499 = vcvt.f32.s32 %v1498
        %v1500 = vcvt.f32.s32 %v1494
        %v1501 = vshll.u32 %v1500, 16
        %v1502 = vadd.s32 %v1501, %v1499
        %v1503 = vand.u32 %v1474, 65535
        %v1504 = vshra.s32 %v1474, 16
        %v1505 = vcvt.s32.f32 %v1503
        %v1506 = vcvt.s32.f32 %v1504
        %1507 = vmin.xlane.f32.xlu0 %v1506
        %v1508 = vpop.xlane.xlu0 %1507
        %vm1509 = vcmp.eq.f32.partialorder %v1506, %v1508
        %v1510 = vsel %vm1509, %v1505, inf
        %1511 = vmin.xlane.f32.xlu0 %v1510
        %v1512 = vpop.xlane.xlu0 %1511
        %v1513 = vcvt.f32.s32 %v1512
        %v1514 = vcvt.f32.s32 %v1508
        %v1515 = vshll.u32 %v1514, 16
        %v1516 = vadd.s32 %v1515, %v1513
        %v1517 = vand.u32 %v1475, 65535
        %v1518 = vshra.s32 %v1475, 16
        %v1519 = vcvt.s32.f32 %v1517
        %v1520 = vcvt.s32.f32 %v1518
        %1521 = vmin.xlane.f32.xlu0 %v1520
        %v1522 = vpop.xlane.xlu0 %1521
        %vm1523 = vcmp.eq.f32.partialorder %v1520, %v1522
        %v1524 = vsel %vm1523, %v1519, inf
        %1525 = vmin.xlane.f32.xlu0 %v1524
        %v1526 = vpop.xlane.xlu0 %1525
        %v1527 = vcvt.f32.s32 %v1526
        %v1528 = vcvt.f32.s32 %v1522
        %v1529 = vshll.u32 %v1528, 16
        %v1530 = vadd.s32 %v1529, %v1527
        %v1531 = vand.u32 %v1476, 65535
        %v1532 = vshra.s32 %v1476, 16
        %v1533 = vcvt.s32.f32 %v1531
        %v1534 = vcvt.s32.f32 %v1532
        %1535 = vmin.xlane.f32.xlu0 %v1534
        %v1536 = vpop.xlane.xlu0 %1535
        %vm1537 = vcmp.eq.f32.partialorder %v1534, %v1536
        %v1538 = vsel %vm1537, %v1533, inf
        %1539 = vmin.xlane.f32.xlu0 %v1538
        %v1540 = vpop.xlane.xlu0 %1539
        %v1541 = vcvt.f32.s32 %v1540
        %v1542 = vcvt.f32.s32 %v1536
        %v1543 = vshll.u32 %v1542, 16
        %v1544 = vadd.s32 %v1543, %v1541
        %v1545 = vand.u32 %v1477, 65535
        %v1546 = vshra.s32 %v1477, 16
        %v1547 = vcvt.s32.f32 %v1545
        %v1548 = vcvt.s32.f32 %v1546
        %1549 = vmin.xlane.f32.xlu0 %v1548
        %v1550 = vpop.xlane.xlu0 %1549
        %vm1551 = vcmp.eq.f32.partialorder %v1548, %v1550
        %v1552 = vsel %vm1551, %v1547, inf
        %1553 = vmin.xlane.f32.xlu0 %v1552
        %v1554 = vpop.xlane.xlu0 %1553
        %v1555 = vcvt.f32.s32 %v1554
        %v1556 = vcvt.f32.s32 %v1550
        %v1557 = vshll.u32 %v1556, 16
        %v1558 = vadd.s32 %v1557, %v1555
        %v1559 = vand.u32 %v1478, 65535
        %v1560 = vshra.s32 %v1478, 16
        %v1561 = vcvt.s32.f32 %v1559
        %v1562 = vcvt.s32.f32 %v1560
        %1563 = vmin.xlane.f32.xlu0 %v1562
        %v1564 = vpop.xlane.xlu0 %1563
        %vm1565 = vcmp.eq.f32.partialorder %v1562, %v1564
        %v1566 = vsel %vm1565, %v1561, inf
        %1567 = vmin.xlane.f32.xlu0 %v1566
        %v1568 = vpop.xlane.xlu0 %1567
        %v1569 = vcvt.f32.s32 %v1568
        %v1570 = vcvt.f32.s32 %v1564
        %v1571 = vshll.u32 %v1570, 16
        %v1572 = vadd.s32 %v1571, %v1569
        %v1573 = vand.u32 %v1479, 65535
        %v1574 = vshra.s32 %v1479, 16
        %v1575 = vcvt.s32.f32 %v1573
        %v1576 = vcvt.s32.f32 %v1574
        %1577 = vmin.xlane.f32.xlu0 %v1576
        %v1578 = vpop.xlane.xlu0 %1577
        %vm1579 = vcmp.eq.f32.partialorder %v1576, %v1578
        %v1580 = vsel %vm1579, %v1575, inf
        %1581 = vmin.xlane.f32.xlu0 %v1580
        %v1582 = vpop.xlane.xlu0 %1581
        %v1583 = vcvt.f32.s32 %v1582
        %v1584 = vcvt.f32.s32 %v1578
        %v1585 = vshll.u32 %v1584, 16
        %v1586 = vadd.s32 %v1585, %v1583
        %v1587 = vand.u32 %v1480, 65535
        %v1588 = vshra.s32 %v1480, 16
        %v1589 = vcvt.s32.f32 %v1587
        %v1590 = vcvt.s32.f32 %v1588
        %1591 = vmin.xlane.f32.xlu0 %v1590
        %v1592 = vpop.xlane.xlu0 %1591
        %vm1593 = vcmp.eq.f32.partialorder %v1590, %v1592
        %v1594 = vsel %vm1593, %v1589, inf
        %1595 = vmin.xlane.f32.xlu0 %v1594
        %v1596 = vpop.xlane.xlu0 %1595
        %v1597 = vcvt.f32.s32 %v1596
        %v1598 = vcvt.f32.s32 %v1592
        %v1599 = vshll.u32 %v1598, 16
        %v1600 = vadd.s32 %v1599, %v1597
        %v1601 = vand.u32 %v1481, 65535
        %v1602 = vshra.s32 %v1481, 16
        %v1603 = vcvt.s32.f32 %v1601
        %v1604 = vcvt.s32.f32 %v1602
        %1605 = vmin.xlane.f32.xlu0 %v1604
        %v1606 = vpop.xlane.xlu0 %1605
        %vm1607 = vcmp.eq.f32.partialorder %v1604, %v1606
        %v1608 = vsel %vm1607, %v1603, inf
        %1609 = vmin.xlane.f32.xlu0 %v1608
        %v1610 = vpop.xlane.xlu0 %1609
        %v1611 = vcvt.f32.s32 %v1610
        %v1612 = vcvt.f32.s32 %v1606
        %v1613 = vshll.u32 %v1612, 16
        %v1614 = vadd.s32 %v1613, %v1611
        %v1615 = vand.u32 %v1482, 65535
        %v1616 = vshra.s32 %v1482, 16
        %v1617 = vcvt.s32.f32 %v1615
        %v1618 = vcvt.s32.f32 %v1616
        %1619 = vmin.xlane.f32.xlu0 %v1618
        %v1620 = vpop.xlane.xlu0 %1619
        %vm1621 = vcmp.eq.f32.partialorder %v1618, %v1620
        %v1622 = vsel %vm1621, %v1617, inf
        %1623 = vmin.xlane.f32.xlu0 %v1622
        %v1624 = vpop.xlane.xlu0 %1623
        %v1625 = vcvt.f32.s32 %v1624
        %v1626 = vcvt.f32.s32 %v1620
        %v1627 = vshll.u32 %v1626, 16
        %v1628 = vadd.s32 %v1627, %v1625
        %v1629 = vand.u32 %v1483, 65535
        %v1630 = vshra.s32 %v1483, 16
        %v1631 = vcvt.s32.f32 %v1629
        %v1632 = vcvt.s32.f32 %v1630
        %1633 = vmin.xlane.f32.xlu0 %v1632
        %v1634 = vpop.xlane.xlu0 %1633
        %vm1635 = vcmp.eq.f32.partialorder %v1632, %v1634
        %v1636 = vsel %vm1635, %v1631, inf
        %1637 = vmin.xlane.f32.xlu0 %v1636
        %v1638 = vpop.xlane.xlu0 %1637
        %v1639 = vcvt.f32.s32 %v1638
        %v1640 = vcvt.f32.s32 %v1634
        %v1641 = vshll.u32 %v1640, 16
        %v1642 = vadd.s32 %v1641, %v1639
        %v1643 = vand.u32 %v1484, 65535
        %v1644 = vshra.s32 %v1484, 16
        %v1645 = vcvt.s32.f32 %v1643
        %v1646 = vcvt.s32.f32 %v1644
        %1647 = vmin.xlane.f32.xlu0 %v1646
        %v1648 = vpop.xlane.xlu0 %1647
        %vm1649 = vcmp.eq.f32.partialorder %v1646, %v1648
        %v1650 = vsel %vm1649, %v1645, inf
        %1651 = vmin.xlane.f32.xlu0 %v1650
        %v1652 = vpop.xlane.xlu0 %1651
        %v1653 = vcvt.f32.s32 %v1652
        %v1654 = vcvt.f32.s32 %v1648
        %v1655 = vshll.u32 %v1654, 16
        %v1656 = vadd.s32 %v1655, %v1653
        %v1657 = vand.u32 %v1485, 65535
        %v1658 = vshra.s32 %v1485, 16
        %v1659 = vcvt.s32.f32 %v1657
        %v1660 = vcvt.s32.f32 %v1658
        %1661 = vmin.xlane.f32.xlu0 %v1660
        %v1662 = vpop.xlane.xlu0 %1661
        %vm1663 = vcmp.eq.f32.partialorder %v1660, %v1662
        %v1664 = vsel %vm1663, %v1659, inf
        %1665 = vmin.xlane.f32.xlu0 %v1664
        %v1666 = vpop.xlane.xlu0 %1665
        %v1667 = vcvt.f32.s32 %v1666
        %v1668 = vcvt.f32.s32 %v1662
        %v1669 = vshll.u32 %v1668, 16
        %v1670 = vadd.s32 %v1669, %v1667
        %v1671 = vand.u32 %v1486, 65535
        %v1672 = vshra.s32 %v1486, 16
        %v1673 = vcvt.s32.f32 %v1671
        %v1674 = vcvt.s32.f32 %v1672
        %1675 = vmin.xlane.f32.xlu0 %v1674
        %v1676 = vpop.xlane.xlu0 %1675
        %vm1677 = vcmp.eq.f32.partialorder %v1674, %v1676
        %v1678 = vsel %vm1677, %v1673, inf
        %1679 = vmin.xlane.f32.xlu0 %v1678
        %v1680 = vpop.xlane.xlu0 %1679
        %v1681 = vcvt.f32.s32 %v1680
        %v1682 = vcvt.f32.s32 %v1676
        %v1683 = vshll.u32 %v1682, 16
        %v1684 = vadd.s32 %v1683, %v1681
        %v1685 = vand.u32 %v1487, 65535
        %v1686 = vshra.s32 %v1487, 16
        %v1687 = vcvt.s32.f32 %v1685
        %v1688 = vcvt.s32.f32 %v1686
        %1689 = vmin.xlane.f32.xlu0 %v1688
        %v1690 = vpop.xlane.xlu0 %1689
        %vm1691 = vcmp.eq.f32.partialorder %v1688, %v1690
        %v1692 = vsel %vm1691, %v1687, inf
        %1693 = vmin.xlane.f32.xlu0 %v1692
        %v1694 = vpop.xlane.xlu0 %1693
        %v1695 = vcvt.f32.s32 %v1694
        %v1696 = vcvt.f32.s32 %v1690
        %v1697 = vshll.u32 %v1696, 16
        %v1698 = vadd.s32 %v1697, %v1695
        %v1699 = vand.u32 %v1488, 65535
        %v1700 = vshra.s32 %v1488, 16
        %v1701 = vcvt.s32.f32 %v1699
        %v1702 = vcvt.s32.f32 %v1700
        %1703 = vmin.xlane.f32.xlu0 %v1702
        %v1704 = vpop.xlane.xlu0 %1703
        %vm1705 = vcmp.eq.f32.partialorder %v1702, %v1704
        %v1706 = vsel %vm1705, %v1701, inf
        %1707 = vmin.xlane.f32.xlu0 %v1706
        %v1708 = vpop.xlane.xlu0 %1707
        %v1709 = vcvt.f32.s32 %v1708
        %v1710 = vcvt.f32.s32 %v1704
        %v1711 = vshll.u32 %v1710, 16
        %v1712 = vadd.s32 %v1711, %v1709
        %vm1713 = vcmp.eq.s32.totalorder %v943, %v1502
        %vm1714 = vcmp.eq.s32.totalorder %v943, %v1516
        %vm1715 = vcmp.eq.s32.totalorder %v943, %v1530
        %vm1716 = vcmp.eq.s32.totalorder %v943, %v1544
        %vm1717 = vcmp.eq.s32.totalorder %v943, %v1558
        %vm1718 = vcmp.eq.s32.totalorder %v943, %v1572
        %vm1719 = vcmp.eq.s32.totalorder %v943, %v1586
        %vm1720 = vcmp.eq.s32.totalorder %v943, %v1600
        %vm1721 = vcmp.eq.s32.totalorder %v943, %v1614
        %vm1722 = vcmp.eq.s32.totalorder %v943, %v1628
        %vm1723 = vcmp.eq.s32.totalorder %v943, %v1642
        %vm1724 = vcmp.eq.s32.totalorder %v943, %v1656
        %vm1725 = vcmp.eq.s32.totalorder %v943, %v1670
        %vm1726 = vcmp.eq.s32.totalorder %v943, %v1684
        %vm1727 = vcmp.eq.s32.totalorder %v943, %v1698
        %vm1728 = vcmp.eq.s32.totalorder %v943, %v1712
        %v1729 = vsel %vm1713, 1.0, 0.0
        %v1730 = vsel %vm1714, 1.0, 0.0
        %v1731 = vsel %vm1715, 1.0, 0.0
        %v1732 = vsel %vm1716, 1.0, 0.0
        %v1733 = vsel %vm1717, 1.0, 0.0
        %v1734 = vsel %vm1718, 1.0, 0.0
        %v1735 = vsel %vm1719, 1.0, 0.0
        %v1736 = vsel %vm1720, 1.0, 0.0
        %v1737 = vsel %vm1721, 1.0, 0.0
        %v1738 = vsel %vm1722, 1.0, 0.0
        %v1739 = vsel %vm1723, 1.0, 0.0
        %v1740 = vsel %vm1724, 1.0, 0.0
        %v1741 = vsel %vm1725, 1.0, 0.0
        %v1742 = vsel %vm1726, 1.0, 0.0
        %v1743 = vsel %vm1727, 1.0, 0.0
        %v1744 = vsel %vm1728, 1.0, 0.0
        %1745 = vmatprep.subr.mxu0 0.0
        %1746 = vmatpush1.msra.mxu0 %v926
        %1747 = vmatprep.subr.mxu0 0.0
        %1748 = vmatpush1.msra.mxu0 %v927
        %1749 = vmatprep.subr.mxu0 0.0
        %1750 = vmatpush1.msra.mxu0 %v928
        %1751 = vmatprep.subr.mxu0 0.0
        %1752 = vmatpush1.msra.mxu0 %v929
        %1753 = vmatprep.subr.mxu0 0.0
        %1754 = vmatpush1.msra.mxu0 %v930
        %1755 = vmatprep.subr.mxu0 0.0
        %1756 = vmatpush1.msra.mxu0 %v931
        %1757 = vmatprep.subr.mxu0 0.0
        %1758 = vmatpush1.msra.mxu0 %v932
        %1759 = vmatprep.subr.mxu0 0.0
        %1760 = vmatpush1.msra.mxu0 %v933
        %1761 = vmatprep.subr.mxu0 0.0
        %1762 = vmatpush1.msra.mxu0 %v934
        %1763 = vmatprep.subr.mxu0 0.0
        %1764 = vmatpush1.msra.mxu0 %v935
        %1765 = vmatprep.subr.mxu0 0.0
        %1766 = vmatpush1.msra.mxu0 %v936
        %1767 = vmatprep.subr.mxu0 0.0
        %1768 = vmatpush1.msra.mxu0 %v937
        %1769 = vmatprep.subr.mxu0 0.0
        %1770 = vmatpush1.msra.mxu0 %v938
        %1771 = vmatprep.subr.mxu0 0.0
        %1772 = vmatpush1.msra.mxu0 %v939
        %1773 = vmatprep.subr.mxu0 0.0
        %1774 = vmatpush1.msra.mxu0 %v940
        %1775 = vmatprep.subr.mxu0 0.0
        %1776 = vmatpush1.msra.mxu0 %v941
        %1777 = vmatprep.subr.mxu0 0.0
        %1778 = vmatpush1.msra.mxu0 0.0
        %1779 = vmatprep.subr.mxu0 0.0
        %1780 = vmatpush1.msra.mxu0 0.0
        %1781 = vmatprep.subr.mxu0 0.0
        %1782 = vmatpush1.msra.mxu0 0.0
        %1783 = vmatprep.subr.mxu0 0.0
        %1784 = vmatpush1.msra.mxu0 0.0
        %1785 = vmatprep.subr.mxu0 0.0
        %1786 = vmatpush1.msra.mxu0 0.0
        %1787 = vmatprep.subr.mxu0 0.0
        %1788 = vmatpush1.msra.mxu0 0.0
        %1789 = vmatprep.subr.mxu0 0.0
        %1790 = vmatpush1.msra.mxu0 0.0
        %1791 = vmatprep.subr.mxu0 0.0
        %1792 = vmatpush1.msra.mxu0 0.0
        %1793 = vmatprep.subr.mxu0 0.0
        %1794 = vmatpush1.msra.mxu0 0.0
        %1795 = vmatprep.subr.mxu0 0.0
        %1796 = vmatpush1.msra.mxu0 0.0
        %1797 = vmatprep.subr.mxu0 0.0
        %1798 = vmatpush1.msra.mxu0 0.0
        %1799 = vmatprep.subr.mxu0 0.0
        %1800 = vmatpush1.msra.mxu0 0.0
        %1801 = vmatprep.subr.mxu0 0.0
        %1802 = vmatpush1.msra.mxu0 0.0
        %1803 = vmatprep.subr.mxu0 0.0
        %1804 = vmatpush1.msra.mxu0 0.0
        %1805 = vmatprep.subr.mxu0 0.0
        %1806 = vmatpush1.msra.mxu0 0.0
        %1807 = vmatprep.subr.mxu0 0.0
        %1808 = vmatpush1.msra.mxu0 0.0
        %1809 = vmatprep.mubr.f32.mxu0 0.0
        %1810 = vmatmul.mubr.f32.gmra.mrb[0].mxu0 %v1729
        %v1811 = vpop.f32.mrb[0].mxu0
        %v1812 = vadd.f32 0.0, %v1811
        %v1813 = vpop.f32.mrb[0].mxu0
        %1814 = vmatprep.mubr.f32.mxu0 0.0
        %1815 = vmatmul.mubr.f32.gmra.mrb[0].mxu0 %v1730
        %v1816 = vpop.f32.mrb[0].mxu0
        %v1817 = vadd.f32 0.0, %v1816
        %v1818 = vpop.f32.mrb[0].mxu0
        %1819 = vmatprep.mubr.f32.mxu0 0.0
        %1820 = vmatmul.mubr.f32.gmra.mrb[0].mxu0 %v1731
        %v1821 = vpop.f32.mrb[0].mxu0
        %v1822 = vadd.f32 0.0, %v1821
        %v1823 = vpop.f32.mrb[0].mxu0
        %1824 = vmatprep.mubr.f32.mxu0 0.0
        %1825 = vmatmul.mubr.f32.gmra.mrb[0].mxu0 %v1732
        %v1826 = vpop.f32.mrb[0].mxu0
        %v1827 = vadd.f32 0.0, %v1826
        %v1828 = vpop.f32.mrb[0].mxu0
        %1829 = vmatprep.mubr.f32.mxu0 0.0
        %1830 = vmatmul.mubr.f32.gmra.mrb[0].mxu0 %v1733
        %v1831 = vpop.f32.mrb[0].mxu0
        %v1832 = vadd.f32 0.0, %v1831
        %v1833 = vpop.f32.mrb[0].mxu0
        %1834 = vmatprep.mubr.f32.mxu0 0.0
        %1835 = vmatmul.mubr.f32.gmra.mrb[0].mxu0 %v1734
        %v1836 = vpop.f32.mrb[0].mxu0
        %v1837 = vadd.f32 0.0, %v1836
        %v1838 = vpop.f32.mrb[0].mxu0
        %1839 = vmatprep.mubr.f32.mxu0 0.0
        %1840 = vmatmul.mubr.f32.gmra.mrb[0].mxu0 %v1735
        %v1841 = vpop.f32.mrb[0].mxu0
        %v1842 = vadd.f32 0.0, %v1841
        %v1843 = vpop.f32.mrb[0].mxu0
        %1844 = vmatprep.mubr.f32.mxu0 0.0
        %1845 = vmatmul.mubr.f32.gmra.mrb[0].mxu0 %v1736
        %v1846 = vpop.f32.mrb[0].mxu0
        %v1847 = vadd.f32 0.0, %v1846
        %v1848 = vpop.f32.mrb[0].mxu0
        %1849 = vmatprep.mubr.f32.mxu0 0.0
        %1850 = vmatmul.mubr.f32.gmra.mrb[0].mxu0 %v1737
        %v1851 = vpop.f32.mrb[0].mxu0
        %v1852 = vadd.f32 0.0, %v1851
        %v1853 = vpop.f32.mrb[0].mxu0
        %1854 = vmatprep.mubr.f32.mxu0 0.0
        %1855 = vmatmul.mubr.f32.gmra.mrb[0].mxu0 %v1738
        %v1856 = vpop.f32.mrb[0].mxu0
        %v1857 = vadd.f32 0.0, %v1856
        %v1858 = vpop.f32.mrb[0].mxu0
        %1859 = vmatprep.mubr.f32.mxu0 0.0
        %1860 = vmatmul.mubr.f32.gmra.mrb[0].mxu0 %v1739
        %v1861 = vpop.f32.mrb[0].mxu0
        %v1862 = vadd.f32 0.0, %v1861
        %v1863 = vpop.f32.mrb[0].mxu0
        %1864 = vmatprep.mubr.f32.mxu0 0.0
        %1865 = vmatmul.mubr.f32.gmra.mrb[0].mxu0 %v1740
        %v1866 = vpop.f32.mrb[0].mxu0
        %v1867 = vadd.f32 0.0, %v1866
        %v1868 = vpop.f32.mrb[0].mxu0
        %1869 = vmatprep.mubr.f32.mxu0 0.0
        %1870 = vmatmul.mubr.f32.gmra.mrb[0].mxu0 %v1741
        %v1871 = vpop.f32.mrb[0].mxu0
        %v1872 = vadd.f32 0.0, %v1871
        %v1873 = vpop.f32.mrb[0].mxu0
        %1874 = vmatprep.mubr.f32.mxu0 0.0
        %1875 = vmatmul.mubr.f32.gmra.mrb[0].mxu0 %v1742
        %v1876 = vpop.f32.mrb[0].mxu0
        %v1877 = vadd.f32 0.0, %v1876
        %v1878 = vpop.f32.mrb[0].mxu0
        %1879 = vmatprep.mubr.f32.mxu0 0.0
        %1880 = vmatmul.mubr.f32.gmra.mrb[0].mxu0 %v1743
        %v1881 = vpop.f32.mrb[0].mxu0
        %v1882 = vadd.f32 0.0, %v1881
        %v1883 = vpop.f32.mrb[0].mxu0
        %1884 = vmatprep.mubr.f32.mxu0 0.0
        %1885 = vmatmul.mubr.f32.gmra.mrb[0].mxu0 %v1744
        %v1886 = vpop.f32.mrb[0].mxu0
        %v1887 = vadd.f32 0.0, %v1886
        %v1888 = vpop.f32.mrb[0].mxu0
        %1889 = vdwg.mxu0
        %v1890 = vmax.f32 %v1331, %v1812
        %v1891 = vmax.f32 %v1336, %v1817
        %v1892 = vmax.f32 %v1341, %v1822
        %v1893 = vmax.f32 %v1346, %v1827
        %v1894 = vmax.f32 %v1351, %v1832
        %v1895 = vmax.f32 %v1356, %v1837
        %v1896 = vmax.f32 %v1361, %v1842
        %v1897 = vmax.f32 %v1366, %v1847
        %v1898 = vmax.f32 %v1371, %v1852
        %v1899 = vmax.f32 %v1376, %v1857
        %v1900 = vmax.f32 %v1381, %v1862
        %v1901 = vmax.f32 %v1386, %v1867
        %v1902 = vmax.f32 %v1391, %v1872
        %v1903 = vmax.f32 %v1396, %v1877
        %v1904 = vmax.f32 %v1401, %v1882
        %v1905 = vmax.f32 %v1406, %v1887
        %v1906 = vsel %vm1713, -inf, %v1409
        %v1907 = vsel %vm1714, -inf, %v1410
        %v1908 = vsel %vm1715, -inf, %v1411
        %v1909 = vsel %vm1716, -inf, %v1412
        %v1910 = vsel %vm1717, -inf, %v1413
        %v1911 = vsel %vm1718, -inf, %v1414
        %v1912 = vsel %vm1719, -inf, %v1415
        %v1913 = vsel %vm1720, -inf, %v1416
        %v1914 = vsel %vm1721, -inf, %v1417
        %v1915 = vsel %vm1722, -inf, %v1418
        %v1916 = vsel %vm1723, -inf, %v1419
        %v1917 = vsel %vm1724, -inf, %v1420
        %v1918 = vsel %vm1725, -inf, %v1421
        %v1919 = vsel %vm1726, -inf, %v1422
        %v1920 = vsel %vm1727, -inf, %v1423
        %v1921 = vsel %vm1728, -inf, %v1424
        %1922 = vmax.xlane.f32.xlu0 %v1906
        %v1923 = vpop.xlane.xlu0 %1922
        %1924 = vmax.xlane.f32.xlu0 %v1907
        %v1925 = vpop.xlane.xlu0 %1924
        %1926 = vmax.xlane.f32.xlu0 %v1908
        %v1927 = vpop.xlane.xlu0 %1926
        %1928 = vmax.xlane.f32.xlu0 %v1909
        %v1929 = vpop.xlane.xlu0 %1928
        %1930 = vmax.xlane.f32.xlu0 %v1910
        %v1931 = vpop.xlane.xlu0 %1930
        %1932 = vmax.xlane.f32.xlu0 %v1911
        %v1933 = vpop.xlane.xlu0 %1932
        %1934 = vmax.xlane.f32.xlu0 %v1912
        %v1935 = vpop.xlane.xlu0 %1934
        %1936 = vmax.xlane.f32.xlu0 %v1913
        %v1937 = vpop.xlane.xlu0 %1936
        %1938 = vmax.xlane.f32.xlu0 %v1914
        %v1939 = vpop.xlane.xlu0 %1938
        %1940 = vmax.xlane.f32.xlu0 %v1915
        %v1941 = vpop.xlane.xlu0 %1940
        %1942 = vmax.xlane.f32.xlu0 %v1916
        %v1943 = vpop.xlane.xlu0 %1942
        %1944 = vmax.xlane.f32.xlu0 %v1917
        %v1945 = vpop.xlane.xlu0 %1944
        %1946 = vmax.xlane.f32.xlu0 %v1918
        %v1947 = vpop.xlane.xlu0 %1946
        %1948 = vmax.xlane.f32.xlu0 %v1919
        %v1949 = vpop.xlane.xlu0 %1948
        %1950 = vmax.xlane.f32.xlu0 %v1920
        %v1951 = vpop.xlane.xlu0 %1950
        %1952 = vmax.xlane.f32.xlu0 %v1921
        %v1953 = vpop.xlane.xlu0 %1952
        %vm1954 = vcmp.eq.f32.partialorder %v1906, %v1923
        %vm1955 = vcmp.eq.f32.partialorder %v1907, %v1925
        %vm1956 = vcmp.eq.f32.partialorder %v1908, %v1927
        %vm1957 = vcmp.eq.f32.partialorder %v1909, %v1929
        %vm1958 = vcmp.eq.f32.partialorder %v1910, %v1931
        %vm1959 = vcmp.eq.f32.partialorder %v1911, %v1933
        %vm1960 = vcmp.eq.f32.partialorder %v1912, %v1935
        %vm1961 = vcmp.eq.f32.partialorder %v1913, %v1937
        %vm1962 = vcmp.eq.f32.partialorder %v1914, %v1939
        %vm1963 = vcmp.eq.f32.partialorder %v1915, %v1941
        %vm1964 = vcmp.eq.f32.partialorder %v1916, %v1943
        %vm1965 = vcmp.eq.f32.partialorder %v1917, %v1945
        %vm1966 = vcmp.eq.f32.partialorder %v1918, %v1947
        %vm1967 = vcmp.eq.f32.partialorder %v1919, %v1949
        %vm1968 = vcmp.eq.f32.partialorder %v1920, %v1951
        %vm1969 = vcmp.eq.f32.partialorder %v1921, %v1953
        %v1970 = vsel %vm1954, %v943, 128
        %v1971 = vsel %vm1955, %v943, 128
        %v1972 = vsel %vm1956, %v943, 128
        %v1973 = vsel %vm1957, %v943, 128
        %v1974 = vsel %vm1958, %v943, 128
        %v1975 = vsel %vm1959, %v943, 128
        %v1976 = vsel %vm1960, %v943, 128
        %v1977 = vsel %vm1961, %v943, 128
        %v1978 = vsel %vm1962, %v943, 128
        %v1979 = vsel %vm1963, %v943, 128
        %v1980 = vsel %vm1964, %v943, 128
        %v1981 = vsel %vm1965, %v943, 128
        %v1982 = vsel %vm1966, %v943, 128
        %v1983 = vsel %vm1967, %v943, 128
        %v1984 = vsel %vm1968, %v943, 128
        %v1985 = vsel %vm1969, %v943, 128
        %v1986 = vand.u32 %v1970, 65535
        %v1987 = vshra.s32 %v1970, 16
        %v1988 = vcvt.s32.f32 %v1986
        %v1989 = vcvt.s32.f32 %v1987
        %1990 = vmin.xlane.f32.xlu0 %v1989
        %v1991 = vpop.xlane.xlu0 %1990
        %vm1992 = vcmp.eq.f32.partialorder %v1989, %v1991
        %v1993 = vsel %vm1992, %v1988, inf
        %1994 = vmin.xlane.f32.xlu0 %v1993
        %v1995 = vpop.xlane.xlu0 %1994
        %v1996 = vcvt.f32.s32 %v1995
        %v1997 = vcvt.f32.s32 %v1991
        %v1998 = vshll.u32 %v1997, 16
        %v1999 = vadd.s32 %v1998, %v1996
        %v2000 = vand.u32 %v1971, 65535
        %v2001 = vshra.s32 %v1971, 16
        %v2002 = vcvt.s32.f32 %v2000
        %v2003 = vcvt.s32.f32 %v2001
        %2004 = vmin.xlane.f32.xlu0 %v2003
        %v2005 = vpop.xlane.xlu0 %2004
        %vm2006 = vcmp.eq.f32.partialorder %v2003, %v2005
        %v2007 = vsel %vm2006, %v2002, inf
        %2008 = vmin.xlane.f32.xlu0 %v2007
        %v2009 = vpop.xlane.xlu0 %2008
        %v2010 = vcvt.f32.s32 %v2009
        %v2011 = vcvt.f32.s32 %v2005
        %v2012 = vshll.u32 %v2011, 16
        %v2013 = vadd.s32 %v2012, %v2010
        %v2014 = vand.u32 %v1972, 65535
        %v2015 = vshra.s32 %v1972, 16
        %v2016 = vcvt.s32.f32 %v2014
        %v2017 = vcvt.s32.f32 %v2015
        %2018 = vmin.xlane.f32.xlu0 %v2017
        %v2019 = vpop.xlane.xlu0 %2018
        %vm2020 = vcmp.eq.f32.partialorder %v2017, %v2019
        %v2021 = vsel %vm2020, %v2016, inf
        %2022 = vmin.xlane.f32.xlu0 %v2021
        %v2023 = vpop.xlane.xlu0 %2022
        %v2024 = vcvt.f32.s32 %v2023
        %v2025 = vcvt.f32.s32 %v2019
        %v2026 = vshll.u32 %v2025, 16
        %v2027 = vadd.s32 %v2026, %v2024
        %v2028 = vand.u32 %v1973, 65535
        %v2029 = vshra.s32 %v1973, 16
        %v2030 = vcvt.s32.f32 %v2028
        %v2031 = vcvt.s32.f32 %v2029
        %2032 = vmin.xlane.f32.xlu0 %v2031
        %v2033 = vpop.xlane.xlu0 %2032
        %vm2034 = vcmp.eq.f32.partialorder %v2031, %v2033
        %v2035 = vsel %vm2034, %v2030, inf
        %2036 = vmin.xlane.f32.xlu0 %v2035
        %v2037 = vpop.xlane.xlu0 %2036
        %v2038 = vcvt.f32.s32 %v2037
        %v2039 = vcvt.f32.s32 %v2033
        %v2040 = vshll.u32 %v2039, 16
        %v2041 = vadd.s32 %v2040, %v2038
        %v2042 = vand.u32 %v1974, 65535
        %v2043 = vshra.s32 %v1974, 16
        %v2044 = vcvt.s32.f32 %v2042
        %v2045 = vcvt.s32.f32 %v2043
        %2046 = vmin.xlane.f32.xlu0 %v2045
        %v2047 = vpop.xlane.xlu0 %2046
        %vm2048 = vcmp.eq.f32.partialorder %v2045, %v2047
        %v2049 = vsel %vm2048, %v2044, inf
        %2050 = vmin.xlane.f32.xlu0 %v2049
        %v2051 = vpop.xlane.xlu0 %2050
        %v2052 = vcvt.f32.s32 %v2051
        %v2053 = vcvt.f32.s32 %v2047
        %v2054 = vshll.u32 %v2053, 16
        %v2055 = vadd.s32 %v2054, %v2052
        %v2056 = vand.u32 %v1975, 65535
        %v2057 = vshra.s32 %v1975, 16
        %v2058 = vcvt.s32.f32 %v2056
        %v2059 = vcvt.s32.f32 %v2057
        %2060 = vmin.xlane.f32.xlu0 %v2059
        %v2061 = vpop.xlane.xlu0 %2060
        %vm2062 = vcmp.eq.f32.partialorder %v2059, %v2061
        %v2063 = vsel %vm2062, %v2058, inf
        %2064 = vmin.xlane.f32.xlu0 %v2063
        %v2065 = vpop.xlane.xlu0 %2064
        %v2066 = vcvt.f32.s32 %v2065
        %v2067 = vcvt.f32.s32 %v2061
        %v2068 = vshll.u32 %v2067, 16
        %v2069 = vadd.s32 %v2068, %v2066
        %v2070 = vand.u32 %v1976, 65535
        %v2071 = vshra.s32 %v1976, 16
        %v2072 = vcvt.s32.f32 %v2070
        %v2073 = vcvt.s32.f32 %v2071
        %2074 = vmin.xlane.f32.xlu0 %v2073
        %v2075 = vpop.xlane.xlu0 %2074
        %vm2076 = vcmp.eq.f32.partialorder %v2073, %v2075
        %v2077 = vsel %vm2076, %v2072, inf
        %2078 = vmin.xlane.f32.xlu0 %v2077
        %v2079 = vpop.xlane.xlu0 %2078
        %v2080 = vcvt.f32.s32 %v2079
        %v2081 = vcvt.f32.s32 %v2075
        %v2082 = vshll.u32 %v2081, 16
        %v2083 = vadd.s32 %v2082, %v2080
        %v2084 = vand.u32 %v1977, 65535
        %v2085 = vshra.s32 %v1977, 16
        %v2086 = vcvt.s32.f32 %v2084
        %v2087 = vcvt.s32.f32 %v2085
        %2088 = vmin.xlane.f32.xlu0 %v2087
        %v2089 = vpop.xlane.xlu0 %2088
        %vm2090 = vcmp.eq.f32.partialorder %v2087, %v2089
        %v2091 = vsel %vm2090, %v2086, inf
        %2092 = vmin.xlane.f32.xlu0 %v2091
        %v2093 = vpop.xlane.xlu0 %2092
        %v2094 = vcvt.f32.s32 %v2093
        %v2095 = vcvt.f32.s32 %v2089
        %v2096 = vshll.u32 %v2095, 16
        %v2097 = vadd.s32 %v2096, %v2094
        %v2098 = vand.u32 %v1978, 65535
        %v2099 = vshra.s32 %v1978, 16
        %v2100 = vcvt.s32.f32 %v2098
        %v2101 = vcvt.s32.f32 %v2099
        %2102 = vmin.xlane.f32.xlu0 %v2101
        %v2103 = vpop.xlane.xlu0 %2102
        %vm2104 = vcmp.eq.f32.partialorder %v2101, %v2103
        %v2105 = vsel %vm2104, %v2100, inf
        %2106 = vmin.xlane.f32.xlu0 %v2105
        %v2107 = vpop.xlane.xlu0 %2106
        %v2108 = vcvt.f32.s32 %v2107
        %v2109 = vcvt.f32.s32 %v2103
        %v2110 = vshll.u32 %v2109, 16
        %v2111 = vadd.s32 %v2110, %v2108
        %v2112 = vand.u32 %v1979, 65535
        %v2113 = vshra.s32 %v1979, 16
        %v2114 = vcvt.s32.f32 %v2112
        %v2115 = vcvt.s32.f32 %v2113
        %2116 = vmin.xlane.f32.xlu0 %v2115
        %v2117 = vpop.xlane.xlu0 %2116
        %vm2118 = vcmp.eq.f32.partialorder %v2115, %v2117
        %v2119 = vsel %vm2118, %v2114, inf
        %2120 = vmin.xlane.f32.xlu0 %v2119
        %v2121 = vpop.xlane.xlu0 %2120
        %v2122 = vcvt.f32.s32 %v2121
        %v2123 = vcvt.f32.s32 %v2117
        %v2124 = vshll.u32 %v2123, 16
        %v2125 = vadd.s32 %v2124, %v2122
        %v2126 = vand.u32 %v1980, 65535
        %v2127 = vshra.s32 %v1980, 16
        %v2128 = vcvt.s32.f32 %v2126
        %v2129 = vcvt.s32.f32 %v2127
        %2130 = vmin.xlane.f32.xlu0 %v2129
        %v2131 = vpop.xlane.xlu0 %2130
        %vm2132 = vcmp.eq.f32.partialorder %v2129, %v2131
        %v2133 = vsel %vm2132, %v2128, inf
        %2134 = vmin.xlane.f32.xlu0 %v2133
        %v2135 = vpop.xlane.xlu0 %2134
        %v2136 = vcvt.f32.s32 %v2135
        %v2137 = vcvt.f32.s32 %v2131
        %v2138 = vshll.u32 %v2137, 16
        %v2139 = vadd.s32 %v2138, %v2136
        %v2140 = vand.u32 %v1981, 65535
        %v2141 = vshra.s32 %v1981, 16
        %v2142 = vcvt.s32.f32 %v2140
        %v2143 = vcvt.s32.f32 %v2141
        %2144 = vmin.xlane.f32.xlu0 %v2143
        %v2145 = vpop.xlane.xlu0 %2144
        %vm2146 = vcmp.eq.f32.partialorder %v2143, %v2145
        %v2147 = vsel %vm2146, %v2142, inf
        %2148 = vmin.xlane.f32.xlu0 %v2147
        %v2149 = vpop.xlane.xlu0 %2148
        %v2150 = vcvt.f32.s32 %v2149
        %v2151 = vcvt.f32.s32 %v2145
        %v2152 = vshll.u32 %v2151, 16
        %v2153 = vadd.s32 %v2152, %v2150
        %v2154 = vand.u32 %v1982, 65535
        %v2155 = vshra.s32 %v1982, 16
        %v2156 = vcvt.s32.f32 %v2154
        %v2157 = vcvt.s32.f32 %v2155
        %2158 = vmin.xlane.f32.xlu0 %v2157
        %v2159 = vpop.xlane.xlu0 %2158
        %vm2160 = vcmp.eq.f32.partialorder %v2157, %v2159
        %v2161 = vsel %vm2160, %v2156, inf
        %2162 = vmin.xlane.f32.xlu0 %v2161
        %v2163 = vpop.xlane.xlu0 %2162
        %v2164 = vcvt.f32.s32 %v2163
        %v2165 = vcvt.f32.s32 %v2159
        %v2166 = vshll.u32 %v2165, 16
        %v2167 = vadd.s32 %v2166, %v2164
        %v2168 = vand.u32 %v1983, 65535
        %v2169 = vshra.s32 %v1983, 16
        %v2170 = vcvt.s32.f32 %v2168
        %v2171 = vcvt.s32.f32 %v2169
        %2172 = vmin.xlane.f32.xlu0 %v2171
        %v2173 = vpop.xlane.xlu0 %2172
        %vm2174 = vcmp.eq.f32.partialorder %v2171, %v2173
        %v2175 = vsel %vm2174, %v2170, inf
        %2176 = vmin.xlane.f32.xlu0 %v2175
        %v2177 = vpop.xlane.xlu0 %2176
        %v2178 = vcvt.f32.s32 %v2177
        %v2179 = vcvt.f32.s32 %v2173
        %v2180 = vshll.u32 %v2179, 16
        %v2181 = vadd.s32 %v2180, %v2178
        %v2182 = vand.u32 %v1984, 65535
        %v2183 = vshra.s32 %v1984, 16
        %v2184 = vcvt.s32.f32 %v2182
        %v2185 = vcvt.s32.f32 %v2183
        %2186 = vmin.xlane.f32.xlu0 %v2185
        %v2187 = vpop.xlane.xlu0 %2186
        %vm2188 = vcmp.eq.f32.partialorder %v2185, %v2187
        %v2189 = vsel %vm2188, %v2184, inf
        %2190 = vmin.xlane.f32.xlu0 %v2189
        %v2191 = vpop.xlane.xlu0 %2190
        %v2192 = vcvt.f32.s32 %v2191
        %v2193 = vcvt.f32.s32 %v2187
        %v2194 = vshll.u32 %v2193, 16
        %v2195 = vadd.s32 %v2194, %v2192
        %v2196 = vand.u32 %v1985, 65535
        %v2197 = vshra.s32 %v1985, 16
        %v2198 = vcvt.s32.f32 %v2196
        %v2199 = vcvt.s32.f32 %v2197
        %2200 = vmin.xlane.f32.xlu0 %v2199
        %v2201 = vpop.xlane.xlu0 %2200
        %vm2202 = vcmp.eq.f32.partialorder %v2199, %v2201
        %v2203 = vsel %vm2202, %v2198, inf
        %2204 = vmin.xlane.f32.xlu0 %v2203
        %v2205 = vpop.xlane.xlu0 %2204
        %v2206 = vcvt.f32.s32 %v2205
        %v2207 = vcvt.f32.s32 %v2201
        %v2208 = vshll.u32 %v2207, 16
        %v2209 = vadd.s32 %v2208, %v2206
        %vm2210 = vcmp.eq.s32.totalorder %v943, %v1999
        %vm2211 = vcmp.eq.s32.totalorder %v943, %v2013
        %vm2212 = vcmp.eq.s32.totalorder %v943, %v2027
        %vm2213 = vcmp.eq.s32.totalorder %v943, %v2041
        %vm2214 = vcmp.eq.s32.totalorder %v943, %v2055
        %vm2215 = vcmp.eq.s32.totalorder %v943, %v2069
        %vm2216 = vcmp.eq.s32.totalorder %v943, %v2083
        %vm2217 = vcmp.eq.s32.totalorder %v943, %v2097
        %vm2218 = vcmp.eq.s32.totalorder %v943, %v2111
        %vm2219 = vcmp.eq.s32.totalorder %v943, %v2125
        %vm2220 = vcmp.eq.s32.totalorder %v943, %v2139
        %vm2221 = vcmp.eq.s32.totalorder %v943, %v2153
        %vm2222 = vcmp.eq.s32.totalorder %v943, %v2167
        %vm2223 = vcmp.eq.s32.totalorder %v943, %v2181
        %vm2224 = vcmp.eq.s32.totalorder %v943, %v2195
        %vm2225 = vcmp.eq.s32.totalorder %v943, %v2209
        %v2226 = vsel %vm2210, 1.0, 0.0
        %v2227 = vsel %vm2211, 1.0, 0.0
        %v2228 = vsel %vm2212, 1.0, 0.0
        %v2229 = vsel %vm2213, 1.0, 0.0
        %v2230 = vsel %vm2214, 1.0, 0.0
        %v2231 = vsel %vm2215, 1.0, 0.0
        %v2232 = vsel %vm2216, 1.0, 0.0
        %v2233 = vsel %vm2217, 1.0, 0.0
        %v2234 = vsel %vm2218, 1.0, 0.0
        %v2235 = vsel %vm2219, 1.0, 0.0
        %v2236 = vsel %vm2220, 1.0, 0.0
        %v2237 = vsel %vm2221, 1.0, 0.0
        %v2238 = vsel %vm2222, 1.0, 0.0
        %v2239 = vsel %vm2223, 1.0, 0.0
        %v2240 = vsel %vm2224, 1.0, 0.0
        %v2241 = vsel %vm2225, 1.0, 0.0
        %2242 = vmatprep.subr.mxu0 0.0
        %2243 = vmatpush1.msra.mxu0 %v926
        %2244 = vmatprep.subr.mxu0 0.0
        %2245 = vmatpush1.msra.mxu0 %v927
        %2246 = vmatprep.subr.mxu0 0.0
        %2247 = vmatpush1.msra.mxu0 %v928
        %2248 = vmatprep.subr.mxu0 0.0
        %2249 = vmatpush1.msra.mxu0 %v929
        %2250 = vmatprep.subr.mxu0 0.0
        %2251 = vmatpush1.msra.mxu0 %v930
        %2252 = vmatprep.subr.mxu0 0.0
        %2253 = vmatpush1.msra.mxu0 %v931
        %2254 = vmatprep.subr.mxu0 0.0
        %2255 = vmatpush1.msra.mxu0 %v932
        %2256 = vmatprep.subr.mxu0 0.0
        %2257 = vmatpush1.msra.mxu0 %v933
        %2258 = vmatprep.subr.mxu0 0.0
        %2259 = vmatpush1.msra.mxu0 %v934
        %2260 = vmatprep.subr.mxu0 0.0
        %2261 = vmatpush1.msra.mxu0 %v935
        %2262 = vmatprep.subr.mxu0 0.0
        %2263 = vmatpush1.msra.mxu0 %v936
        %2264 = vmatprep.subr.mxu0 0.0
        %2265 = vmatpush1.msra.mxu0 %v937
        %2266 = vmatprep.subr.mxu0 0.0
        %2267 = vmatpush1.msra.mxu0 %v938
        %2268 = vmatprep.subr.mxu0 0.0
        %2269 = vmatpush1.msra.mxu0 %v939
        %2270 = vmatprep.subr.mxu0 0.0
        %2271 = vmatpush1.msra.mxu0 %v940
        %2272 = vmatprep.subr.mxu0 0.0
        %2273 = vmatpush1.msra.mxu0 %v941
        %2274 = vmatprep.subr.mxu0 0.0
        %2275 = vmatpush1.msra.mxu0 0.0
        %2276 = vmatprep.subr.mxu0 0.0
        %2277 = vmatpush1.msra.mxu0 0.0
        %2278 = vmatprep.subr.mxu0 0.0
        %2279 = vmatpush1.msra.mxu0 0.0
        %2280 = vmatprep.subr.mxu0 0.0
        %2281 = vmatpush1.msra.mxu0 0.0
        %2282 = vmatprep.subr.mxu0 0.0
        %2283 = vmatpush1.msra.mxu0 0.0
        %2284 = vmatprep.subr.mxu0 0.0
        %2285 = vmatpush1.msra.mxu0 0.0
        %2286 = vmatprep.subr.mxu0 0.0
        %2287 = vmatpush1.msra.mxu0 0.0
        %2288 = vmatprep.subr.mxu0 0.0
        %2289 = vmatpush1.msra.mxu0 0.0
        %2290 = vmatprep.subr.mxu0 0.0
        %2291 = vmatpush1.msra.mxu0 0.0
        %2292 = vmatprep.subr.mxu0 0.0
        %2293 = vmatpush1.msra.mxu0 0.0
        %2294 = vmatprep.subr.mxu0 0.0
        %2295 = vmatpush1.msra.mxu0 0.0
        %2296 = vmatprep.subr.mxu0 0.0
        %2297 = vmatpush1.msra.mxu0 0.0
        %2298 = vmatprep.subr.mxu0 0.0
        %2299 = vmatpush1.msra.mxu0 0.0
        %2300 = vmatprep.subr.mxu0 0.0
        %2301 = vmatpush1.msra.mxu0 0.0
        %2302 = vmatprep.subr.mxu0 0.0
        %2303 = vmatpush1.msra.mxu0 0.0
        %2304 = vmatprep.subr.mxu0 0.0
        %2305 = vmatpush1.msra.mxu0 0.0
        %2306 = vmatprep.mubr.f32.mxu0 0.0
        %2307 = vmatmul.mubr.f32.gmra.mrb[0].mxu0 %v2226
        %v2308 = vpop.f32.mrb[0].mxu0
        %v2309 = vadd.f32 0.0, %v2308
        %v2310 = vpop.f32.mrb[0].mxu0
        %2311 = vmatprep.mubr.f32.mxu0 0.0
        %2312 = vmatmul.mubr.f32.gmra.mrb[0].mxu0 %v2227
        %v2313 = vpop.f32.mrb[0].mxu0
        %v2314 = vadd.f32 0.0, %v2313
        %v2315 = vpop.f32.mrb[0].mxu0
        %2316 = vmatprep.mubr.f32.mxu0 0.0
        %2317 = vmatmul.mubr.f32.gmra.mrb[0].mxu0 %v2228
        %v2318 = vpop.f32.mrb[0].mxu0
        %v2319 = vadd.f32 0.0, %v2318
        %v2320 = vpop.f32.mrb[0].mxu0
        %2321 = vmatprep.mubr.f32.mxu0 0.0
        %2322 = vmatmul.mubr.f32.gmra.mrb[0].mxu0 %v2229
        %v2323 = vpop.f32.mrb[0].mxu0
        %v2324 = vadd.f32 0.0, %v2323
        %v2325 = vpop.f32.mrb[0].mxu0
        %2326 = vmatprep.mubr.f32.mxu0 0.0
        %2327 = vmatmul.mubr.f32.gmra.mrb[0].mxu0 %v2230
        %v2328 = vpop.f32.mrb[0].mxu0
        %v2329 = vadd.f32 0.0, %v2328
        %v2330 = vpop.f32.mrb[0].mxu0
        %2331 = vmatprep.mubr.f32.mxu0 0.0
        %2332 = vmatmul.mubr.f32.gmra.mrb[0].mxu0 %v2231
        %v2333 = vpop.f32.mrb[0].mxu0
        %v2334 = vadd.f32 0.0, %v2333
        %v2335 = vpop.f32.mrb[0].mxu0
        %2336 = vmatprep.mubr.f32.mxu0 0.0
        %2337 = vmatmul.mubr.f32.gmra.mrb[0].mxu0 %v2232
        %v2338 = vpop.f32.mrb[0].mxu0
        %v2339 = vadd.f32 0.0, %v2338
        %v2340 = vpop.f32.mrb[0].mxu0
        %2341 = vmatprep.mubr.f32.mxu0 0.0
        %2342 = vmatmul.mubr.f32.gmra.mrb[0].mxu0 %v2233
        %v2343 = vpop.f32.mrb[0].mxu0
        %v2344 = vadd.f32 0.0, %v2343
        %v2345 = vpop.f32.mrb[0].mxu0
        %2346 = vmatprep.mubr.f32.mxu0 0.0
        %2347 = vmatmul.mubr.f32.gmra.mrb[0].mxu0 %v2234
        %v2348 = vpop.f32.mrb[0].mxu0
        %v2349 = vadd.f32 0.0, %v2348
        %v2350 = vpop.f32.mrb[0].mxu0
        %2351 = vmatprep.mubr.f32.mxu0 0.0
        %2352 = vmatmul.mubr.f32.gmra.mrb[0].mxu0 %v2235
        %v2353 = vpop.f32.mrb[0].mxu0
        %v2354 = vadd.f32 0.0, %v2353
        %v2355 = vpop.f32.mrb[0].mxu0
        %2356 = vmatprep.mubr.f32.mxu0 0.0
        %2357 = vmatmul.mubr.f32.gmra.mrb[0].mxu0 %v2236
        %v2358 = vpop.f32.mrb[0].mxu0
        %v2359 = vadd.f32 0.0, %v2358
        %v2360 = vpop.f32.mrb[0].mxu0
        %2361 = vmatprep.mubr.f32.mxu0 0.0
        %2362 = vmatmul.mubr.f32.gmra.mrb[0].mxu0 %v2237
        %v2363 = vpop.f32.mrb[0].mxu0
        %v2364 = vadd.f32 0.0, %v2363
        %v2365 = vpop.f32.mrb[0].mxu0
        %2366 = vmatprep.mubr.f32.mxu0 0.0
        %2367 = vmatmul.mubr.f32.gmra.mrb[0].mxu0 %v2238
        %v2368 = vpop.f32.mrb[0].mxu0
        %v2369 = vadd.f32 0.0, %v2368
        %v2370 = vpop.f32.mrb[0].mxu0
        %2371 = vmatprep.mubr.f32.mxu0 0.0
        %2372 = vmatmul.mubr.f32.gmra.mrb[0].mxu0 %v2239
        %v2373 = vpop.f32.mrb[0].mxu0
        %v2374 = vadd.f32 0.0, %v2373
        %v2375 = vpop.f32.mrb[0].mxu0
        %2376 = vmatprep.mubr.f32.mxu0 0.0
        %2377 = vmatmul.mubr.f32.gmra.mrb[0].mxu0 %v2240
        %v2378 = vpop.f32.mrb[0].mxu0
        %v2379 = vadd.f32 0.0, %v2378
        %v2380 = vpop.f32.mrb[0].mxu0
        %2381 = vmatprep.mubr.f32.mxu0 0.0
        %2382 = vmatmul.mubr.f32.gmra.mrb[0].mxu0 %v2241
        %v2383 = vpop.f32.mrb[0].mxu0
        %v2384 = vadd.f32 0.0, %v2383
        %v2385 = vpop.f32.mrb[0].mxu0
        %2386 = vdwg.mxu0
        %v2387 = vmax.f32 %v1890, %v2309
        %v2388 = vmax.f32 %v1891, %v2314
        %v2389 = vmax.f32 %v1892, %v2319
        %v2390 = vmax.f32 %v1893, %v2324
        %v2391 = vmax.f32 %v1894, %v2329
        %v2392 = vmax.f32 %v1895, %v2334
        %v2393 = vmax.f32 %v1896, %v2339
        %v2394 = vmax.f32 %v1897, %v2344
        %v2395 = vmax.f32 %v1898, %v2349
        %v2396 = vmax.f32 %v1899, %v2354
        %v2397 = vmax.f32 %v1900, %v2359
        %v2398 = vmax.f32 %v1901, %v2364
        %v2399 = vmax.f32 %v1902, %v2369
        %v2400 = vmax.f32 %v1903, %v2374
        %v2401 = vmax.f32 %v1904, %v2379
        %v2402 = vmax.f32 %v1905, %v2384
        %v2403 = vsel %vm2210, -inf, %v1906
        %v2404 = vsel %vm2211, -inf, %v1907
        %v2405 = vsel %vm2212, -inf, %v1908
        %v2406 = vsel %vm2213, -inf, %v1909
        %v2407 = vsel %vm2214, -inf, %v1910
        %v2408 = vsel %vm2215, -inf, %v1911
        %v2409 = vsel %vm2216, -inf, %v1912
        %v2410 = vsel %vm2217, -inf, %v1913
        %v2411 = vsel %vm2218, -inf, %v1914
        %v2412 = vsel %vm2219, -inf, %v1915
        %v2413 = vsel %vm2220, -inf, %v1916
        %v2414 = vsel %vm2221, -inf, %v1917
        %v2415 = vsel %vm2222, -inf, %v1918
        %v2416 = vsel %vm2223, -inf, %v1919
        %v2417 = vsel %vm2224, -inf, %v1920
        %v2418 = vsel %vm2225, -inf, %v1921
        %2419 = vmax.xlane.f32.xlu0 %v2403
        %v2420 = vpop.xlane.xlu0 %2419
        %2421 = vmax.xlane.f32.xlu0 %v2404
        %v2422 = vpop.xlane.xlu0 %2421
        %2423 = vmax.xlane.f32.xlu0 %v2405
        %v2424 = vpop.xlane.xlu0 %2423
        %2425 = vmax.xlane.f32.xlu0 %v2406
        %v2426 = vpop.xlane.xlu0 %2425
        %2427 = vmax.xlane.f32.xlu0 %v2407
        %v2428 = vpop.xlane.xlu0 %2427
        %2429 = vmax.xlane.f32.xlu0 %v2408
        %v2430 = vpop.xlane.xlu0 %2429
        %2431 = vmax.xlane.f32.xlu0 %v2409
        %v2432 = vpop.xlane.xlu0 %2431
        %2433 = vmax.xlane.f32.xlu0 %v2410
        %v2434 = vpop.xlane.xlu0 %2433
        %2435 = vmax.xlane.f32.xlu0 %v2411
        %v2436 = vpop.xlane.xlu0 %2435
        %2437 = vmax.xlane.f32.xlu0 %v2412
        %v2438 = vpop.xlane.xlu0 %2437
        %2439 = vmax.xlane.f32.xlu0 %v2413
        %v2440 = vpop.xlane.xlu0 %2439
        %2441 = vmax.xlane.f32.xlu0 %v2414
        %v2442 = vpop.xlane.xlu0 %2441
        %2443 = vmax.xlane.f32.xlu0 %v2415
        %v2444 = vpop.xlane.xlu0 %2443
        %2445 = vmax.xlane.f32.xlu0 %v2416
        %v2446 = vpop.xlane.xlu0 %2445
        %2447 = vmax.xlane.f32.xlu0 %v2417
        %v2448 = vpop.xlane.xlu0 %2447
        %2449 = vmax.xlane.f32.xlu0 %v2418
        %v2450 = vpop.xlane.xlu0 %2449
        %vm2451 = vcmp.eq.f32.partialorder %v2403, %v2420
        %vm2452 = vcmp.eq.f32.partialorder %v2404, %v2422
        %vm2453 = vcmp.eq.f32.partialorder %v2405, %v2424
        %vm2454 = vcmp.eq.f32.partialorder %v2406, %v2426
        %vm2455 = vcmp.eq.f32.partialorder %v2407, %v2428
        %vm2456 = vcmp.eq.f32.partialorder %v2408, %v2430
        %vm2457 = vcmp.eq.f32.partialorder %v2409, %v2432
        %vm2458 = vcmp.eq.f32.partialorder %v2410, %v2434
        %vm2459 = vcmp.eq.f32.partialorder %v2411, %v2436
        %vm2460 = vcmp.eq.f32.partialorder %v2412, %v2438
        %vm2461 = vcmp.eq.f32.partialorder %v2413, %v2440
        %vm2462 = vcmp.eq.f32.partialorder %v2414, %v2442
        %vm2463 = vcmp.eq.f32.partialorder %v2415, %v2444
        %vm2464 = vcmp.eq.f32.partialorder %v2416, %v2446
        %vm2465 = vcmp.eq.f32.partialorder %v2417, %v2448
        %vm2466 = vcmp.eq.f32.partialorder %v2418, %v2450
        %v2467 = vsel %vm2451, %v943, 128
        %v2468 = vsel %vm2452, %v943, 128
        %v2469 = vsel %vm2453, %v943, 128
        %v2470 = vsel %vm2454, %v943, 128
        %v2471 = vsel %vm2455, %v943, 128
        %v2472 = vsel %vm2456, %v943, 128
        %v2473 = vsel %vm2457, %v943, 128
        %v2474 = vsel %vm2458, %v943, 128
        %v2475 = vsel %vm2459, %v943, 128
        %v2476 = vsel %vm2460, %v943, 128
        %v2477 = vsel %vm2461, %v943, 128
        %v2478 = vsel %vm2462, %v943, 128
        %v2479 = vsel %vm2463, %v943, 128
        %v2480 = vsel %vm2464, %v943, 128
        %v2481 = vsel %vm2465, %v943, 128
        %v2482 = vsel %vm2466, %v943, 128
        %v2483 = vand.u32 %v2467, 65535
        %v2484 = vshra.s32 %v2467, 16
        %v2485 = vcvt.s32.f32 %v2483
        %v2486 = vcvt.s32.f32 %v2484
        %2487 = vmin.xlane.f32.xlu0 %v2486
        %v2488 = vpop.xlane.xlu0 %2487
        %vm2489 = vcmp.eq.f32.partialorder %v2486, %v2488
        %v2490 = vsel %vm2489, %v2485, inf
        %2491 = vmin.xlane.f32.xlu0 %v2490
        %v2492 = vpop.xlane.xlu0 %2491
        %v2493 = vcvt.f32.s32 %v2492
        %v2494 = vcvt.f32.s32 %v2488
        %v2495 = vshll.u32 %v2494, 16
        %v2496 = vadd.s32 %v2495, %v2493
        %v2497 = vand.u32 %v2468, 65535
        %v2498 = vshra.s32 %v2468, 16
        %v2499 = vcvt.s32.f32 %v2497
        %v2500 = vcvt.s32.f32 %v2498
        %2501 = vmin.xlane.f32.xlu0 %v2500
        %v2502 = vpop.xlane.xlu0 %2501
        %vm2503 = vcmp.eq.f32.partialorder %v2500, %v2502
        %v2504 = vsel %vm2503, %v2499, inf
        %2505 = vmin.xlane.f32.xlu0 %v2504
        %v2506 = vpop.xlane.xlu0 %2505
        %v2507 = vcvt.f32.s32 %v2506
        %v2508 = vcvt.f32.s32 %v2502
        %v2509 = vshll.u32 %v2508, 16
        %v2510 = vadd.s32 %v2509, %v2507
        %v2511 = vand.u32 %v2469, 65535
        %v2512 = vshra.s32 %v2469, 16
        %v2513 = vcvt.s32.f32 %v2511
        %v2514 = vcvt.s32.f32 %v2512
        %2515 = vmin.xlane.f32.xlu0 %v2514
        %v2516 = vpop.xlane.xlu0 %2515
        %vm2517 = vcmp.eq.f32.partialorder %v2514, %v2516
        %v2518 = vsel %vm2517, %v2513, inf
        %2519 = vmin.xlane.f32.xlu0 %v2518
        %v2520 = vpop.xlane.xlu0 %2519
        %v2521 = vcvt.f32.s32 %v2520
        %v2522 = vcvt.f32.s32 %v2516
        %v2523 = vshll.u32 %v2522, 16
        %v2524 = vadd.s32 %v2523, %v2521
        %v2525 = vand.u32 %v2470, 65535
        %v2526 = vshra.s32 %v2470, 16
        %v2527 = vcvt.s32.f32 %v2525
        %v2528 = vcvt.s32.f32 %v2526
        %2529 = vmin.xlane.f32.xlu0 %v2528
        %v2530 = vpop.xlane.xlu0 %2529
        %vm2531 = vcmp.eq.f32.partialorder %v2528, %v2530
        %v2532 = vsel %vm2531, %v2527, inf
        %2533 = vmin.xlane.f32.xlu0 %v2532
        %v2534 = vpop.xlane.xlu0 %2533
        %v2535 = vcvt.f32.s32 %v2534
        %v2536 = vcvt.f32.s32 %v2530
        %v2537 = vshll.u32 %v2536, 16
        %v2538 = vadd.s32 %v2537, %v2535
        %v2539 = vand.u32 %v2471, 65535
        %v2540 = vshra.s32 %v2471, 16
        %v2541 = vcvt.s32.f32 %v2539
        %v2542 = vcvt.s32.f32 %v2540
        %2543 = vmin.xlane.f32.xlu0 %v2542
        %v2544 = vpop.xlane.xlu0 %2543
        %vm2545 = vcmp.eq.f32.partialorder %v2542, %v2544
        %v2546 = vsel %vm2545, %v2541, inf
        %2547 = vmin.xlane.f32.xlu0 %v2546
        %v2548 = vpop.xlane.xlu0 %2547
        %v2549 = vcvt.f32.s32 %v2548
        %v2550 = vcvt.f32.s32 %v2544
        %v2551 = vshll.u32 %v2550, 16
        %v2552 = vadd.s32 %v2551, %v2549
        %v2553 = vand.u32 %v2472, 65535
        %v2554 = vshra.s32 %v2472, 16
        %v2555 = vcvt.s32.f32 %v2553
        %v2556 = vcvt.s32.f32 %v2554
        %2557 = vmin.xlane.f32.xlu0 %v2556
        %v2558 = vpop.xlane.xlu0 %2557
        %vm2559 = vcmp.eq.f32.partialorder %v2556, %v2558
        %v2560 = vsel %vm2559, %v2555, inf
        %2561 = vmin.xlane.f32.xlu0 %v2560
        %v2562 = vpop.xlane.xlu0 %2561
        %v2563 = vcvt.f32.s32 %v2562
        %v2564 = vcvt.f32.s32 %v2558
        %v2565 = vshll.u32 %v2564, 16
        %v2566 = vadd.s32 %v2565, %v2563
        %v2567 = vand.u32 %v2473, 65535
        %v2568 = vshra.s32 %v2473, 16
        %v2569 = vcvt.s32.f32 %v2567
        %v2570 = vcvt.s32.f32 %v2568
        %2571 = vmin.xlane.f32.xlu0 %v2570
        %v2572 = vpop.xlane.xlu0 %2571
        %vm2573 = vcmp.eq.f32.partialorder %v2570, %v2572
        %v2574 = vsel %vm2573, %v2569, inf
        %2575 = vmin.xlane.f32.xlu0 %v2574
        %v2576 = vpop.xlane.xlu0 %2575
        %v2577 = vcvt.f32.s32 %v2576
        %v2578 = vcvt.f32.s32 %v2572
        %v2579 = vshll.u32 %v2578, 16
        %v2580 = vadd.s32 %v2579, %v2577
        %v2581 = vand.u32 %v2474, 65535
        %v2582 = vshra.s32 %v2474, 16
        %v2583 = vcvt.s32.f32 %v2581
        %v2584 = vcvt.s32.f32 %v2582
        %2585 = vmin.xlane.f32.xlu0 %v2584
        %v2586 = vpop.xlane.xlu0 %2585
        %vm2587 = vcmp.eq.f32.partialorder %v2584, %v2586
        %v2588 = vsel %vm2587, %v2583, inf
        %2589 = vmin.xlane.f32.xlu0 %v2588
        %v2590 = vpop.xlane.xlu0 %2589
        %v2591 = vcvt.f32.s32 %v2590
        %v2592 = vcvt.f32.s32 %v2586
        %v2593 = vshll.u32 %v2592, 16
        %v2594 = vadd.s32 %v2593, %v2591
        %v2595 = vand.u32 %v2475, 65535
        %v2596 = vshra.s32 %v2475, 16
        %v2597 = vcvt.s32.f32 %v2595
        %v2598 = vcvt.s32.f32 %v2596
        %2599 = vmin.xlane.f32.xlu0 %v2598
        %v2600 = vpop.xlane.xlu0 %2599
        %vm2601 = vcmp.eq.f32.partialorder %v2598, %v2600
        %v2602 = vsel %vm2601, %v2597, inf
        %2603 = vmin.xlane.f32.xlu0 %v2602
        %v2604 = vpop.xlane.xlu0 %2603
        %v2605 = vcvt.f32.s32 %v2604
        %v2606 = vcvt.f32.s32 %v2600
        %v2607 = vshll.u32 %v2606, 16
        %v2608 = vadd.s32 %v2607, %v2605
        %v2609 = vand.u32 %v2476, 65535
        %v2610 = vshra.s32 %v2476, 16
        %v2611 = vcvt.s32.f32 %v2609
        %v2612 = vcvt.s32.f32 %v2610
        %2613 = vmin.xlane.f32.xlu0 %v2612
        %v2614 = vpop.xlane.xlu0 %2613
        %vm2615 = vcmp.eq.f32.partialorder %v2612, %v2614
        %v2616 = vsel %vm2615, %v2611, inf
        %2617 = vmin.xlane.f32.xlu0 %v2616
        %v2618 = vpop.xlane.xlu0 %2617
        %v2619 = vcvt.f32.s32 %v2618
        %v2620 = vcvt.f32.s32 %v2614
        %v2621 = vshll.u32 %v2620, 16
        %v2622 = vadd.s32 %v2621, %v2619
        %v2623 = vand.u32 %v2477, 65535
        %v2624 = vshra.s32 %v2477, 16
        %v2625 = vcvt.s32.f32 %v2623
        %v2626 = vcvt.s32.f32 %v2624
        %2627 = vmin.xlane.f32.xlu0 %v2626
        %v2628 = vpop.xlane.xlu0 %2627
        %vm2629 = vcmp.eq.f32.partialorder %v2626, %v2628
        %v2630 = vsel %vm2629, %v2625, inf
        %2631 = vmin.xlane.f32.xlu0 %v2630
        %v2632 = vpop.xlane.xlu0 %2631
        %v2633 = vcvt.f32.s32 %v2632
        %v2634 = vcvt.f32.s32 %v2628
        %v2635 = vshll.u32 %v2634, 16
        %v2636 = vadd.s32 %v2635, %v2633
        %v2637 = vand.u32 %v2478, 65535
        %v2638 = vshra.s32 %v2478, 16
        %v2639 = vcvt.s32.f32 %v2637
        %v2640 = vcvt.s32.f32 %v2638
        %2641 = vmin.xlane.f32.xlu0 %v2640
        %v2642 = vpop.xlane.xlu0 %2641
        %vm2643 = vcmp.eq.f32.partialorder %v2640, %v2642
        %v2644 = vsel %vm2643, %v2639, inf
        %2645 = vmin.xlane.f32.xlu0 %v2644
        %v2646 = vpop.xlane.xlu0 %2645
        %v2647 = vcvt.f32.s32 %v2646
        %v2648 = vcvt.f32.s32 %v2642
        %v2649 = vshll.u32 %v2648, 16
        %v2650 = vadd.s32 %v2649, %v2647
        %v2651 = vand.u32 %v2479, 65535
        %v2652 = vshra.s32 %v2479, 16
        %v2653 = vcvt.s32.f32 %v2651
        %v2654 = vcvt.s32.f32 %v2652
        %2655 = vmin.xlane.f32.xlu0 %v2654
        %v2656 = vpop.xlane.xlu0 %2655
        %vm2657 = vcmp.eq.f32.partialorder %v2654, %v2656
        %v2658 = vsel %vm2657, %v2653, inf
        %2659 = vmin.xlane.f32.xlu0 %v2658
        %v2660 = vpop.xlane.xlu0 %2659
        %v2661 = vcvt.f32.s32 %v2660
        %v2662 = vcvt.f32.s32 %v2656
        %v2663 = vshll.u32 %v2662, 16
        %v2664 = vadd.s32 %v2663, %v2661
        %v2665 = vand.u32 %v2480, 65535
        %v2666 = vshra.s32 %v2480, 16
        %v2667 = vcvt.s32.f32 %v2665
        %v2668 = vcvt.s32.f32 %v2666
        %2669 = vmin.xlane.f32.xlu0 %v2668
        %v2670 = vpop.xlane.xlu0 %2669
        %vm2671 = vcmp.eq.f32.partialorder %v2668, %v2670
        %v2672 = vsel %vm2671, %v2667, inf
        %2673 = vmin.xlane.f32.xlu0 %v2672
        %v2674 = vpop.xlane.xlu0 %2673
        %v2675 = vcvt.f32.s32 %v2674
        %v2676 = vcvt.f32.s32 %v2670
        %v2677 = vshll.u32 %v2676, 16
        %v2678 = vadd.s32 %v2677, %v2675
        %v2679 = vand.u32 %v2481, 65535
        %v2680 = vshra.s32 %v2481, 16
        %v2681 = vcvt.s32.f32 %v2679
        %v2682 = vcvt.s32.f32 %v2680
        %2683 = vmin.xlane.f32.xlu0 %v2682
        %v2684 = vpop.xlane.xlu0 %2683
        %vm2685 = vcmp.eq.f32.partialorder %v2682, %v2684
        %v2686 = vsel %vm2685, %v2681, inf
        %2687 = vmin.xlane.f32.xlu0 %v2686
        %v2688 = vpop.xlane.xlu0 %2687
        %v2689 = vcvt.f32.s32 %v2688
        %v2690 = vcvt.f32.s32 %v2684
        %v2691 = vshll.u32 %v2690, 16
        %v2692 = vadd.s32 %v2691, %v2689
        %v2693 = vand.u32 %v2482, 65535
        %v2694 = vshra.s32 %v2482, 16
        %v2695 = vcvt.s32.f32 %v2693
        %v2696 = vcvt.s32.f32 %v2694
        %2697 = vmin.xlane.f32.xlu0 %v2696
        %v2698 = vpop.xlane.xlu0 %2697
        %vm2699 = vcmp.eq.f32.partialorder %v2696, %v2698
        %v2700 = vsel %vm2699, %v2695, inf
        %2701 = vmin.xlane.f32.xlu0 %v2700
        %v2702 = vpop.xlane.xlu0 %2701
        %v2703 = vcvt.f32.s32 %v2702
        %v2704 = vcvt.f32.s32 %v2698
        %v2705 = vshll.u32 %v2704, 16
        %v2706 = vadd.s32 %v2705, %v2703
        %vm2707 = vcmp.eq.s32.totalorder %v943, %v2496
        %vm2708 = vcmp.eq.s32.totalorder %v943, %v2510
        %vm2709 = vcmp.eq.s32.totalorder %v943, %v2524
        %vm2710 = vcmp.eq.s32.totalorder %v943, %v2538
        %vm2711 = vcmp.eq.s32.totalorder %v943, %v2552
        %vm2712 = vcmp.eq.s32.totalorder %v943, %v2566
        %vm2713 = vcmp.eq.s32.totalorder %v943, %v2580
        %vm2714 = vcmp.eq.s32.totalorder %v943, %v2594
        %vm2715 = vcmp.eq.s32.totalorder %v943, %v2608
        %vm2716 = vcmp.eq.s32.totalorder %v943, %v2622
        %vm2717 = vcmp.eq.s32.totalorder %v943, %v2636
        %vm2718 = vcmp.eq.s32.totalorder %v943, %v2650
        %vm2719 = vcmp.eq.s32.totalorder %v943, %v2664
        %vm2720 = vcmp.eq.s32.totalorder %v943, %v2678
        %vm2721 = vcmp.eq.s32.totalorder %v943, %v2692
        %vm2722 = vcmp.eq.s32.totalorder %v943, %v2706
        %v2723 = vsel %vm2707, 1.0, 0.0
        %v2724 = vsel %vm2708, 1.0, 0.0
        %v2725 = vsel %vm2709, 1.0, 0.0
        %v2726 = vsel %vm2710, 1.0, 0.0
        %v2727 = vsel %vm2711, 1.0, 0.0
        %v2728 = vsel %vm2712, 1.0, 0.0
        %v2729 = vsel %vm2713, 1.0, 0.0
        %v2730 = vsel %vm2714, 1.0, 0.0
        %v2731 = vsel %vm2715, 1.0, 0.0
        %v2732 = vsel %vm2716, 1.0, 0.0
        %v2733 = vsel %vm2717, 1.0, 0.0
        %v2734 = vsel %vm2718, 1.0, 0.0
        %v2735 = vsel %vm2719, 1.0, 0.0
        %v2736 = vsel %vm2720, 1.0, 0.0
        %v2737 = vsel %vm2721, 1.0, 0.0
        %v2738 = vsel %vm2722, 1.0, 0.0
        %2739 = vmatprep.subr.mxu0 0.0
        %2740 = vmatpush1.msra.mxu0 %v926
        %2741 = vmatprep.subr.mxu0 0.0
        %2742 = vmatpush1.msra.mxu0 %v927
        %2743 = vmatprep.subr.mxu0 0.0
        %2744 = vmatpush1.msra.mxu0 %v928
        %2745 = vmatprep.subr.mxu0 0.0
        %2746 = vmatpush1.msra.mxu0 %v929
        %2747 = vmatprep.subr.mxu0 0.0
        %2748 = vmatpush1.msra.mxu0 %v930
        %2749 = vmatprep.subr.mxu0 0.0
        %2750 = vmatpush1.msra.mxu0 %v931
        %2751 = vmatprep.subr.mxu0 0.0
        %2752 = vmatpush1.msra.mxu0 %v932
        %2753 = vmatprep.subr.mxu0 0.0
        %2754 = vmatpush1.msra.mxu0 %v933
        %2755 = vmatprep.subr.mxu0 0.0
        %2756 = vmatpush1.msra.mxu0 %v934
        %2757 = vmatprep.subr.mxu0 0.0
        %2758 = vmatpush1.msra.mxu0 %v935
        %2759 = vmatprep.subr.mxu0 0.0
        %2760 = vmatpush1.msra.mxu0 %v936
        %2761 = vmatprep.subr.mxu0 0.0
        %2762 = vmatpush1.msra.mxu0 %v937
        %2763 = vmatprep.subr.mxu0 0.0
        %2764 = vmatpush1.msra.mxu0 %v938
        %2765 = vmatprep.subr.mxu0 0.0
        %2766 = vmatpush1.msra.mxu0 %v939
        %2767 = vmatprep.subr.mxu0 0.0
        %2768 = vmatpush1.msra.mxu0 %v940
        %2769 = vmatprep.subr.mxu0 0.0
        %2770 = vmatpush1.msra.mxu0 %v941
        %2771 = vmatprep.subr.mxu0 0.0
        %2772 = vmatpush1.msra.mxu0 0.0
        %2773 = vmatprep.subr.mxu0 0.0
        %2774 = vmatpush1.msra.mxu0 0.0
        %2775 = vmatprep.subr.mxu0 0.0
        %2776 = vmatpush1.msra.mxu0 0.0
        %2777 = vmatprep.subr.mxu0 0.0
        %2778 = vmatpush1.msra.mxu0 0.0
        %2779 = vmatprep.subr.mxu0 0.0
        %2780 = vmatpush1.msra.mxu0 0.0
        %2781 = vmatprep.subr.mxu0 0.0
        %2782 = vmatpush1.msra.mxu0 0.0
        %2783 = vmatprep.subr.mxu0 0.0
        %2784 = vmatpush1.msra.mxu0 0.0
        %2785 = vmatprep.subr.mxu0 0.0
        %2786 = vmatpush1.msra.mxu0 0.0
        %2787 = vmatprep.subr.mxu0 0.0
        %2788 = vmatpush1.msra.mxu0 0.0
        %2789 = vmatprep.subr.mxu0 0.0
        %2790 = vmatpush1.msra.mxu0 0.0
        %2791 = vmatprep.subr.mxu0 0.0
        %2792 = vmatpush1.msra.mxu0 0.0
        %2793 = vmatprep.subr.mxu0 0.0
        %2794 = vmatpush1.msra.mxu0 0.0
        %2795 = vmatprep.subr.mxu0 0.0
        %2796 = vmatpush1.msra.mxu0 0.0
        %2797 = vmatprep.subr.mxu0 0.0
        %2798 = vmatpush1.msra.mxu0 0.0
        %2799 = vmatprep.subr.mxu0 0.0
        %2800 = vmatpush1.msra.mxu0 0.0
        %2801 = vmatprep.subr.mxu0 0.0
        %2802 = vmatpush1.msra.mxu0 0.0
        %2803 = vmatprep.mubr.f32.mxu0 0.0
        %2804 = vmatmul.mubr.f32.gmra.mrb[0].mxu0 %v2723
        %v2805 = vpop.f32.mrb[0].mxu0
        %v2806 = vadd.f32 0.0, %v2805
        %v2807 = vpop.f32.mrb[0].mxu0
        %2808 = vmatprep.mubr.f32.mxu0 0.0
        %2809 = vmatmul.mubr.f32.gmra.mrb[0].mxu0 %v2724
        %v2810 = vpop.f32.mrb[0].mxu0
        %v2811 = vadd.f32 0.0, %v2810
        %v2812 = vpop.f32.mrb[0].mxu0
        %2813 = vmatprep.mubr.f32.mxu0 0.0
        %2814 = vmatmul.mubr.f32.gmra.mrb[0].mxu0 %v2725
        %v2815 = vpop.f32.mrb[0].mxu0
        %v2816 = vadd.f32 0.0, %v2815
        %v2817 = vpop.f32.mrb[0].mxu0
        %2818 = vmatprep.mubr.f32.mxu0 0.0
        %2819 = vmatmul.mubr.f32.gmra.mrb[0].mxu0 %v2726
        %v2820 = vpop.f32.mrb[0].mxu0
        %v2821 = vadd.f32 0.0, %v2820
        %v2822 = vpop.f32.mrb[0].mxu0
        %2823 = vmatprep.mubr.f32.mxu0 0.0
        %2824 = vmatmul.mubr.f32.gmra.mrb[0].mxu0 %v2727
        %v2825 = vpop.f32.mrb[0].mxu0
        %v2826 = vadd.f32 0.0, %v2825
        %v2827 = vpop.f32.mrb[0].mxu0
        %2828 = vmatprep.mubr.f32.mxu0 0.0
        %2829 = vmatmul.mubr.f32.gmra.mrb[0].mxu0 %v2728
        %v2830 = vpop.f32.mrb[0].mxu0
        %v2831 = vadd.f32 0.0, %v2830
        %v2832 = vpop.f32.mrb[0].mxu0
        %2833 = vmatprep.mubr.f32.mxu0 0.0
        %2834 = vmatmul.mubr.f32.gmra.mrb[0].mxu0 %v2729
        %v2835 = vpop.f32.mrb[0].mxu0
        %v2836 = vadd.f32 0.0, %v2835
        %v2837 = vpop.f32.mrb[0].mxu0
        %2838 = vmatprep.mubr.f32.mxu0 0.0
        %2839 = vmatmul.mubr.f32.gmra.mrb[0].mxu0 %v2730
        %v2840 = vpop.f32.mrb[0].mxu0
        %v2841 = vadd.f32 0.0, %v2840
        %v2842 = vpop.f32.mrb[0].mxu0
        %2843 = vmatprep.mubr.f32.mxu0 0.0
        %2844 = vmatmul.mubr.f32.gmra.mrb[0].mxu0 %v2731
        %v2845 = vpop.f32.mrb[0].mxu0
        %v2846 = vadd.f32 0.0, %v2845
        %v2847 = vpop.f32.mrb[0].mxu0
        %2848 = vmatprep.mubr.f32.mxu0 0.0
        %2849 = vmatmul.mubr.f32.gmra.mrb[0].mxu0 %v2732
        %v2850 = vpop.f32.mrb[0].mxu0
        %v2851 = vadd.f32 0.0, %v2850
        %v2852 = vpop.f32.mrb[0].mxu0
        %2853 = vmatprep.mubr.f32.mxu0 0.0
        %2854 = vmatmul.mubr.f32.gmra.mrb[0].mxu0 %v2733
        %v2855 = vpop.f32.mrb[0].mxu0
        %v2856 = vadd.f32 0.0, %v2855
        %v2857 = vpop.f32.mrb[0].mxu0
        %2858 = vmatprep.mubr.f32.mxu0 0.0
        %2859 = vmatmul.mubr.f32.gmra.mrb[0].mxu0 %v2734
        %v2860 = vpop.f32.mrb[0].mxu0
        %v2861 = vadd.f32 0.0, %v2860
        %v2862 = vpop.f32.mrb[0].mxu0
        %2863 = vmatprep.mubr.f32.mxu0 0.0
        %2864 = vmatmul.mubr.f32.gmra.mrb[0].mxu0 %v2735
        %v2865 = vpop.f32.mrb[0].mxu0
        %v2866 = vadd.f32 0.0, %v2865
        %v2867 = vpop.f32.mrb[0].mxu0
        %2868 = vmatprep.mubr.f32.mxu0 0.0
        %2869 = vmatmul.mubr.f32.gmra.mrb[0].mxu0 %v2736
        %v2870 = vpop.f32.mrb[0].mxu0
        %v2871 = vadd.f32 0.0, %v2870
        %v2872 = vpop.f32.mrb[0].mxu0
        %2873 = vmatprep.mubr.f32.mxu0 0.0
        %2874 = vmatmul.mubr.f32.gmra.mrb[0].mxu0 %v2737
        %v2875 = vpop.f32.mrb[0].mxu0
        %v2876 = vadd.f32 0.0, %v2875
        %v2877 = vpop.f32.mrb[0].mxu0
        %2878 = vmatprep.mubr.f32.mxu0 0.0
        %2879 = vmatmul.mubr.f32.gmra.mrb[0].mxu0 %v2738
        %v2880 = vpop.f32.mrb[0].mxu0
        %v2881 = vadd.f32 0.0, %v2880
        %v2882 = vpop.f32.mrb[0].mxu0
        %2883 = vdwg.mxu0
        %v2884 = vmax.f32 %v2387, %v2806
        %v2885 = vmax.f32 %v2388, %v2811
        %v2886 = vmax.f32 %v2389, %v2816
        %v2887 = vmax.f32 %v2390, %v2821
        %v2888 = vmax.f32 %v2391, %v2826
        %v2889 = vmax.f32 %v2392, %v2831
        %v2890 = vmax.f32 %v2393, %v2836
        %v2891 = vmax.f32 %v2394, %v2841
        %v2892 = vmax.f32 %v2395, %v2846
        %v2893 = vmax.f32 %v2396, %v2851
        %v2894 = vmax.f32 %v2397, %v2856
        %v2895 = vmax.f32 %v2398, %v2861
        %v2896 = vmax.f32 %v2399, %v2866
        %v2897 = vmax.f32 %v2400, %v2871
        %v2898 = vmax.f32 %v2401, %v2876
        %v2899 = vmax.f32 %v2402, %v2881
        %v2900 = vsel %vm2707, -inf, %v2403
        %v2901 = vsel %vm2708, -inf, %v2404
        %v2902 = vsel %vm2709, -inf, %v2405
        %v2903 = vsel %vm2710, -inf, %v2406
        %v2904 = vsel %vm2711, -inf, %v2407
        %v2905 = vsel %vm2712, -inf, %v2408
        %v2906 = vsel %vm2713, -inf, %v2409
        %v2907 = vsel %vm2714, -inf, %v2410
        %v2908 = vsel %vm2715, -inf, %v2411
        %v2909 = vsel %vm2716, -inf, %v2412
        %v2910 = vsel %vm2717, -inf, %v2413
        %v2911 = vsel %vm2718, -inf, %v2414
        %v2912 = vsel %vm2719, -inf, %v2415
        %v2913 = vsel %vm2720, -inf, %v2416
        %v2914 = vsel %vm2721, -inf, %v2417
        %v2915 = vsel %vm2722, -inf, %v2418
        %2916 = vmax.xlane.f32.xlu0 %v2900
        %v2917 = vpop.xlane.xlu0 %2916
        %2918 = vmax.xlane.f32.xlu0 %v2901
        %v2919 = vpop.xlane.xlu0 %2918
        %2920 = vmax.xlane.f32.xlu0 %v2902
        %v2921 = vpop.xlane.xlu0 %2920
        %2922 = vmax.xlane.f32.xlu0 %v2903
        %v2923 = vpop.xlane.xlu0 %2922
        %2924 = vmax.xlane.f32.xlu0 %v2904
        %v2925 = vpop.xlane.xlu0 %2924
        %2926 = vmax.xlane.f32.xlu0 %v2905
        %v2927 = vpop.xlane.xlu0 %2926
        %2928 = vmax.xlane.f32.xlu0 %v2906
        %v2929 = vpop.xlane.xlu0 %2928
        %2930 = vmax.xlane.f32.xlu0 %v2907
        %v2931 = vpop.xlane.xlu0 %2930
        %2932 = vmax.xlane.f32.xlu0 %v2908
        %v2933 = vpop.xlane.xlu0 %2932
        %2934 = vmax.xlane.f32.xlu0 %v2909
        %v2935 = vpop.xlane.xlu0 %2934
        %2936 = vmax.xlane.f32.xlu0 %v2910
        %v2937 = vpop.xlane.xlu0 %2936
        %2938 = vmax.xlane.f32.xlu0 %v2911
        %v2939 = vpop.xlane.xlu0 %2938
        %2940 = vmax.xlane.f32.xlu0 %v2912
        %v2941 = vpop.xlane.xlu0 %2940
        %2942 = vmax.xlane.f32.xlu0 %v2913
        %v2943 = vpop.xlane.xlu0 %2942
        %2944 = vmax.xlane.f32.xlu0 %v2914
        %v2945 = vpop.xlane.xlu0 %2944
        %2946 = vmax.xlane.f32.xlu0 %v2915
        %v2947 = vpop.xlane.xlu0 %2946
        %vm2948 = vcmp.eq.f32.partialorder %v2900, %v2917
        %vm2949 = vcmp.eq.f32.partialorder %v2901, %v2919
        %vm2950 = vcmp.eq.f32.partialorder %v2902, %v2921
        %vm2951 = vcmp.eq.f32.partialorder %v2903, %v2923
        %vm2952 = vcmp.eq.f32.partialorder %v2904, %v2925
        %vm2953 = vcmp.eq.f32.partialorder %v2905, %v2927
        %vm2954 = vcmp.eq.f32.partialorder %v2906, %v2929
        %vm2955 = vcmp.eq.f32.partialorder %v2907, %v2931
        %vm2956 = vcmp.eq.f32.partialorder %v2908, %v2933
        %vm2957 = vcmp.eq.f32.partialorder %v2909, %v2935
        %vm2958 = vcmp.eq.f32.partialorder %v2910, %v2937
        %vm2959 = vcmp.eq.f32.partialorder %v2911, %v2939
        %vm2960 = vcmp.eq.f32.partialorder %v2912, %v2941
        %vm2961 = vcmp.eq.f32.partialorder %v2913, %v2943
        %vm2962 = vcmp.eq.f32.partialorder %v2914, %v2945
        %vm2963 = vcmp.eq.f32.partialorder %v2915, %v2947
        %v2964 = vsel %vm2948, %v943, 128
        %v2965 = vsel %vm2949, %v943, 128
        %v2966 = vsel %vm2950, %v943, 128
        %v2967 = vsel %vm2951, %v943, 128
        %v2968 = vsel %vm2952, %v943, 128
        %v2969 = vsel %vm2953, %v943, 128
        %v2970 = vsel %vm2954, %v943, 128
        %v2971 = vsel %vm2955, %v943, 128
        %v2972 = vsel %vm2956, %v943, 128
        %v2973 = vsel %vm2957, %v943, 128
        %v2974 = vsel %vm2958, %v943, 128
        %v2975 = vsel %vm2959, %v943, 128
        %v2976 = vsel %vm2960, %v943, 128
        %v2977 = vsel %vm2961, %v943, 128
        %v2978 = vsel %vm2962, %v943, 128
        %v2979 = vsel %vm2963, %v943, 128
        %v2980 = vand.u32 %v2964, 65535
        %v2981 = vshra.s32 %v2964, 16
        %v2982 = vcvt.s32.f32 %v2980
        %v2983 = vcvt.s32.f32 %v2981
        %2984 = vmin.xlane.f32.xlu0 %v2983
        %v2985 = vpop.xlane.xlu0 %2984
        %vm2986 = vcmp.eq.f32.partialorder %v2983, %v2985
        %v2987 = vsel %vm2986, %v2982, inf
        %2988 = vmin.xlane.f32.xlu0 %v2987
        %v2989 = vpop.xlane.xlu0 %2988
        %v2990 = vcvt.f32.s32 %v2989
        %v2991 = vcvt.f32.s32 %v2985
        %v2992 = vshll.u32 %v2991, 16
        %v2993 = vadd.s32 %v2992, %v2990
        %v2994 = vand.u32 %v2965, 65535
        %v2995 = vshra.s32 %v2965, 16
        %v2996 = vcvt.s32.f32 %v2994
        %v2997 = vcvt.s32.f32 %v2995
        %2998 = vmin.xlane.f32.xlu0 %v2997
        %v2999 = vpop.xlane.xlu0 %2998
        %vm3000 = vcmp.eq.f32.partialorder %v2997, %v2999
        %v3001 = vsel %vm3000, %v2996, inf
        %3002 = vmin.xlane.f32.xlu0 %v3001
        %v3003 = vpop.xlane.xlu0 %3002
        %v3004 = vcvt.f32.s32 %v3003
        %v3005 = vcvt.f32.s32 %v2999
        %v3006 = vshll.u32 %v3005, 16
        %v3007 = vadd.s32 %v3006, %v3004
        %v3008 = vand.u32 %v2966, 65535
        %v3009 = vshra.s32 %v2966, 16
        %v3010 = vcvt.s32.f32 %v3008
        %v3011 = vcvt.s32.f32 %v3009
        %3012 = vmin.xlane.f32.xlu0 %v3011
        %v3013 = vpop.xlane.xlu0 %3012
        %vm3014 = vcmp.eq.f32.partialorder %v3011, %v3013
        %v3015 = vsel %vm3014, %v3010, inf
        %3016 = vmin.xlane.f32.xlu0 %v3015
        %v3017 = vpop.xlane.xlu0 %3016
        %v3018 = vcvt.f32.s32 %v3017
        %v3019 = vcvt.f32.s32 %v3013
        %v3020 = vshll.u32 %v3019, 16
        %v3021 = vadd.s32 %v3020, %v3018
        %v3022 = vand.u32 %v2967, 65535
        %v3023 = vshra.s32 %v2967, 16
        %v3024 = vcvt.s32.f32 %v3022
        %v3025 = vcvt.s32.f32 %v3023
        %3026 = vmin.xlane.f32.xlu0 %v3025
        %v3027 = vpop.xlane.xlu0 %3026
        %vm3028 = vcmp.eq.f32.partialorder %v3025, %v3027
        %v3029 = vsel %vm3028, %v3024, inf
        %3030 = vmin.xlane.f32.xlu0 %v3029
        %v3031 = vpop.xlane.xlu0 %3030
        %v3032 = vcvt.f32.s32 %v3031
        %v3033 = vcvt.f32.s32 %v3027
        %v3034 = vshll.u32 %v3033, 16
        %v3035 = vadd.s32 %v3034, %v3032
        %v3036 = vand.u32 %v2968, 65535
        %v3037 = vshra.s32 %v2968, 16
        %v3038 = vcvt.s32.f32 %v3036
        %v3039 = vcvt.s32.f32 %v3037
        %3040 = vmin.xlane.f32.xlu0 %v3039
        %v3041 = vpop.xlane.xlu0 %3040
        %vm3042 = vcmp.eq.f32.partialorder %v3039, %v3041
        %v3043 = vsel %vm3042, %v3038, inf
        %3044 = vmin.xlane.f32.xlu0 %v3043
        %v3045 = vpop.xlane.xlu0 %3044
        %v3046 = vcvt.f32.s32 %v3045
        %v3047 = vcvt.f32.s32 %v3041
        %v3048 = vshll.u32 %v3047, 16
        %v3049 = vadd.s32 %v3048, %v3046
        %v3050 = vand.u32 %v2969, 65535
        %v3051 = vshra.s32 %v2969, 16
        %v3052 = vcvt.s32.f32 %v3050
        %v3053 = vcvt.s32.f32 %v3051
        %3054 = vmin.xlane.f32.xlu0 %v3053
        %v3055 = vpop.xlane.xlu0 %3054
        %vm3056 = vcmp.eq.f32.partialorder %v3053, %v3055
        %v3057 = vsel %vm3056, %v3052, inf
        %3058 = vmin.xlane.f32.xlu0 %v3057
        %v3059 = vpop.xlane.xlu0 %3058
        %v3060 = vcvt.f32.s32 %v3059
        %v3061 = vcvt.f32.s32 %v3055
        %v3062 = vshll.u32 %v3061, 16
        %v3063 = vadd.s32 %v3062, %v3060
        %v3064 = vand.u32 %v2970, 65535
        %v3065 = vshra.s32 %v2970, 16
        %v3066 = vcvt.s32.f32 %v3064
        %v3067 = vcvt.s32.f32 %v3065
        %3068 = vmin.xlane.f32.xlu0 %v3067
        %v3069 = vpop.xlane.xlu0 %3068
        %vm3070 = vcmp.eq.f32.partialorder %v3067, %v3069
        %v3071 = vsel %vm3070, %v3066, inf
        %3072 = vmin.xlane.f32.xlu0 %v3071
        %v3073 = vpop.xlane.xlu0 %3072
        %v3074 = vcvt.f32.s32 %v3073
        %v3075 = vcvt.f32.s32 %v3069
        %v3076 = vshll.u32 %v3075, 16
        %v3077 = vadd.s32 %v3076, %v3074
        %v3078 = vand.u32 %v2971, 65535
        %v3079 = vshra.s32 %v2971, 16
        %v3080 = vcvt.s32.f32 %v3078
        %v3081 = vcvt.s32.f32 %v3079
        %3082 = vmin.xlane.f32.xlu0 %v3081
        %v3083 = vpop.xlane.xlu0 %3082
        %vm3084 = vcmp.eq.f32.partialorder %v3081, %v3083
        %v3085 = vsel %vm3084, %v3080, inf
        %3086 = vmin.xlane.f32.xlu0 %v3085
        %v3087 = vpop.xlane.xlu0 %3086
        %v3088 = vcvt.f32.s32 %v3087
        %v3089 = vcvt.f32.s32 %v3083
        %v3090 = vshll.u32 %v3089, 16
        %v3091 = vadd.s32 %v3090, %v3088
        %v3092 = vand.u32 %v2972, 65535
        %v3093 = vshra.s32 %v2972, 16
        %v3094 = vcvt.s32.f32 %v3092
        %v3095 = vcvt.s32.f32 %v3093
        %3096 = vmin.xlane.f32.xlu0 %v3095
        %v3097 = vpop.xlane.xlu0 %3096
        %vm3098 = vcmp.eq.f32.partialorder %v3095, %v3097
        %v3099 = vsel %vm3098, %v3094, inf
        %3100 = vmin.xlane.f32.xlu0 %v3099
        %v3101 = vpop.xlane.xlu0 %3100
        %v3102 = vcvt.f32.s32 %v3101
        %v3103 = vcvt.f32.s32 %v3097
        %v3104 = vshll.u32 %v3103, 16
        %v3105 = vadd.s32 %v3104, %v3102
        %v3106 = vand.u32 %v2973, 65535
        %v3107 = vshra.s32 %v2973, 16
        %v3108 = vcvt.s32.f32 %v3106
        %v3109 = vcvt.s32.f32 %v3107
        %3110 = vmin.xlane.f32.xlu0 %v3109
        %v3111 = vpop.xlane.xlu0 %3110
        %vm3112 = vcmp.eq.f32.partialorder %v3109, %v3111
        %v3113 = vsel %vm3112, %v3108, inf
        %3114 = vmin.xlane.f32.xlu0 %v3113
        %v3115 = vpop.xlane.xlu0 %3114
        %v3116 = vcvt.f32.s32 %v3115
        %v3117 = vcvt.f32.s32 %v3111
        %v3118 = vshll.u32 %v3117, 16
        %v3119 = vadd.s32 %v3118, %v3116
        %v3120 = vand.u32 %v2974, 65535
        %v3121 = vshra.s32 %v2974, 16
        %v3122 = vcvt.s32.f32 %v3120
        %v3123 = vcvt.s32.f32 %v3121
        %3124 = vmin.xlane.f32.xlu0 %v3123
        %v3125 = vpop.xlane.xlu0 %3124
        %vm3126 = vcmp.eq.f32.partialorder %v3123, %v3125
        %v3127 = vsel %vm3126, %v3122, inf
        %3128 = vmin.xlane.f32.xlu0 %v3127
        %v3129 = vpop.xlane.xlu0 %3128
        %v3130 = vcvt.f32.s32 %v3129
        %v3131 = vcvt.f32.s32 %v3125
        %v3132 = vshll.u32 %v3131, 16
        %v3133 = vadd.s32 %v3132, %v3130
        %v3134 = vand.u32 %v2975, 65535
        %v3135 = vshra.s32 %v2975, 16
        %v3136 = vcvt.s32.f32 %v3134
        %v3137 = vcvt.s32.f32 %v3135
        %3138 = vmin.xlane.f32.xlu0 %v3137
        %v3139 = vpop.xlane.xlu0 %3138
        %vm3140 = vcmp.eq.f32.partialorder %v3137, %v3139
        %v3141 = vsel %vm3140, %v3136, inf
        %3142 = vmin.xlane.f32.xlu0 %v3141
        %v3143 = vpop.xlane.xlu0 %3142
        %v3144 = vcvt.f32.s32 %v3143
        %v3145 = vcvt.f32.s32 %v3139
        %v3146 = vshll.u32 %v3145, 16
        %v3147 = vadd.s32 %v3146, %v3144
        %v3148 = vand.u32 %v2976, 65535
        %v3149 = vshra.s32 %v2976, 16
        %v3150 = vcvt.s32.f32 %v3148
        %v3151 = vcvt.s32.f32 %v3149
        %3152 = vmin.xlane.f32.xlu0 %v3151
        %v3153 = vpop.xlane.xlu0 %3152
        %vm3154 = vcmp.eq.f32.partialorder %v3151, %v3153
        %v3155 = vsel %vm3154, %v3150, inf
        %3156 = vmin.xlane.f32.xlu0 %v3155
        %v3157 = vpop.xlane.xlu0 %3156
        %v3158 = vcvt.f32.s32 %v3157
        %v3159 = vcvt.f32.s32 %v3153
        %v3160 = vshll.u32 %v3159, 16
        %v3161 = vadd.s32 %v3160, %v3158
        %v3162 = vand.u32 %v2977, 65535
        %v3163 = vshra.s32 %v2977, 16
        %v3164 = vcvt.s32.f32 %v3162
        %v3165 = vcvt.s32.f32 %v3163
        %3166 = vmin.xlane.f32.xlu0 %v3165
        %v3167 = vpop.xlane.xlu0 %3166
        %vm3168 = vcmp.eq.f32.partialorder %v3165, %v3167
        %v3169 = vsel %vm3168, %v3164, inf
        %3170 = vmin.xlane.f32.xlu0 %v3169
        %v3171 = vpop.xlane.xlu0 %3170
        %v3172 = vcvt.f32.s32 %v3171
        %v3173 = vcvt.f32.s32 %v3167
        %v3174 = vshll.u32 %v3173, 16
        %v3175 = vadd.s32 %v3174, %v3172
        %v3176 = vand.u32 %v2978, 65535
        %v3177 = vshra.s32 %v2978, 16
        %v3178 = vcvt.s32.f32 %v3176
        %v3179 = vcvt.s32.f32 %v3177
        %3180 = vmin.xlane.f32.xlu0 %v3179
        %v3181 = vpop.xlane.xlu0 %3180
        %vm3182 = vcmp.eq.f32.partialorder %v3179, %v3181
        %v3183 = vsel %vm3182, %v3178, inf
        %3184 = vmin.xlane.f32.xlu0 %v3183
        %v3185 = vpop.xlane.xlu0 %3184
        %v3186 = vcvt.f32.s32 %v3185
        %v3187 = vcvt.f32.s32 %v3181
        %v3188 = vshll.u32 %v3187, 16
        %v3189 = vadd.s32 %v3188, %v3186
        %v3190 = vand.u32 %v2979, 65535
        %v3191 = vshra.s32 %v2979, 16
        %v3192 = vcvt.s32.f32 %v3190
        %v3193 = vcvt.s32.f32 %v3191
        %3194 = vmin.xlane.f32.xlu0 %v3193
        %v3195 = vpop.xlane.xlu0 %3194
        %vm3196 = vcmp.eq.f32.partialorder %v3193, %v3195
        %v3197 = vsel %vm3196, %v3192, inf
        %3198 = vmin.xlane.f32.xlu0 %v3197
        %v3199 = vpop.xlane.xlu0 %3198
        %v3200 = vcvt.f32.s32 %v3199
        %v3201 = vcvt.f32.s32 %v3195
        %v3202 = vshll.u32 %v3201, 16
        %v3203 = vadd.s32 %v3202, %v3200
        %vm3204 = vcmp.eq.s32.totalorder %v943, %v2993
        %vm3205 = vcmp.eq.s32.totalorder %v943, %v3007
        %vm3206 = vcmp.eq.s32.totalorder %v943, %v3021
        %vm3207 = vcmp.eq.s32.totalorder %v943, %v3035
        %vm3208 = vcmp.eq.s32.totalorder %v943, %v3049
        %vm3209 = vcmp.eq.s32.totalorder %v943, %v3063
        %vm3210 = vcmp.eq.s32.totalorder %v943, %v3077
        %vm3211 = vcmp.eq.s32.totalorder %v943, %v3091
        %vm3212 = vcmp.eq.s32.totalorder %v943, %v3105
        %vm3213 = vcmp.eq.s32.totalorder %v943, %v3119
        %vm3214 = vcmp.eq.s32.totalorder %v943, %v3133
        %vm3215 = vcmp.eq.s32.totalorder %v943, %v3147
        %vm3216 = vcmp.eq.s32.totalorder %v943, %v3161
        %vm3217 = vcmp.eq.s32.totalorder %v943, %v3175
        %vm3218 = vcmp.eq.s32.totalorder %v943, %v3189
        %vm3219 = vcmp.eq.s32.totalorder %v943, %v3203
        %v3220 = vsel %vm3204, 1.0, 0.0
        %v3221 = vsel %vm3205, 1.0, 0.0
        %v3222 = vsel %vm3206, 1.0, 0.0
        %v3223 = vsel %vm3207, 1.0, 0.0
        %v3224 = vsel %vm3208, 1.0, 0.0
        %v3225 = vsel %vm3209, 1.0, 0.0
        %v3226 = vsel %vm3210, 1.0, 0.0
        %v3227 = vsel %vm3211, 1.0, 0.0
        %v3228 = vsel %vm3212, 1.0, 0.0
        %v3229 = vsel %vm3213, 1.0, 0.0
        %v3230 = vsel %vm3214, 1.0, 0.0
        %v3231 = vsel %vm3215, 1.0, 0.0
        %v3232 = vsel %vm3216, 1.0, 0.0
        %v3233 = vsel %vm3217, 1.0, 0.0
        %v3234 = vsel %vm3218, 1.0, 0.0
        %v3235 = vsel %vm3219, 1.0, 0.0
        %3236 = vmatprep.subr.mxu0 0.0
        %3237 = vmatpush1.msra.mxu0 %v926
        %3238 = vmatprep.subr.mxu0 0.0
        %3239 = vmatpush1.msra.mxu0 %v927
        %3240 = vmatprep.subr.mxu0 0.0
        %3241 = vmatpush1.msra.mxu0 %v928
        %3242 = vmatprep.subr.mxu0 0.0
        %3243 = vmatpush1.msra.mxu0 %v929
        %3244 = vmatprep.subr.mxu0 0.0
        %3245 = vmatpush1.msra.mxu0 %v930
        %3246 = vmatprep.subr.mxu0 0.0
        %3247 = vmatpush1.msra.mxu0 %v931
        %3248 = vmatprep.subr.mxu0 0.0
        %3249 = vmatpush1.msra.mxu0 %v932
        %3250 = vmatprep.subr.mxu0 0.0
        %3251 = vmatpush1.msra.mxu0 %v933
        %3252 = vmatprep.subr.mxu0 0.0
        %3253 = vmatpush1.msra.mxu0 %v934
        %3254 = vmatprep.subr.mxu0 0.0
        %3255 = vmatpush1.msra.mxu0 %v935
        %3256 = vmatprep.subr.mxu0 0.0
        %3257 = vmatpush1.msra.mxu0 %v936
        %3258 = vmatprep.subr.mxu0 0.0
        %3259 = vmatpush1.msra.mxu0 %v937
        %3260 = vmatprep.subr.mxu0 0.0
        %3261 = vmatpush1.msra.mxu0 %v938
        %3262 = vmatprep.subr.mxu0 0.0
        %3263 = vmatpush1.msra.mxu0 %v939
        %3264 = vmatprep.subr.mxu0 0.0
        %3265 = vmatpush1.msra.mxu0 %v940
        %3266 = vmatprep.subr.mxu0 0.0
        %3267 = vmatpush1.msra.mxu0 %v941
        %3268 = vmatprep.subr.mxu0 0.0
        %3269 = vmatpush1.msra.mxu0 0.0
        %3270 = vmatprep.subr.mxu0 0.0
        %3271 = vmatpush1.msra.mxu0 0.0
        %3272 = vmatprep.subr.mxu0 0.0
        %3273 = vmatpush1.msra.mxu0 0.0
        %3274 = vmatprep.subr.mxu0 0.0
        %3275 = vmatpush1.msra.mxu0 0.0
        %3276 = vmatprep.subr.mxu0 0.0
        %3277 = vmatpush1.msra.mxu0 0.0
        %3278 = vmatprep.subr.mxu0 0.0
        %3279 = vmatpush1.msra.mxu0 0.0
        %3280 = vmatprep.subr.mxu0 0.0
        %3281 = vmatpush1.msra.mxu0 0.0
        %3282 = vmatprep.subr.mxu0 0.0
        %3283 = vmatpush1.msra.mxu0 0.0
        %3284 = vmatprep.subr.mxu0 0.0
        %3285 = vmatpush1.msra.mxu0 0.0
        %3286 = vmatprep.subr.mxu0 0.0
        %3287 = vmatpush1.msra.mxu0 0.0
        %3288 = vmatprep.subr.mxu0 0.0
        %3289 = vmatpush1.msra.mxu0 0.0
        %3290 = vmatprep.subr.mxu0 0.0
        %3291 = vmatpush1.msra.mxu0 0.0
        %3292 = vmatprep.subr.mxu0 0.0
        %3293 = vmatpush1.msra.mxu0 0.0
        %3294 = vmatprep.subr.mxu0 0.0
        %3295 = vmatpush1.msra.mxu0 0.0
        %3296 = vmatprep.subr.mxu0 0.0
        %3297 = vmatpush1.msra.mxu0 0.0
        %3298 = vmatprep.subr.mxu0 0.0
        %3299 = vmatpush1.msra.mxu0 0.0
        %3300 = vmatprep.mubr.f32.mxu0 0.0
        %3301 = vmatmul.mubr.f32.gmra.mrb[0].mxu0 %v3220
        %v3302 = vpop.f32.mrb[0].mxu0
        %v3303 = vadd.f32 0.0, %v3302
        %v3304 = vpop.f32.mrb[0].mxu0
        %3305 = vmatprep.mubr.f32.mxu0 0.0
        %3306 = vmatmul.mubr.f32.gmra.mrb[0].mxu0 %v3221
        %v3307 = vpop.f32.mrb[0].mxu0
        %v3308 = vadd.f32 0.0, %v3307
        %v3309 = vpop.f32.mrb[0].mxu0
        %3310 = vmatprep.mubr.f32.mxu0 0.0
        %3311 = vmatmul.mubr.f32.gmra.mrb[0].mxu0 %v3222
        %v3312 = vpop.f32.mrb[0].mxu0
        %v3313 = vadd.f32 0.0, %v3312
        %v3314 = vpop.f32.mrb[0].mxu0
        %3315 = vmatprep.mubr.f32.mxu0 0.0
        %3316 = vmatmul.mubr.f32.gmra.mrb[0].mxu0 %v3223
        %v3317 = vpop.f32.mrb[0].mxu0
        %v3318 = vadd.f32 0.0, %v3317
        %v3319 = vpop.f32.mrb[0].mxu0
        %3320 = vmatprep.mubr.f32.mxu0 0.0
        %3321 = vmatmul.mubr.f32.gmra.mrb[0].mxu0 %v3224
        %v3322 = vpop.f32.mrb[0].mxu0
        %v3323 = vadd.f32 0.0, %v3322
        %v3324 = vpop.f32.mrb[0].mxu0
        %3325 = vmatprep.mubr.f32.mxu0 0.0
        %3326 = vmatmul.mubr.f32.gmra.mrb[0].mxu0 %v3225
        %v3327 = vpop.f32.mrb[0].mxu0
        %v3328 = vadd.f32 0.0, %v3327
        %v3329 = vpop.f32.mrb[0].mxu0
        %3330 = vmatprep.mubr.f32.mxu0 0.0
        %3331 = vmatmul.mubr.f32.gmra.mrb[0].mxu0 %v3226
        %v3332 = vpop.f32.mrb[0].mxu0
        %v3333 = vadd.f32 0.0, %v3332
        %v3334 = vpop.f32.mrb[0].mxu0
        %3335 = vmatprep.mubr.f32.mxu0 0.0
        %3336 = vmatmul.mubr.f32.gmra.mrb[0].mxu0 %v3227
        %v3337 = vpop.f32.mrb[0].mxu0
        %v3338 = vadd.f32 0.0, %v3337
        %v3339 = vpop.f32.mrb[0].mxu0
        %3340 = vmatprep.mubr.f32.mxu0 0.0
        %3341 = vmatmul.mubr.f32.gmra.mrb[0].mxu0 %v3228
        %v3342 = vpop.f32.mrb[0].mxu0
        %v3343 = vadd.f32 0.0, %v3342
        %v3344 = vpop.f32.mrb[0].mxu0
        %3345 = vmatprep.mubr.f32.mxu0 0.0
        %3346 = vmatmul.mubr.f32.gmra.mrb[0].mxu0 %v3229
        %v3347 = vpop.f32.mrb[0].mxu0
        %v3348 = vadd.f32 0.0, %v3347
        %v3349 = vpop.f32.mrb[0].mxu0
        %3350 = vmatprep.mubr.f32.mxu0 0.0
        %3351 = vmatmul.mubr.f32.gmra.mrb[0].mxu0 %v3230
        %v3352 = vpop.f32.mrb[0].mxu0
        %v3353 = vadd.f32 0.0, %v3352
        %v3354 = vpop.f32.mrb[0].mxu0
        %3355 = vmatprep.mubr.f32.mxu0 0.0
        %3356 = vmatmul.mubr.f32.gmra.mrb[0].mxu0 %v3231
        %v3357 = vpop.f32.mrb[0].mxu0
        %v3358 = vadd.f32 0.0, %v3357
        %v3359 = vpop.f32.mrb[0].mxu0
        %3360 = vmatprep.mubr.f32.mxu0 0.0
        %3361 = vmatmul.mubr.f32.gmra.mrb[0].mxu0 %v3232
        %v3362 = vpop.f32.mrb[0].mxu0
        %v3363 = vadd.f32 0.0, %v3362
        %v3364 = vpop.f32.mrb[0].mxu0
        %3365 = vmatprep.mubr.f32.mxu0 0.0
        %3366 = vmatmul.mubr.f32.gmra.mrb[0].mxu0 %v3233
        %v3367 = vpop.f32.mrb[0].mxu0
        %v3368 = vadd.f32 0.0, %v3367
        %v3369 = vpop.f32.mrb[0].mxu0
        %3370 = vmatprep.mubr.f32.mxu0 0.0
        %3371 = vmatmul.mubr.f32.gmra.mrb[0].mxu0 %v3234
        %v3372 = vpop.f32.mrb[0].mxu0
        %v3373 = vadd.f32 0.0, %v3372
        %v3374 = vpop.f32.mrb[0].mxu0
        %3375 = vmatprep.mubr.f32.mxu0 0.0
        %3376 = vmatmul.mubr.f32.gmra.mrb[0].mxu0 %v3235
        %v3377 = vpop.f32.mrb[0].mxu0
        %v3378 = vadd.f32 0.0, %v3377
        %v3379 = vpop.f32.mrb[0].mxu0
        %3380 = vdwg.mxu0
        %v3381 = vmax.f32 %v2884, %v3303
        %v3382 = vmax.f32 %v2885, %v3308
        %v3383 = vmax.f32 %v2886, %v3313
        %v3384 = vmax.f32 %v2887, %v3318
        %v3385 = vmax.f32 %v2888, %v3323
        %v3386 = vmax.f32 %v2889, %v3328
        %v3387 = vmax.f32 %v2890, %v3333
        %v3388 = vmax.f32 %v2891, %v3338
        %v3389 = vmax.f32 %v2892, %v3343
        %v3390 = vmax.f32 %v2893, %v3348
        %v3391 = vmax.f32 %v2894, %v3353
        %v3392 = vmax.f32 %v2895, %v3358
        %v3393 = vmax.f32 %v2896, %v3363
        %v3394 = vmax.f32 %v2897, %v3368
        %v3395 = vmax.f32 %v2898, %v3373
        %v3396 = vmax.f32 %v2899, %v3378
        %v3397 = vsel %vm3204, -inf, %v2900
        %v3398 = vsel %vm3205, -inf, %v2901
        %v3399 = vsel %vm3206, -inf, %v2902
        %v3400 = vsel %vm3207, -inf, %v2903
        %v3401 = vsel %vm3208, -inf, %v2904
        %v3402 = vsel %vm3209, -inf, %v2905
        %v3403 = vsel %vm3210, -inf, %v2906
        %v3404 = vsel %vm3211, -inf, %v2907
        %v3405 = vsel %vm3212, -inf, %v2908
        %v3406 = vsel %vm3213, -inf, %v2909
        %v3407 = vsel %vm3214, -inf, %v2910
        %v3408 = vsel %vm3215, -inf, %v2911
        %v3409 = vsel %vm3216, -inf, %v2912
        %v3410 = vsel %vm3217, -inf, %v2913
        %v3411 = vsel %vm3218, -inf, %v2914
        %v3412 = vsel %vm3219, -inf, %v2915
        %3413 = vmax.xlane.f32.xlu0 %v3397
        %v3414 = vpop.xlane.xlu0 %3413
        %3415 = vmax.xlane.f32.xlu0 %v3398
        %v3416 = vpop.xlane.xlu0 %3415
        %3417 = vmax.xlane.f32.xlu0 %v3399
        %v3418 = vpop.xlane.xlu0 %3417
        %3419 = vmax.xlane.f32.xlu0 %v3400
        %v3420 = vpop.xlane.xlu0 %3419
        %3421 = vmax.xlane.f32.xlu0 %v3401
        %v3422 = vpop.xlane.xlu0 %3421
        %3423 = vmax.xlane.f32.xlu0 %v3402
        %v3424 = vpop.xlane.xlu0 %3423
        %3425 = vmax.xlane.f32.xlu0 %v3403
        %v3426 = vpop.xlane.xlu0 %3425
        %3427 = vmax.xlane.f32.xlu0 %v3404
        %v3428 = vpop.xlane.xlu0 %3427
        %3429 = vmax.xlane.f32.xlu0 %v3405
        %v3430 = vpop.xlane.xlu0 %3429
        %3431 = vmax.xlane.f32.xlu0 %v3406
        %v3432 = vpop.xlane.xlu0 %3431
        %3433 = vmax.xlane.f32.xlu0 %v3407
        %v3434 = vpop.xlane.xlu0 %3433
        %3435 = vmax.xlane.f32.xlu0 %v3408
        %v3436 = vpop.xlane.xlu0 %3435
        %3437 = vmax.xlane.f32.xlu0 %v3409
        %v3438 = vpop.xlane.xlu0 %3437
        %3439 = vmax.xlane.f32.xlu0 %v3410
        %v3440 = vpop.xlane.xlu0 %3439
        %3441 = vmax.xlane.f32.xlu0 %v3411
        %v3442 = vpop.xlane.xlu0 %3441
        %3443 = vmax.xlane.f32.xlu0 %v3412
        %v3444 = vpop.xlane.xlu0 %3443
        %vm3445 = vcmp.eq.f32.partialorder %v3397, %v3414
        %vm3446 = vcmp.eq.f32.partialorder %v3398, %v3416
        %vm3447 = vcmp.eq.f32.partialorder %v3399, %v3418
        %vm3448 = vcmp.eq.f32.partialorder %v3400, %v3420
        %vm3449 = vcmp.eq.f32.partialorder %v3401, %v3422
        %vm3450 = vcmp.eq.f32.partialorder %v3402, %v3424
        %vm3451 = vcmp.eq.f32.partialorder %v3403, %v3426
        %vm3452 = vcmp.eq.f32.partialorder %v3404, %v3428
        %vm3453 = vcmp.eq.f32.partialorder %v3405, %v3430
        %vm3454 = vcmp.eq.f32.partialorder %v3406, %v3432
        %vm3455 = vcmp.eq.f32.partialorder %v3407, %v3434
        %vm3456 = vcmp.eq.f32.partialorder %v3408, %v3436
        %vm3457 = vcmp.eq.f32.partialorder %v3409, %v3438
        %vm3458 = vcmp.eq.f32.partialorder %v3410, %v3440
        %vm3459 = vcmp.eq.f32.partialorder %v3411, %v3442
        %vm3460 = vcmp.eq.f32.partialorder %v3412, %v3444
        %v3461 = vsel %vm3445, %v943, 128
        %v3462 = vsel %vm3446, %v943, 128
        %v3463 = vsel %vm3447, %v943, 128
        %v3464 = vsel %vm3448, %v943, 128
        %v3465 = vsel %vm3449, %v943, 128
        %v3466 = vsel %vm3450, %v943, 128
        %v3467 = vsel %vm3451, %v943, 128
        %v3468 = vsel %vm3452, %v943, 128
        %v3469 = vsel %vm3453, %v943, 128
        %v3470 = vsel %vm3454, %v943, 128
        %v3471 = vsel %vm3455, %v943, 128
        %v3472 = vsel %vm3456, %v943, 128
        %v3473 = vsel %vm3457, %v943, 128
        %v3474 = vsel %vm3458, %v943, 128
        %v3475 = vsel %vm3459, %v943, 128
        %v3476 = vsel %vm3460, %v943, 128
        %v3477 = vand.u32 %v3461, 65535
        %v3478 = vshra.s32 %v3461, 16
        %v3479 = vcvt.s32.f32 %v3477
        %v3480 = vcvt.s32.f32 %v3478
        %3481 = vmin.xlane.f32.xlu0 %v3480
        %v3482 = vpop.xlane.xlu0 %3481
        %vm3483 = vcmp.eq.f32.partialorder %v3480, %v3482
        %v3484 = vsel %vm3483, %v3479, inf
        %3485 = vmin.xlane.f32.xlu0 %v3484
        %v3486 = vpop.xlane.xlu0 %3485
        %v3487 = vcvt.f32.s32 %v3486
        %v3488 = vcvt.f32.s32 %v3482
        %v3489 = vshll.u32 %v3488, 16
        %v3490 = vadd.s32 %v3489, %v3487
        %v3491 = vand.u32 %v3462, 65535
        %v3492 = vshra.s32 %v3462, 16
        %v3493 = vcvt.s32.f32 %v3491
        %v3494 = vcvt.s32.f32 %v3492
        %3495 = vmin.xlane.f32.xlu0 %v3494
        %v3496 = vpop.xlane.xlu0 %3495
        %vm3497 = vcmp.eq.f32.partialorder %v3494, %v3496
        %v3498 = vsel %vm3497, %v3493, inf
        %3499 = vmin.xlane.f32.xlu0 %v3498
        %v3500 = vpop.xlane.xlu0 %3499
        %v3501 = vcvt.f32.s32 %v3500
        %v3502 = vcvt.f32.s32 %v3496
        %v3503 = vshll.u32 %v3502, 16
        %v3504 = vadd.s32 %v3503, %v3501
        %v3505 = vand.u32 %v3463, 65535
        %v3506 = vshra.s32 %v3463, 16
        %v3507 = vcvt.s32.f32 %v3505
        %v3508 = vcvt.s32.f32 %v3506
        %3509 = vmin.xlane.f32.xlu0 %v3508
        %v3510 = vpop.xlane.xlu0 %3509
        %vm3511 = vcmp.eq.f32.partialorder %v3508, %v3510
        %v3512 = vsel %vm3511, %v3507, inf
        %3513 = vmin.xlane.f32.xlu0 %v3512
        %v3514 = vpop.xlane.xlu0 %3513
        %v3515 = vcvt.f32.s32 %v3514
        %v3516 = vcvt.f32.s32 %v3510
        %v3517 = vshll.u32 %v3516, 16
        %v3518 = vadd.s32 %v3517, %v3515
        %v3519 = vand.u32 %v3464, 65535
        %v3520 = vshra.s32 %v3464, 16
        %v3521 = vcvt.s32.f32 %v3519
        %v3522 = vcvt.s32.f32 %v3520
        %3523 = vmin.xlane.f32.xlu0 %v3522
        %v3524 = vpop.xlane.xlu0 %3523
        %vm3525 = vcmp.eq.f32.partialorder %v3522, %v3524
        %v3526 = vsel %vm3525, %v3521, inf
        %3527 = vmin.xlane.f32.xlu0 %v3526
        %v3528 = vpop.xlane.xlu0 %3527
        %v3529 = vcvt.f32.s32 %v3528
        %v3530 = vcvt.f32.s32 %v3524
        %v3531 = vshll.u32 %v3530, 16
        %v3532 = vadd.s32 %v3531, %v3529
        %v3533 = vand.u32 %v3465, 65535
        %v3534 = vshra.s32 %v3465, 16
        %v3535 = vcvt.s32.f32 %v3533
        %v3536 = vcvt.s32.f32 %v3534
        %3537 = vmin.xlane.f32.xlu0 %v3536
        %v3538 = vpop.xlane.xlu0 %3537
        %vm3539 = vcmp.eq.f32.partialorder %v3536, %v3538
        %v3540 = vsel %vm3539, %v3535, inf
        %3541 = vmin.xlane.f32.xlu0 %v3540
        %v3542 = vpop.xlane.xlu0 %3541
        %v3543 = vcvt.f32.s32 %v3542
        %v3544 = vcvt.f32.s32 %v3538
        %v3545 = vshll.u32 %v3544, 16
        %v3546 = vadd.s32 %v3545, %v3543
        %v3547 = vand.u32 %v3466, 65535
        %v3548 = vshra.s32 %v3466, 16
        %v3549 = vcvt.s32.f32 %v3547
        %v3550 = vcvt.s32.f32 %v3548
        %3551 = vmin.xlane.f32.xlu0 %v3550
        %v3552 = vpop.xlane.xlu0 %3551
        %vm3553 = vcmp.eq.f32.partialorder %v3550, %v3552
        %v3554 = vsel %vm3553, %v3549, inf
        %3555 = vmin.xlane.f32.xlu0 %v3554
        %v3556 = vpop.xlane.xlu0 %3555
        %v3557 = vcvt.f32.s32 %v3556
        %v3558 = vcvt.f32.s32 %v3552
        %v3559 = vshll.u32 %v3558, 16
        %v3560 = vadd.s32 %v3559, %v3557
        %v3561 = vand.u32 %v3467, 65535
        %v3562 = vshra.s32 %v3467, 16
        %v3563 = vcvt.s32.f32 %v3561
        %v3564 = vcvt.s32.f32 %v3562
        %3565 = vmin.xlane.f32.xlu0 %v3564
        %v3566 = vpop.xlane.xlu0 %3565
        %vm3567 = vcmp.eq.f32.partialorder %v3564, %v3566
        %v3568 = vsel %vm3567, %v3563, inf
        %3569 = vmin.xlane.f32.xlu0 %v3568
        %v3570 = vpop.xlane.xlu0 %3569
        %v3571 = vcvt.f32.s32 %v3570
        %v3572 = vcvt.f32.s32 %v3566
        %v3573 = vshll.u32 %v3572, 16
        %v3574 = vadd.s32 %v3573, %v3571
        %v3575 = vand.u32 %v3468, 65535
        %v3576 = vshra.s32 %v3468, 16
        %v3577 = vcvt.s32.f32 %v3575
        %v3578 = vcvt.s32.f32 %v3576
        %3579 = vmin.xlane.f32.xlu0 %v3578
        %v3580 = vpop.xlane.xlu0 %3579
        %vm3581 = vcmp.eq.f32.partialorder %v3578, %v3580
        %v3582 = vsel %vm3581, %v3577, inf
        %3583 = vmin.xlane.f32.xlu0 %v3582
        %v3584 = vpop.xlane.xlu0 %3583
        %v3585 = vcvt.f32.s32 %v3584
        %v3586 = vcvt.f32.s32 %v3580
        %v3587 = vshll.u32 %v3586, 16
        %v3588 = vadd.s32 %v3587, %v3585
        %v3589 = vand.u32 %v3469, 65535
        %v3590 = vshra.s32 %v3469, 16
        %v3591 = vcvt.s32.f32 %v3589
        %v3592 = vcvt.s32.f32 %v3590
        %3593 = vmin.xlane.f32.xlu0 %v3592
        %v3594 = vpop.xlane.xlu0 %3593
        %vm3595 = vcmp.eq.f32.partialorder %v3592, %v3594
        %v3596 = vsel %vm3595, %v3591, inf
        %3597 = vmin.xlane.f32.xlu0 %v3596
        %v3598 = vpop.xlane.xlu0 %3597
        %v3599 = vcvt.f32.s32 %v3598
        %v3600 = vcvt.f32.s32 %v3594
        %v3601 = vshll.u32 %v3600, 16
        %v3602 = vadd.s32 %v3601, %v3599
        %v3603 = vand.u32 %v3470, 65535
        %v3604 = vshra.s32 %v3470, 16
        %v3605 = vcvt.s32.f32 %v3603
        %v3606 = vcvt.s32.f32 %v3604
        %3607 = vmin.xlane.f32.xlu0 %v3606
        %v3608 = vpop.xlane.xlu0 %3607
        %vm3609 = vcmp.eq.f32.partialorder %v3606, %v3608
        %v3610 = vsel %vm3609, %v3605, inf
        %3611 = vmin.xlane.f32.xlu0 %v3610
        %v3612 = vpop.xlane.xlu0 %3611
        %v3613 = vcvt.f32.s32 %v3612
        %v3614 = vcvt.f32.s32 %v3608
        %v3615 = vshll.u32 %v3614, 16
        %v3616 = vadd.s32 %v3615, %v3613
        %v3617 = vand.u32 %v3471, 65535
        %v3618 = vshra.s32 %v3471, 16
        %v3619 = vcvt.s32.f32 %v3617
        %v3620 = vcvt.s32.f32 %v3618
        %3621 = vmin.xlane.f32.xlu0 %v3620
        %v3622 = vpop.xlane.xlu0 %3621
        %vm3623 = vcmp.eq.f32.partialorder %v3620, %v3622
        %v3624 = vsel %vm3623, %v3619, inf
        %3625 = vmin.xlane.f32.xlu0 %v3624
        %v3626 = vpop.xlane.xlu0 %3625
        %v3627 = vcvt.f32.s32 %v3626
        %v3628 = vcvt.f32.s32 %v3622
        %v3629 = vshll.u32 %v3628, 16
        %v3630 = vadd.s32 %v3629, %v3627
        %v3631 = vand.u32 %v3472, 65535
        %v3632 = vshra.s32 %v3472, 16
        %v3633 = vcvt.s32.f32 %v3631
        %v3634 = vcvt.s32.f32 %v3632
        %3635 = vmin.xlane.f32.xlu0 %v3634
        %v3636 = vpop.xlane.xlu0 %3635
        %vm3637 = vcmp.eq.f32.partialorder %v3634, %v3636
        %v3638 = vsel %vm3637, %v3633, inf
        %3639 = vmin.xlane.f32.xlu0 %v3638
        %v3640 = vpop.xlane.xlu0 %3639
        %v3641 = vcvt.f32.s32 %v3640
        %v3642 = vcvt.f32.s32 %v3636
        %v3643 = vshll.u32 %v3642, 16
        %v3644 = vadd.s32 %v3643, %v3641
        %v3645 = vand.u32 %v3473, 65535
        %v3646 = vshra.s32 %v3473, 16
        %v3647 = vcvt.s32.f32 %v3645
        %v3648 = vcvt.s32.f32 %v3646
        %3649 = vmin.xlane.f32.xlu0 %v3648
        %v3650 = vpop.xlane.xlu0 %3649
        %vm3651 = vcmp.eq.f32.partialorder %v3648, %v3650
        %v3652 = vsel %vm3651, %v3647, inf
        %3653 = vmin.xlane.f32.xlu0 %v3652
        %v3654 = vpop.xlane.xlu0 %3653
        %v3655 = vcvt.f32.s32 %v3654
        %v3656 = vcvt.f32.s32 %v3650
        %v3657 = vshll.u32 %v3656, 16
        %v3658 = vadd.s32 %v3657, %v3655
        %v3659 = vand.u32 %v3474, 65535
        %v3660 = vshra.s32 %v3474, 16
        %v3661 = vcvt.s32.f32 %v3659
        %v3662 = vcvt.s32.f32 %v3660
        %3663 = vmin.xlane.f32.xlu0 %v3662
        %v3664 = vpop.xlane.xlu0 %3663
        %vm3665 = vcmp.eq.f32.partialorder %v3662, %v3664
        %v3666 = vsel %vm3665, %v3661, inf
        %3667 = vmin.xlane.f32.xlu0 %v3666
        %v3668 = vpop.xlane.xlu0 %3667
        %v3669 = vcvt.f32.s32 %v3668
        %v3670 = vcvt.f32.s32 %v3664
        %v3671 = vshll.u32 %v3670, 16
        %v3672 = vadd.s32 %v3671, %v3669
        %v3673 = vand.u32 %v3475, 65535
        %v3674 = vshra.s32 %v3475, 16
        %v3675 = vcvt.s32.f32 %v3673
        %v3676 = vcvt.s32.f32 %v3674
        %3677 = vmin.xlane.f32.xlu0 %v3676
        %v3678 = vpop.xlane.xlu0 %3677
        %vm3679 = vcmp.eq.f32.partialorder %v3676, %v3678
        %v3680 = vsel %vm3679, %v3675, inf
        %3681 = vmin.xlane.f32.xlu0 %v3680
        %v3682 = vpop.xlane.xlu0 %3681
        %v3683 = vcvt.f32.s32 %v3682
        %v3684 = vcvt.f32.s32 %v3678
        %v3685 = vshll.u32 %v3684, 16
        %v3686 = vadd.s32 %v3685, %v3683
        %v3687 = vand.u32 %v3476, 65535
        %v3688 = vshra.s32 %v3476, 16
        %v3689 = vcvt.s32.f32 %v3687
        %v3690 = vcvt.s32.f32 %v3688
        %3691 = vmin.xlane.f32.xlu0 %v3690
        %v3692 = vpop.xlane.xlu0 %3691
        %vm3693 = vcmp.eq.f32.partialorder %v3690, %v3692
        %v3694 = vsel %vm3693, %v3689, inf
        %3695 = vmin.xlane.f32.xlu0 %v3694
        %v3696 = vpop.xlane.xlu0 %3695
        %v3697 = vcvt.f32.s32 %v3696
        %v3698 = vcvt.f32.s32 %v3692
        %v3699 = vshll.u32 %v3698, 16
        %v3700 = vadd.s32 %v3699, %v3697
        %vm3701 = vcmp.eq.s32.totalorder %v943, %v3490
        %vm3702 = vcmp.eq.s32.totalorder %v943, %v3504
        %vm3703 = vcmp.eq.s32.totalorder %v943, %v3518
        %vm3704 = vcmp.eq.s32.totalorder %v943, %v3532
        %vm3705 = vcmp.eq.s32.totalorder %v943, %v3546
        %vm3706 = vcmp.eq.s32.totalorder %v943, %v3560
        %vm3707 = vcmp.eq.s32.totalorder %v943, %v3574
        %vm3708 = vcmp.eq.s32.totalorder %v943, %v3588
        %vm3709 = vcmp.eq.s32.totalorder %v943, %v3602
        %vm3710 = vcmp.eq.s32.totalorder %v943, %v3616
        %vm3711 = vcmp.eq.s32.totalorder %v943, %v3630
        %vm3712 = vcmp.eq.s32.totalorder %v943, %v3644
        %vm3713 = vcmp.eq.s32.totalorder %v943, %v3658
        %vm3714 = vcmp.eq.s32.totalorder %v943, %v3672
        %vm3715 = vcmp.eq.s32.totalorder %v943, %v3686
        %vm3716 = vcmp.eq.s32.totalorder %v943, %v3700
        %v3717 = vsel %vm3701, 1.0, 0.0
        %v3718 = vsel %vm3702, 1.0, 0.0
        %v3719 = vsel %vm3703, 1.0, 0.0
        %v3720 = vsel %vm3704, 1.0, 0.0
        %v3721 = vsel %vm3705, 1.0, 0.0
        %v3722 = vsel %vm3706, 1.0, 0.0
        %v3723 = vsel %vm3707, 1.0, 0.0
        %v3724 = vsel %vm3708, 1.0, 0.0
        %v3725 = vsel %vm3709, 1.0, 0.0
        %v3726 = vsel %vm3710, 1.0, 0.0
        %v3727 = vsel %vm3711, 1.0, 0.0
        %v3728 = vsel %vm3712, 1.0, 0.0
        %v3729 = vsel %vm3713, 1.0, 0.0
        %v3730 = vsel %vm3714, 1.0, 0.0
        %v3731 = vsel %vm3715, 1.0, 0.0
        %v3732 = vsel %vm3716, 1.0, 0.0
        %3733 = vmatprep.subr.mxu0 0.0
        %3734 = vmatpush1.msra.mxu0 %v926
        %3735 = vmatprep.subr.mxu0 0.0
        %3736 = vmatpush1.msra.mxu0 %v927
        %3737 = vmatprep.subr.mxu0 0.0
        %3738 = vmatpush1.msra.mxu0 %v928
        %3739 = vmatprep.subr.mxu0 0.0
        %3740 = vmatpush1.msra.mxu0 %v929
        %3741 = vmatprep.subr.mxu0 0.0
        %3742 = vmatpush1.msra.mxu0 %v930
        %3743 = vmatprep.subr.mxu0 0.0
        %3744 = vmatpush1.msra.mxu0 %v931
        %3745 = vmatprep.subr.mxu0 0.0
        %3746 = vmatpush1.msra.mxu0 %v932
        %3747 = vmatprep.subr.mxu0 0.0
        %3748 = vmatpush1.msra.mxu0 %v933
        %3749 = vmatprep.subr.mxu0 0.0
        %3750 = vmatpush1.msra.mxu0 %v934
        %3751 = vmatprep.subr.mxu0 0.0
        %3752 = vmatpush1.msra.mxu0 %v935
        %3753 = vmatprep.subr.mxu0 0.0
        %3754 = vmatpush1.msra.mxu0 %v936
        %3755 = vmatprep.subr.mxu0 0.0
        %3756 = vmatpush1.msra.mxu0 %v937
        %3757 = vmatprep.subr.mxu0 0.0
        %3758 = vmatpush1.msra.mxu0 %v938
        %3759 = vmatprep.subr.mxu0 0.0
        %3760 = vmatpush1.msra.mxu0 %v939
        %3761 = vmatprep.subr.mxu0 0.0
        %3762 = vmatpush1.msra.mxu0 %v940
        %3763 = vmatprep.subr.mxu0 0.0
        %3764 = vmatpush1.msra.mxu0 %v941
        %3765 = vmatprep.subr.mxu0 0.0
        %3766 = vmatpush1.msra.mxu0 0.0
        %3767 = vmatprep.subr.mxu0 0.0
        %3768 = vmatpush1.msra.mxu0 0.0
        %3769 = vmatprep.subr.mxu0 0.0
        %3770 = vmatpush1.msra.mxu0 0.0
        %3771 = vmatprep.subr.mxu0 0.0
        %3772 = vmatpush1.msra.mxu0 0.0
        %3773 = vmatprep.subr.mxu0 0.0
        %3774 = vmatpush1.msra.mxu0 0.0
        %3775 = vmatprep.subr.mxu0 0.0
        %3776 = vmatpush1.msra.mxu0 0.0
        %3777 = vmatprep.subr.mxu0 0.0
        %3778 = vmatpush1.msra.mxu0 0.0
        %3779 = vmatprep.subr.mxu0 0.0
        %3780 = vmatpush1.msra.mxu0 0.0
        %3781 = vmatprep.subr.mxu0 0.0
        %3782 = vmatpush1.msra.mxu0 0.0
        %3783 = vmatprep.subr.mxu0 0.0
        %3784 = vmatpush1.msra.mxu0 0.0
        %3785 = vmatprep.subr.mxu0 0.0
        %3786 = vmatpush1.msra.mxu0 0.0
        %3787 = vmatprep.subr.mxu0 0.0
        %3788 = vmatpush1.msra.mxu0 0.0
        %3789 = vmatprep.subr.mxu0 0.0
        %3790 = vmatpush1.msra.mxu0 0.0
        %3791 = vmatprep.subr.mxu0 0.0
        %3792 = vmatpush1.msra.mxu0 0.0
        %3793 = vmatprep.subr.mxu0 0.0
        %3794 = vmatpush1.msra.mxu0 0.0
        %3795 = vmatprep.subr.mxu0 0.0
        %3796 = vmatpush1.msra.mxu0 0.0
        %3797 = vmatprep.mubr.f32.mxu0 0.0
        %3798 = vmatmul.mubr.f32.gmra.mrb[0].mxu0 %v3717
        %v3799 = vpop.f32.mrb[0].mxu0
        %v3800 = vadd.f32 0.0, %v3799
        %v3801 = vpop.f32.mrb[0].mxu0
        %3802 = vmatprep.mubr.f32.mxu0 0.0
        %3803 = vmatmul.mubr.f32.gmra.mrb[0].mxu0 %v3718
        %v3804 = vpop.f32.mrb[0].mxu0
        %v3805 = vadd.f32 0.0, %v3804
        %v3806 = vpop.f32.mrb[0].mxu0
        %3807 = vmatprep.mubr.f32.mxu0 0.0
        %3808 = vmatmul.mubr.f32.gmra.mrb[0].mxu0 %v3719
        %v3809 = vpop.f32.mrb[0].mxu0
        %v3810 = vadd.f32 0.0, %v3809
        %v3811 = vpop.f32.mrb[0].mxu0
        %3812 = vmatprep.mubr.f32.mxu0 0.0
        %3813 = vmatmul.mubr.f32.gmra.mrb[0].mxu0 %v3720
        %v3814 = vpop.f32.mrb[0].mxu0
        %v3815 = vadd.f32 0.0, %v3814
        %v3816 = vpop.f32.mrb[0].mxu0
        %3817 = vmatprep.mubr.f32.mxu0 0.0
        %3818 = vmatmul.mubr.f32.gmra.mrb[0].mxu0 %v3721
        %v3819 = vpop.f32.mrb[0].mxu0
        %v3820 = vadd.f32 0.0, %v3819
        %v3821 = vpop.f32.mrb[0].mxu0
        %3822 = vmatprep.mubr.f32.mxu0 0.0
        %3823 = vmatmul.mubr.f32.gmra.mrb[0].mxu0 %v3722
        %v3824 = vpop.f32.mrb[0].mxu0
        %v3825 = vadd.f32 0.0, %v3824
        %v3826 = vpop.f32.mrb[0].mxu0
        %3827 = vmatprep.mubr.f32.mxu0 0.0
        %3828 = vmatmul.mubr.f32.gmra.mrb[0].mxu0 %v3723
        %v3829 = vpop.f32.mrb[0].mxu0
        %v3830 = vadd.f32 0.0, %v3829
        %v3831 = vpop.f32.mrb[0].mxu0
        %3832 = vmatprep.mubr.f32.mxu0 0.0
        %3833 = vmatmul.mubr.f32.gmra.mrb[0].mxu0 %v3724
        %v3834 = vpop.f32.mrb[0].mxu0
        %v3835 = vadd.f32 0.0, %v3834
        %v3836 = vpop.f32.mrb[0].mxu0
        %3837 = vmatprep.mubr.f32.mxu0 0.0
        %3838 = vmatmul.mubr.f32.gmra.mrb[0].mxu0 %v3725
        %v3839 = vpop.f32.mrb[0].mxu0
        %v3840 = vadd.f32 0.0, %v3839
        %v3841 = vpop.f32.mrb[0].mxu0
        %3842 = vmatprep.mubr.f32.mxu0 0.0
        %3843 = vmatmul.mubr.f32.gmra.mrb[0].mxu0 %v3726
        %v3844 = vpop.f32.mrb[0].mxu0
        %v3845 = vadd.f32 0.0, %v3844
        %v3846 = vpop.f32.mrb[0].mxu0
        %3847 = vmatprep.mubr.f32.mxu0 0.0
        %3848 = vmatmul.mubr.f32.gmra.mrb[0].mxu0 %v3727
        %v3849 = vpop.f32.mrb[0].mxu0
        %v3850 = vadd.f32 0.0, %v3849
        %v3851 = vpop.f32.mrb[0].mxu0
        %3852 = vmatprep.mubr.f32.mxu0 0.0
        %3853 = vmatmul.mubr.f32.gmra.mrb[0].mxu0 %v3728
        %v3854 = vpop.f32.mrb[0].mxu0
        %v3855 = vadd.f32 0.0, %v3854
        %v3856 = vpop.f32.mrb[0].mxu0
        %3857 = vmatprep.mubr.f32.mxu0 0.0
        %3858 = vmatmul.mubr.f32.gmra.mrb[0].mxu0 %v3729
        %v3859 = vpop.f32.mrb[0].mxu0
        %v3860 = vadd.f32 0.0, %v3859
        %v3861 = vpop.f32.mrb[0].mxu0
        %3862 = vmatprep.mubr.f32.mxu0 0.0
        %3863 = vmatmul.mubr.f32.gmra.mrb[0].mxu0 %v3730
        %v3864 = vpop.f32.mrb[0].mxu0
        %v3865 = vadd.f32 0.0, %v3864
        %v3866 = vpop.f32.mrb[0].mxu0
        %3867 = vmatprep.mubr.f32.mxu0 0.0
        %3868 = vmatmul.mubr.f32.gmra.mrb[0].mxu0 %v3731
        %v3869 = vpop.f32.mrb[0].mxu0
        %v3870 = vadd.f32 0.0, %v3869
        %v3871 = vpop.f32.mrb[0].mxu0
        %3872 = vmatprep.mubr.f32.mxu0 0.0
        %3873 = vmatmul.mubr.f32.gmra.mrb[0].mxu0 %v3732
        %v3874 = vpop.f32.mrb[0].mxu0
        %v3875 = vadd.f32 0.0, %v3874
        %v3876 = vpop.f32.mrb[0].mxu0
        %3877 = vdwg.mxu0
        %v3878 = vmax.f32 %v3381, %v3800
        %v3879 = vmax.f32 %v3382, %v3805
        %v3880 = vmax.f32 %v3383, %v3810
        %v3881 = vmax.f32 %v3384, %v3815
        %v3882 = vmax.f32 %v3385, %v3820
        %v3883 = vmax.f32 %v3386, %v3825
        %v3884 = vmax.f32 %v3387, %v3830
        %v3885 = vmax.f32 %v3388, %v3835
        %v3886 = vmax.f32 %v3389, %v3840
        %v3887 = vmax.f32 %v3390, %v3845
        %v3888 = vmax.f32 %v3391, %v3850
        %v3889 = vmax.f32 %v3392, %v3855
        %v3890 = vmax.f32 %v3393, %v3860
        %v3891 = vmax.f32 %v3394, %v3865
        %v3892 = vmax.f32 %v3395, %v3870
        %v3893 = vmax.f32 %v3396, %v3875
        %v3894 = vsel %vm3701, -inf, %v3397
        %v3895 = vsel %vm3702, -inf, %v3398
        %v3896 = vsel %vm3703, -inf, %v3399
        %v3897 = vsel %vm3704, -inf, %v3400
        %v3898 = vsel %vm3705, -inf, %v3401
        %v3899 = vsel %vm3706, -inf, %v3402
        %v3900 = vsel %vm3707, -inf, %v3403
        %v3901 = vsel %vm3708, -inf, %v3404
        %v3902 = vsel %vm3709, -inf, %v3405
        %v3903 = vsel %vm3710, -inf, %v3406
        %v3904 = vsel %vm3711, -inf, %v3407
        %v3905 = vsel %vm3712, -inf, %v3408
        %v3906 = vsel %vm3713, -inf, %v3409
        %v3907 = vsel %vm3714, -inf, %v3410
        %v3908 = vsel %vm3715, -inf, %v3411
        %v3909 = vsel %vm3716, -inf, %v3412
        %3910 = vmax.xlane.f32.xlu0 %v3894
        %v3911 = vpop.xlane.xlu0 %3910
        %3912 = vmax.xlane.f32.xlu0 %v3895
        %v3913 = vpop.xlane.xlu0 %3912
        %3914 = vmax.xlane.f32.xlu0 %v3896
        %v3915 = vpop.xlane.xlu0 %3914
        %3916 = vmax.xlane.f32.xlu0 %v3897
        %v3917 = vpop.xlane.xlu0 %3916
        %3918 = vmax.xlane.f32.xlu0 %v3898
        %v3919 = vpop.xlane.xlu0 %3918
        %3920 = vmax.xlane.f32.xlu0 %v3899
        %v3921 = vpop.xlane.xlu0 %3920
        %3922 = vmax.xlane.f32.xlu0 %v3900
        %v3923 = vpop.xlane.xlu0 %3922
        %3924 = vmax.xlane.f32.xlu0 %v3901
        %v3925 = vpop.xlane.xlu0 %3924
        %3926 = vmax.xlane.f32.xlu0 %v3902
        %v3927 = vpop.xlane.xlu0 %3926
        %3928 = vmax.xlane.f32.xlu0 %v3903
        %v3929 = vpop.xlane.xlu0 %3928
        %3930 = vmax.xlane.f32.xlu0 %v3904
        %v3931 = vpop.xlane.xlu0 %3930
        %3932 = vmax.xlane.f32.xlu0 %v3905
        %v3933 = vpop.xlane.xlu0 %3932
        %3934 = vmax.xlane.f32.xlu0 %v3906
        %v3935 = vpop.xlane.xlu0 %3934
        %3936 = vmax.xlane.f32.xlu0 %v3907
        %v3937 = vpop.xlane.xlu0 %3936
        %3938 = vmax.xlane.f32.xlu0 %v3908
        %v3939 = vpop.xlane.xlu0 %3938
        %3940 = vmax.xlane.f32.xlu0 %v3909
        %v3941 = vpop.xlane.xlu0 %3940
        %vm3942 = vcmp.eq.f32.partialorder %v3894, %v3911
        %vm3943 = vcmp.eq.f32.partialorder %v3895, %v3913
        %vm3944 = vcmp.eq.f32.partialorder %v3896, %v3915
        %vm3945 = vcmp.eq.f32.partialorder %v3897, %v3917
        %vm3946 = vcmp.eq.f32.partialorder %v3898, %v3919
        %vm3947 = vcmp.eq.f32.partialorder %v3899, %v3921
        %vm3948 = vcmp.eq.f32.partialorder %v3900, %v3923
        %vm3949 = vcmp.eq.f32.partialorder %v3901, %v3925
        %vm3950 = vcmp.eq.f32.partialorder %v3902, %v3927
        %vm3951 = vcmp.eq.f32.partialorder %v3903, %v3929
        %vm3952 = vcmp.eq.f32.partialorder %v3904, %v3931
        %vm3953 = vcmp.eq.f32.partialorder %v3905, %v3933
        %vm3954 = vcmp.eq.f32.partialorder %v3906, %v3935
        %vm3955 = vcmp.eq.f32.partialorder %v3907, %v3937
        %vm3956 = vcmp.eq.f32.partialorder %v3908, %v3939
        %vm3957 = vcmp.eq.f32.partialorder %v3909, %v3941
        %v3958 = vsel %vm3942, %v943, 128
        %v3959 = vsel %vm3943, %v943, 128
        %v3960 = vsel %vm3944, %v943, 128
        %v3961 = vsel %vm3945, %v943, 128
        %v3962 = vsel %vm3946, %v943, 128
        %v3963 = vsel %vm3947, %v943, 128
        %v3964 = vsel %vm3948, %v943, 128
        %v3965 = vsel %vm3949, %v943, 128
        %v3966 = vsel %vm3950, %v943, 128
        %v3967 = vsel %vm3951, %v943, 128
        %v3968 = vsel %vm3952, %v943, 128
        %v3969 = vsel %vm3953, %v943, 128
        %v3970 = vsel %vm3954, %v943, 128
        %v3971 = vsel %vm3955, %v943, 128
        %v3972 = vsel %vm3956, %v943, 128
        %v3973 = vsel %vm3957, %v943, 128
        %v3974 = vand.u32 %v3958, 65535
        %v3975 = vshra.s32 %v3958, 16
        %v3976 = vcvt.s32.f32 %v3974
        %v3977 = vcvt.s32.f32 %v3975
        %3978 = vmin.xlane.f32.xlu0 %v3977
        %v3979 = vpop.xlane.xlu0 %3978
        %vm3980 = vcmp.eq.f32.partialorder %v3977, %v3979
        %v3981 = vsel %vm3980, %v3976, inf
        %3982 = vmin.xlane.f32.xlu0 %v3981
        %v3983 = vpop.xlane.xlu0 %3982
        %v3984 = vcvt.f32.s32 %v3983
        %v3985 = vcvt.f32.s32 %v3979
        %v3986 = vshll.u32 %v3985, 16
        %v3987 = vadd.s32 %v3986, %v3984
        %v3988 = vand.u32 %v3959, 65535
        %v3989 = vshra.s32 %v3959, 16
        %v3990 = vcvt.s32.f32 %v3988
        %v3991 = vcvt.s32.f32 %v3989
        %3992 = vmin.xlane.f32.xlu0 %v3991
        %v3993 = vpop.xlane.xlu0 %3992
        %vm3994 = vcmp.eq.f32.partialorder %v3991, %v3993
        %v3995 = vsel %vm3994, %v3990, inf
        %3996 = vmin.xlane.f32.xlu0 %v3995
        %v3997 = vpop.xlane.xlu0 %3996
        %v3998 = vcvt.f32.s32 %v3997
        %v3999 = vcvt.f32.s32 %v3993
        %v4000 = vshll.u32 %v3999, 16
        %v4001 = vadd.s32 %v4000, %v3998
        %v4002 = vand.u32 %v3960, 65535
        %v4003 = vshra.s32 %v3960, 16
        %v4004 = vcvt.s32.f32 %v4002
        %v4005 = vcvt.s32.f32 %v4003
        %4006 = vmin.xlane.f32.xlu0 %v4005
        %v4007 = vpop.xlane.xlu0 %4006
        %vm4008 = vcmp.eq.f32.partialorder %v4005, %v4007
        %v4009 = vsel %vm4008, %v4004, inf
        %4010 = vmin.xlane.f32.xlu0 %v4009
        %v4011 = vpop.xlane.xlu0 %4010
        %v4012 = vcvt.f32.s32 %v4011
        %v4013 = vcvt.f32.s32 %v4007
        %v4014 = vshll.u32 %v4013, 16
        %v4015 = vadd.s32 %v4014, %v4012
        %v4016 = vand.u32 %v3961, 65535
        %v4017 = vshra.s32 %v3961, 16
        %v4018 = vcvt.s32.f32 %v4016
        %v4019 = vcvt.s32.f32 %v4017
        %4020 = vmin.xlane.f32.xlu0 %v4019
        %v4021 = vpop.xlane.xlu0 %4020
        %vm4022 = vcmp.eq.f32.partialorder %v4019, %v4021
        %v4023 = vsel %vm4022, %v4018, inf
        %4024 = vmin.xlane.f32.xlu0 %v4023
        %v4025 = vpop.xlane.xlu0 %4024
        %v4026 = vcvt.f32.s32 %v4025
        %v4027 = vcvt.f32.s32 %v4021
        %v4028 = vshll.u32 %v4027, 16
        %v4029 = vadd.s32 %v4028, %v4026
        %v4030 = vand.u32 %v3962, 65535
        %v4031 = vshra.s32 %v3962, 16
        %v4032 = vcvt.s32.f32 %v4030
        %v4033 = vcvt.s32.f32 %v4031
        %4034 = vmin.xlane.f32.xlu0 %v4033
        %v4035 = vpop.xlane.xlu0 %4034
        %vm4036 = vcmp.eq.f32.partialorder %v4033, %v4035
        %v4037 = vsel %vm4036, %v4032, inf
        %4038 = vmin.xlane.f32.xlu0 %v4037
        %v4039 = vpop.xlane.xlu0 %4038
        %v4040 = vcvt.f32.s32 %v4039
        %v4041 = vcvt.f32.s32 %v4035
        %v4042 = vshll.u32 %v4041, 16
        %v4043 = vadd.s32 %v4042, %v4040
        %v4044 = vand.u32 %v3963, 65535
        %v4045 = vshra.s32 %v3963, 16
        %v4046 = vcvt.s32.f32 %v4044
        %v4047 = vcvt.s32.f32 %v4045
        %4048 = vmin.xlane.f32.xlu0 %v4047
        %v4049 = vpop.xlane.xlu0 %4048
        %vm4050 = vcmp.eq.f32.partialorder %v4047, %v4049
        %v4051 = vsel %vm4050, %v4046, inf
        %4052 = vmin.xlane.f32.xlu0 %v4051
        %v4053 = vpop.xlane.xlu0 %4052
        %v4054 = vcvt.f32.s32 %v4053
        %v4055 = vcvt.f32.s32 %v4049
        %v4056 = vshll.u32 %v4055, 16
        %v4057 = vadd.s32 %v4056, %v4054
        %v4058 = vand.u32 %v3964, 65535
        %v4059 = vshra.s32 %v3964, 16
        %v4060 = vcvt.s32.f32 %v4058
        %v4061 = vcvt.s32.f32 %v4059
        %4062 = vmin.xlane.f32.xlu0 %v4061
        %v4063 = vpop.xlane.xlu0 %4062
        %vm4064 = vcmp.eq.f32.partialorder %v4061, %v4063
        %v4065 = vsel %vm4064, %v4060, inf
        %4066 = vmin.xlane.f32.xlu0 %v4065
        %v4067 = vpop.xlane.xlu0 %4066
        %v4068 = vcvt.f32.s32 %v4067
        %v4069 = vcvt.f32.s32 %v4063
        %v4070 = vshll.u32 %v4069, 16
        %v4071 = vadd.s32 %v4070, %v4068
        %v4072 = vand.u32 %v3965, 65535
        %v4073 = vshra.s32 %v3965, 16
        %v4074 = vcvt.s32.f32 %v4072
        %v4075 = vcvt.s32.f32 %v4073
        %4076 = vmin.xlane.f32.xlu0 %v4075
        %v4077 = vpop.xlane.xlu0 %4076
        %vm4078 = vcmp.eq.f32.partialorder %v4075, %v4077
        %v4079 = vsel %vm4078, %v4074, inf
        %4080 = vmin.xlane.f32.xlu0 %v4079
        %v4081 = vpop.xlane.xlu0 %4080
        %v4082 = vcvt.f32.s32 %v4081
        %v4083 = vcvt.f32.s32 %v4077
        %v4084 = vshll.u32 %v4083, 16
        %v4085 = vadd.s32 %v4084, %v4082
        %v4086 = vand.u32 %v3966, 65535
        %v4087 = vshra.s32 %v3966, 16
        %v4088 = vcvt.s32.f32 %v4086
        %v4089 = vcvt.s32.f32 %v4087
        %4090 = vmin.xlane.f32.xlu0 %v4089
        %v4091 = vpop.xlane.xlu0 %4090
        %vm4092 = vcmp.eq.f32.partialorder %v4089, %v4091
        %v4093 = vsel %vm4092, %v4088, inf
        %4094 = vmin.xlane.f32.xlu0 %v4093
        %v4095 = vpop.xlane.xlu0 %4094
        %v4096 = vcvt.f32.s32 %v4095
        %v4097 = vcvt.f32.s32 %v4091
        %v4098 = vshll.u32 %v4097, 16
        %v4099 = vadd.s32 %v4098, %v4096
        %v4100 = vand.u32 %v3967, 65535
        %v4101 = vshra.s32 %v3967, 16
        %v4102 = vcvt.s32.f32 %v4100
        %v4103 = vcvt.s32.f32 %v4101
        %4104 = vmin.xlane.f32.xlu0 %v4103
        %v4105 = vpop.xlane.xlu0 %4104
        %vm4106 = vcmp.eq.f32.partialorder %v4103, %v4105
        %v4107 = vsel %vm4106, %v4102, inf
        %4108 = vmin.xlane.f32.xlu0 %v4107
        %v4109 = vpop.xlane.xlu0 %4108
        %v4110 = vcvt.f32.s32 %v4109
        %v4111 = vcvt.f32.s32 %v4105
        %v4112 = vshll.u32 %v4111, 16
        %v4113 = vadd.s32 %v4112, %v4110
        %v4114 = vand.u32 %v3968, 65535
        %v4115 = vshra.s32 %v3968, 16
        %v4116 = vcvt.s32.f32 %v4114
        %v4117 = vcvt.s32.f32 %v4115
        %4118 = vmin.xlane.f32.xlu0 %v4117
        %v4119 = vpop.xlane.xlu0 %4118
        %vm4120 = vcmp.eq.f32.partialorder %v4117, %v4119
        %v4121 = vsel %vm4120, %v4116, inf
        %4122 = vmin.xlane.f32.xlu0 %v4121
        %v4123 = vpop.xlane.xlu0 %4122
        %v4124 = vcvt.f32.s32 %v4123
        %v4125 = vcvt.f32.s32 %v4119
        %v4126 = vshll.u32 %v4125, 16
        %v4127 = vadd.s32 %v4126, %v4124
        %v4128 = vand.u32 %v3969, 65535
        %v4129 = vshra.s32 %v3969, 16
        %v4130 = vcvt.s32.f32 %v4128
        %v4131 = vcvt.s32.f32 %v4129
        %4132 = vmin.xlane.f32.xlu0 %v4131
        %v4133 = vpop.xlane.xlu0 %4132
        %vm4134 = vcmp.eq.f32.partialorder %v4131, %v4133
        %v4135 = vsel %vm4134, %v4130, inf
        %4136 = vmin.xlane.f32.xlu0 %v4135
        %v4137 = vpop.xlane.xlu0 %4136
        %v4138 = vcvt.f32.s32 %v4137
        %v4139 = vcvt.f32.s32 %v4133
        %v4140 = vshll.u32 %v4139, 16
        %v4141 = vadd.s32 %v4140, %v4138
        %v4142 = vand.u32 %v3970, 65535
        %v4143 = vshra.s32 %v3970, 16
        %v4144 = vcvt.s32.f32 %v4142
        %v4145 = vcvt.s32.f32 %v4143
        %4146 = vmin.xlane.f32.xlu0 %v4145
        %v4147 = vpop.xlane.xlu0 %4146
        %vm4148 = vcmp.eq.f32.partialorder %v4145, %v4147
        %v4149 = vsel %vm4148, %v4144, inf
        %4150 = vmin.xlane.f32.xlu0 %v4149
        %v4151 = vpop.xlane.xlu0 %4150
        %v4152 = vcvt.f32.s32 %v4151
        %v4153 = vcvt.f32.s32 %v4147
        %v4154 = vshll.u32 %v4153, 16
        %v4155 = vadd.s32 %v4154, %v4152
        %v4156 = vand.u32 %v3971, 65535
        %v4157 = vshra.s32 %v3971, 16
        %v4158 = vcvt.s32.f32 %v4156
        %v4159 = vcvt.s32.f32 %v4157
        %4160 = vmin.xlane.f32.xlu0 %v4159
        %v4161 = vpop.xlane.xlu0 %4160
        %vm4162 = vcmp.eq.f32.partialorder %v4159, %v4161
        %v4163 = vsel %vm4162, %v4158, inf
        %4164 = vmin.xlane.f32.xlu0 %v4163
        %v4165 = vpop.xlane.xlu0 %4164
        %v4166 = vcvt.f32.s32 %v4165
        %v4167 = vcvt.f32.s32 %v4161
        %v4168 = vshll.u32 %v4167, 16
        %v4169 = vadd.s32 %v4168, %v4166
        %v4170 = vand.u32 %v3972, 65535
        %v4171 = vshra.s32 %v3972, 16
        %v4172 = vcvt.s32.f32 %v4170
        %v4173 = vcvt.s32.f32 %v4171
        %4174 = vmin.xlane.f32.xlu0 %v4173
        %v4175 = vpop.xlane.xlu0 %4174
        %vm4176 = vcmp.eq.f32.partialorder %v4173, %v4175
        %v4177 = vsel %vm4176, %v4172, inf
        %4178 = vmin.xlane.f32.xlu0 %v4177
        %v4179 = vpop.xlane.xlu0 %4178
        %v4180 = vcvt.f32.s32 %v4179
        %v4181 = vcvt.f32.s32 %v4175
        %v4182 = vshll.u32 %v4181, 16
        %v4183 = vadd.s32 %v4182, %v4180
        %v4184 = vand.u32 %v3973, 65535
        %v4185 = vshra.s32 %v3973, 16
        %v4186 = vcvt.s32.f32 %v4184
        %v4187 = vcvt.s32.f32 %v4185
        %4188 = vmin.xlane.f32.xlu0 %v4187
        %v4189 = vpop.xlane.xlu0 %4188
        %vm4190 = vcmp.eq.f32.partialorder %v4187, %v4189
        %v4191 = vsel %vm4190, %v4186, inf
        %4192 = vmin.xlane.f32.xlu0 %v4191
        %v4193 = vpop.xlane.xlu0 %4192
        %v4194 = vcvt.f32.s32 %v4193
        %v4195 = vcvt.f32.s32 %v4189
        %v4196 = vshll.u32 %v4195, 16
        %v4197 = vadd.s32 %v4196, %v4194
        %vm4198 = vcmp.eq.s32.totalorder %v943, %v3987
        %vm4199 = vcmp.eq.s32.totalorder %v943, %v4001
        %vm4200 = vcmp.eq.s32.totalorder %v943, %v4015
        %vm4201 = vcmp.eq.s32.totalorder %v943, %v4029
        %vm4202 = vcmp.eq.s32.totalorder %v943, %v4043
        %vm4203 = vcmp.eq.s32.totalorder %v943, %v4057
        %vm4204 = vcmp.eq.s32.totalorder %v943, %v4071
        %vm4205 = vcmp.eq.s32.totalorder %v943, %v4085
        %vm4206 = vcmp.eq.s32.totalorder %v943, %v4099
        %vm4207 = vcmp.eq.s32.totalorder %v943, %v4113
        %vm4208 = vcmp.eq.s32.totalorder %v943, %v4127
        %vm4209 = vcmp.eq.s32.totalorder %v943, %v4141
        %vm4210 = vcmp.eq.s32.totalorder %v943, %v4155
        %vm4211 = vcmp.eq.s32.totalorder %v943, %v4169
        %vm4212 = vcmp.eq.s32.totalorder %v943, %v4183
        %vm4213 = vcmp.eq.s32.totalorder %v943, %v4197
        %v4214 = vsel %vm4198, 1.0, 0.0
        %v4215 = vsel %vm4199, 1.0, 0.0
        %v4216 = vsel %vm4200, 1.0, 0.0
        %v4217 = vsel %vm4201, 1.0, 0.0
        %v4218 = vsel %vm4202, 1.0, 0.0
        %v4219 = vsel %vm4203, 1.0, 0.0
        %v4220 = vsel %vm4204, 1.0, 0.0
        %v4221 = vsel %vm4205, 1.0, 0.0
        %v4222 = vsel %vm4206, 1.0, 0.0
        %v4223 = vsel %vm4207, 1.0, 0.0
        %v4224 = vsel %vm4208, 1.0, 0.0
        %v4225 = vsel %vm4209, 1.0, 0.0
        %v4226 = vsel %vm4210, 1.0, 0.0
        %v4227 = vsel %vm4211, 1.0, 0.0
        %v4228 = vsel %vm4212, 1.0, 0.0
        %v4229 = vsel %vm4213, 1.0, 0.0
        %4230 = vmatprep.subr.mxu0 0.0
        %4231 = vmatpush1.msra.mxu0 %v926
        %4232 = vmatprep.subr.mxu0 0.0
        %4233 = vmatpush1.msra.mxu0 %v927
        %4234 = vmatprep.subr.mxu0 0.0
        %4235 = vmatpush1.msra.mxu0 %v928
        %4236 = vmatprep.subr.mxu0 0.0
        %4237 = vmatpush1.msra.mxu0 %v929
        %4238 = vmatprep.subr.mxu0 0.0
        %4239 = vmatpush1.msra.mxu0 %v930
        %4240 = vmatprep.subr.mxu0 0.0
        %4241 = vmatpush1.msra.mxu0 %v931
        %4242 = vmatprep.subr.mxu0 0.0
        %4243 = vmatpush1.msra.mxu0 %v932
        %4244 = vmatprep.subr.mxu0 0.0
        %4245 = vmatpush1.msra.mxu0 %v933
        %4246 = vmatprep.subr.mxu0 0.0
        %4247 = vmatpush1.msra.mxu0 %v934
        %4248 = vmatprep.subr.mxu0 0.0
        %4249 = vmatpush1.msra.mxu0 %v935
        %4250 = vmatprep.subr.mxu0 0.0
        %4251 = vmatpush1.msra.mxu0 %v936
        %4252 = vmatprep.subr.mxu0 0.0
        %4253 = vmatpush1.msra.mxu0 %v937
        %4254 = vmatprep.subr.mxu0 0.0
        %4255 = vmatpush1.msra.mxu0 %v938
        %4256 = vmatprep.subr.mxu0 0.0
        %4257 = vmatpush1.msra.mxu0 %v939
        %4258 = vmatprep.subr.mxu0 0.0
        %4259 = vmatpush1.msra.mxu0 %v940
        %4260 = vmatprep.subr.mxu0 0.0
        %4261 = vmatpush1.msra.mxu0 %v941
        %4262 = vmatprep.subr.mxu0 0.0
        %4263 = vmatpush1.msra.mxu0 0.0
        %4264 = vmatprep.subr.mxu0 0.0
        %4265 = vmatpush1.msra.mxu0 0.0
        %4266 = vmatprep.subr.mxu0 0.0
        %4267 = vmatpush1.msra.mxu0 0.0
        %4268 = vmatprep.subr.mxu0 0.0
        %4269 = vmatpush1.msra.mxu0 0.0
        %4270 = vmatprep.subr.mxu0 0.0
        %4271 = vmatpush1.msra.mxu0 0.0
        %4272 = vmatprep.subr.mxu0 0.0
        %4273 = vmatpush1.msra.mxu0 0.0
        %4274 = vmatprep.subr.mxu0 0.0
        %4275 = vmatpush1.msra.mxu0 0.0
        %4276 = vmatprep.subr.mxu0 0.0
        %4277 = vmatpush1.msra.mxu0 0.0
        %4278 = vmatprep.subr.mxu0 0.0
        %4279 = vmatpush1.msra.mxu0 0.0
        %4280 = vmatprep.subr.mxu0 0.0
        %4281 = vmatpush1.msra.mxu0 0.0
        %4282 = vmatprep.subr.mxu0 0.0
        %4283 = vmatpush1.msra.mxu0 0.0
        %4284 = vmatprep.subr.mxu0 0.0
        %4285 = vmatpush1.msra.mxu0 0.0
        %4286 = vmatprep.subr.mxu0 0.0
        %4287 = vmatpush1.msra.mxu0 0.0
        %4288 = vmatprep.subr.mxu0 0.0
        %4289 = vmatpush1.msra.mxu0 0.0
        %4290 = vmatprep.subr.mxu0 0.0
        %4291 = vmatpush1.msra.mxu0 0.0
        %4292 = vmatprep.subr.mxu0 0.0
        %4293 = vmatpush1.msra.mxu0 0.0
        %4294 = vmatprep.mubr.f32.mxu0 0.0
        %4295 = vmatmul.mubr.f32.gmra.mrb[0].mxu0 %v4214
        %v4296 = vpop.f32.mrb[0].mxu0
        %v4297 = vadd.f32 0.0, %v4296
        %v4298 = vpop.f32.mrb[0].mxu0
        %4299 = vmatprep.mubr.f32.mxu0 0.0
        %4300 = vmatmul.mubr.f32.gmra.mrb[0].mxu0 %v4215
        %v4301 = vpop.f32.mrb[0].mxu0
        %v4302 = vadd.f32 0.0, %v4301
        %v4303 = vpop.f32.mrb[0].mxu0
        %4304 = vmatprep.mubr.f32.mxu0 0.0
        %4305 = vmatmul.mubr.f32.gmra.mrb[0].mxu0 %v4216
        %v4306 = vpop.f32.mrb[0].mxu0
        %v4307 = vadd.f32 0.0, %v4306
        %v4308 = vpop.f32.mrb[0].mxu0
        %4309 = vmatprep.mubr.f32.mxu0 0.0
        %4310 = vmatmul.mubr.f32.gmra.mrb[0].mxu0 %v4217
        %v4311 = vpop.f32.mrb[0].mxu0
        %v4312 = vadd.f32 0.0, %v4311
        %v4313 = vpop.f32.mrb[0].mxu0
        %4314 = vmatprep.mubr.f32.mxu0 0.0
        %4315 = vmatmul.mubr.f32.gmra.mrb[0].mxu0 %v4218
        %v4316 = vpop.f32.mrb[0].mxu0
        %v4317 = vadd.f32 0.0, %v4316
        %v4318 = vpop.f32.mrb[0].mxu0
        %4319 = vmatprep.mubr.f32.mxu0 0.0
        %4320 = vmatmul.mubr.f32.gmra.mrb[0].mxu0 %v4219
        %v4321 = vpop.f32.mrb[0].mxu0
        %v4322 = vadd.f32 0.0, %v4321
        %v4323 = vpop.f32.mrb[0].mxu0
        %4324 = vmatprep.mubr.f32.mxu0 0.0
        %4325 = vmatmul.mubr.f32.gmra.mrb[0].mxu0 %v4220
        %v4326 = vpop.f32.mrb[0].mxu0
        %v4327 = vadd.f32 0.0, %v4326
        %v4328 = vpop.f32.mrb[0].mxu0
        %4329 = vmatprep.mubr.f32.mxu0 0.0
        %4330 = vmatmul.mubr.f32.gmra.mrb[0].mxu0 %v4221
        %v4331 = vpop.f32.mrb[0].mxu0
        %v4332 = vadd.f32 0.0, %v4331
        %v4333 = vpop.f32.mrb[0].mxu0
        %4334 = vmatprep.mubr.f32.mxu0 0.0
        %4335 = vmatmul.mubr.f32.gmra.mrb[0].mxu0 %v4222
        %v4336 = vpop.f32.mrb[0].mxu0
        %v4337 = vadd.f32 0.0, %v4336
        %v4338 = vpop.f32.mrb[0].mxu0
        %4339 = vmatprep.mubr.f32.mxu0 0.0
        %4340 = vmatmul.mubr.f32.gmra.mrb[0].mxu0 %v4223
        %v4341 = vpop.f32.mrb[0].mxu0
        %v4342 = vadd.f32 0.0, %v4341
        %v4343 = vpop.f32.mrb[0].mxu0
        %4344 = vmatprep.mubr.f32.mxu0 0.0
        %4345 = vmatmul.mubr.f32.gmra.mrb[0].mxu0 %v4224
        %v4346 = vpop.f32.mrb[0].mxu0
        %v4347 = vadd.f32 0.0, %v4346
        %v4348 = vpop.f32.mrb[0].mxu0
        %4349 = vmatprep.mubr.f32.mxu0 0.0
        %4350 = vmatmul.mubr.f32.gmra.mrb[0].mxu0 %v4225
        %v4351 = vpop.f32.mrb[0].mxu0
        %v4352 = vadd.f32 0.0, %v4351
        %v4353 = vpop.f32.mrb[0].mxu0
        %4354 = vmatprep.mubr.f32.mxu0 0.0
        %4355 = vmatmul.mubr.f32.gmra.mrb[0].mxu0 %v4226
        %v4356 = vpop.f32.mrb[0].mxu0
        %v4357 = vadd.f32 0.0, %v4356
        %v4358 = vpop.f32.mrb[0].mxu0
        %4359 = vmatprep.mubr.f32.mxu0 0.0
        %4360 = vmatmul.mubr.f32.gmra.mrb[0].mxu0 %v4227
        %v4361 = vpop.f32.mrb[0].mxu0
        %v4362 = vadd.f32 0.0, %v4361
        %v4363 = vpop.f32.mrb[0].mxu0
        %4364 = vmatprep.mubr.f32.mxu0 0.0
        %4365 = vmatmul.mubr.f32.gmra.mrb[0].mxu0 %v4228
        %v4366 = vpop.f32.mrb[0].mxu0
        %v4367 = vadd.f32 0.0, %v4366
        %v4368 = vpop.f32.mrb[0].mxu0
        %4369 = vmatprep.mubr.f32.mxu0 0.0
        %4370 = vmatmul.mubr.f32.gmra.mrb[0].mxu0 %v4229
        %v4371 = vpop.f32.mrb[0].mxu0
        %v4372 = vadd.f32 0.0, %v4371
        %v4373 = vpop.f32.mrb[0].mxu0
        %4374 = vdwg.mxu0
        %v4375 = vmax.f32 %v3878, %v4297
        %v4376 = vmax.f32 %v3879, %v4302
        %v4377 = vmax.f32 %v3880, %v4307
        %v4378 = vmax.f32 %v3881, %v4312
        %v4379 = vmax.f32 %v3882, %v4317
        %v4380 = vmax.f32 %v3883, %v4322
        %v4381 = vmax.f32 %v3884, %v4327
        %v4382 = vmax.f32 %v3885, %v4332
        %v4383 = vmax.f32 %v3886, %v4337
        %v4384 = vmax.f32 %v3887, %v4342
        %v4385 = vmax.f32 %v3888, %v4347
        %v4386 = vmax.f32 %v3889, %v4352
        %v4387 = vmax.f32 %v3890, %v4357
        %v4388 = vmax.f32 %v3891, %v4362
        %v4389 = vmax.f32 %v3892, %v4367
        %v4390 = vmax.f32 %v3893, %v4372
        %v4391 = vsel %vm4198, -inf, %v3894
        %v4392 = vsel %vm4199, -inf, %v3895
        %v4393 = vsel %vm4200, -inf, %v3896
        %v4394 = vsel %vm4201, -inf, %v3897
        %v4395 = vsel %vm4202, -inf, %v3898
        %v4396 = vsel %vm4203, -inf, %v3899
        %v4397 = vsel %vm4204, -inf, %v3900
        %v4398 = vsel %vm4205, -inf, %v3901
        %v4399 = vsel %vm4206, -inf, %v3902
        %v4400 = vsel %vm4207, -inf, %v3903
        %v4401 = vsel %vm4208, -inf, %v3904
        %v4402 = vsel %vm4209, -inf, %v3905
        %v4403 = vsel %vm4210, -inf, %v3906
        %v4404 = vsel %vm4211, -inf, %v3907
        %v4405 = vsel %vm4212, -inf, %v3908
        %v4406 = vsel %vm4213, -inf, %v3909
        %4407 = vmax.xlane.f32.xlu0 %v4391
        %v4408 = vpop.xlane.xlu0 %4407
        %4409 = vmax.xlane.f32.xlu0 %v4392
        %v4410 = vpop.xlane.xlu0 %4409
        %4411 = vmax.xlane.f32.xlu0 %v4393
        %v4412 = vpop.xlane.xlu0 %4411
        %4413 = vmax.xlane.f32.xlu0 %v4394
        %v4414 = vpop.xlane.xlu0 %4413
        %4415 = vmax.xlane.f32.xlu0 %v4395
        %v4416 = vpop.xlane.xlu0 %4415
        %4417 = vmax.xlane.f32.xlu0 %v4396
        %v4418 = vpop.xlane.xlu0 %4417
        %4419 = vmax.xlane.f32.xlu0 %v4397
        %v4420 = vpop.xlane.xlu0 %4419
        %4421 = vmax.xlane.f32.xlu0 %v4398
        %v4422 = vpop.xlane.xlu0 %4421
        %4423 = vmax.xlane.f32.xlu0 %v4399
        %v4424 = vpop.xlane.xlu0 %4423
        %4425 = vmax.xlane.f32.xlu0 %v4400
        %v4426 = vpop.xlane.xlu0 %4425
        %4427 = vmax.xlane.f32.xlu0 %v4401
        %v4428 = vpop.xlane.xlu0 %4427
        %4429 = vmax.xlane.f32.xlu0 %v4402
        %v4430 = vpop.xlane.xlu0 %4429
        %4431 = vmax.xlane.f32.xlu0 %v4403
        %v4432 = vpop.xlane.xlu0 %4431
        %4433 = vmax.xlane.f32.xlu0 %v4404
        %v4434 = vpop.xlane.xlu0 %4433
        %4435 = vmax.xlane.f32.xlu0 %v4405
        %v4436 = vpop.xlane.xlu0 %4435
        %4437 = vmax.xlane.f32.xlu0 %v4406
        %v4438 = vpop.xlane.xlu0 %4437
        %vm4439 = vcmp.eq.f32.partialorder %v4391, %v4408
        %vm4440 = vcmp.eq.f32.partialorder %v4392, %v4410
        %vm4441 = vcmp.eq.f32.partialorder %v4393, %v4412
        %vm4442 = vcmp.eq.f32.partialorder %v4394, %v4414
        %vm4443 = vcmp.eq.f32.partialorder %v4395, %v4416
        %vm4444 = vcmp.eq.f32.partialorder %v4396, %v4418
        %vm4445 = vcmp.eq.f32.partialorder %v4397, %v4420
        %vm4446 = vcmp.eq.f32.partialorder %v4398, %v4422
        %vm4447 = vcmp.eq.f32.partialorder %v4399, %v4424
        %vm4448 = vcmp.eq.f32.partialorder %v4400, %v4426
        %vm4449 = vcmp.eq.f32.partialorder %v4401, %v4428
        %vm4450 = vcmp.eq.f32.partialorder %v4402, %v4430
        %vm4451 = vcmp.eq.f32.partialorder %v4403, %v4432
        %vm4452 = vcmp.eq.f32.partialorder %v4404, %v4434
        %vm4453 = vcmp.eq.f32.partialorder %v4405, %v4436
        %vm4454 = vcmp.eq.f32.partialorder %v4406, %v4438
        %v4455 = vsel %vm4439, %v943, 128
        %v4456 = vsel %vm4440, %v943, 128
        %v4457 = vsel %vm4441, %v943, 128
        %v4458 = vsel %vm4442, %v943, 128
        %v4459 = vsel %vm4443, %v943, 128
        %v4460 = vsel %vm4444, %v943, 128
        %v4461 = vsel %vm4445, %v943, 128
        %v4462 = vsel %vm4446, %v943, 128
        %v4463 = vsel %vm4447, %v943, 128
        %v4464 = vsel %vm4448, %v943, 128
        %v4465 = vsel %vm4449, %v943, 128
        %v4466 = vsel %vm4450, %v943, 128
        %v4467 = vsel %vm4451, %v943, 128
        %v4468 = vsel %vm4452, %v943, 128
        %v4469 = vsel %vm4453, %v943, 128
        %v4470 = vsel %vm4454, %v943, 128
        %v4471 = vand.u32 %v4455, 65535
        %v4472 = vshra.s32 %v4455, 16
        %v4473 = vcvt.s32.f32 %v4471
        %v4474 = vcvt.s32.f32 %v4472
        %4475 = vmin.xlane.f32.xlu0 %v4474
        %v4476 = vpop.xlane.xlu0 %4475
        %vm4477 = vcmp.eq.f32.partialorder %v4474, %v4476
        %v4478 = vsel %vm4477, %v4473, inf
        %4479 = vmin.xlane.f32.xlu0 %v4478
        %v4480 = vpop.xlane.xlu0 %4479
        %v4481 = vcvt.f32.s32 %v4480
        %v4482 = vcvt.f32.s32 %v4476
        %v4483 = vshll.u32 %v4482, 16
        %v4484 = vadd.s32 %v4483, %v4481
        %v4485 = vand.u32 %v4456, 65535
        %v4486 = vshra.s32 %v4456, 16
        %v4487 = vcvt.s32.f32 %v4485
        %v4488 = vcvt.s32.f32 %v4486
        %4489 = vmin.xlane.f32.xlu0 %v4488
        %v4490 = vpop.xlane.xlu0 %4489
        %vm4491 = vcmp.eq.f32.partialorder %v4488, %v4490
        %v4492 = vsel %vm4491, %v4487, inf
        %4493 = vmin.xlane.f32.xlu0 %v4492
        %v4494 = vpop.xlane.xlu0 %4493
        %v4495 = vcvt.f32.s32 %v4494
        %v4496 = vcvt.f32.s32 %v4490
        %v4497 = vshll.u32 %v4496, 16
        %v4498 = vadd.s32 %v4497, %v4495
        %v4499 = vand.u32 %v4457, 65535
        %v4500 = vshra.s32 %v4457, 16
        %v4501 = vcvt.s32.f32 %v4499
        %v4502 = vcvt.s32.f32 %v4500
        %4503 = vmin.xlane.f32.xlu0 %v4502
        %v4504 = vpop.xlane.xlu0 %4503
        %vm4505 = vcmp.eq.f32.partialorder %v4502, %v4504
        %v4506 = vsel %vm4505, %v4501, inf
        %4507 = vmin.xlane.f32.xlu0 %v4506
        %v4508 = vpop.xlane.xlu0 %4507
        %v4509 = vcvt.f32.s32 %v4508
        %v4510 = vcvt.f32.s32 %v4504
        %v4511 = vshll.u32 %v4510, 16
        %v4512 = vadd.s32 %v4511, %v4509
        %v4513 = vand.u32 %v4458, 65535
        %v4514 = vshra.s32 %v4458, 16
        %v4515 = vcvt.s32.f32 %v4513
        %v4516 = vcvt.s32.f32 %v4514
        %4517 = vmin.xlane.f32.xlu0 %v4516
        %v4518 = vpop.xlane.xlu0 %4517
        %vm4519 = vcmp.eq.f32.partialorder %v4516, %v4518
        %v4520 = vsel %vm4519, %v4515, inf
        %4521 = vmin.xlane.f32.xlu0 %v4520
        %v4522 = vpop.xlane.xlu0 %4521
        %v4523 = vcvt.f32.s32 %v4522
        %v4524 = vcvt.f32.s32 %v4518
        %v4525 = vshll.u32 %v4524, 16
        %v4526 = vadd.s32 %v4525, %v4523
        %v4527 = vand.u32 %v4459, 65535
        %v4528 = vshra.s32 %v4459, 16
        %v4529 = vcvt.s32.f32 %v4527
        %v4530 = vcvt.s32.f32 %v4528
        %4531 = vmin.xlane.f32.xlu0 %v4530
        %v4532 = vpop.xlane.xlu0 %4531
        %vm4533 = vcmp.eq.f32.partialorder %v4530, %v4532
        %v4534 = vsel %vm4533, %v4529, inf
        %4535 = vmin.xlane.f32.xlu0 %v4534
        %v4536 = vpop.xlane.xlu0 %4535
        %v4537 = vcvt.f32.s32 %v4536
        %v4538 = vcvt.f32.s32 %v4532
        %v4539 = vshll.u32 %v4538, 16
        %v4540 = vadd.s32 %v4539, %v4537
        %v4541 = vand.u32 %v4460, 65535
        %v4542 = vshra.s32 %v4460, 16
        %v4543 = vcvt.s32.f32 %v4541
        %v4544 = vcvt.s32.f32 %v4542
        %4545 = vmin.xlane.f32.xlu0 %v4544
        %v4546 = vpop.xlane.xlu0 %4545
        %vm4547 = vcmp.eq.f32.partialorder %v4544, %v4546
        %v4548 = vsel %vm4547, %v4543, inf
        %4549 = vmin.xlane.f32.xlu0 %v4548
        %v4550 = vpop.xlane.xlu0 %4549
        %v4551 = vcvt.f32.s32 %v4550
        %v4552 = vcvt.f32.s32 %v4546
        %v4553 = vshll.u32 %v4552, 16
        %v4554 = vadd.s32 %v4553, %v4551
        %v4555 = vand.u32 %v4461, 65535
        %v4556 = vshra.s32 %v4461, 16
        %v4557 = vcvt.s32.f32 %v4555
        %v4558 = vcvt.s32.f32 %v4556
        %4559 = vmin.xlane.f32.xlu0 %v4558
        %v4560 = vpop.xlane.xlu0 %4559
        %vm4561 = vcmp.eq.f32.partialorder %v4558, %v4560
        %v4562 = vsel %vm4561, %v4557, inf
        %4563 = vmin.xlane.f32.xlu0 %v4562
        %v4564 = vpop.xlane.xlu0 %4563
        %v4565 = vcvt.f32.s32 %v4564
        %v4566 = vcvt.f32.s32 %v4560
        %v4567 = vshll.u32 %v4566, 16
        %v4568 = vadd.s32 %v4567, %v4565
        %v4569 = vand.u32 %v4462, 65535
        %v4570 = vshra.s32 %v4462, 16
        %v4571 = vcvt.s32.f32 %v4569
        %v4572 = vcvt.s32.f32 %v4570
        %4573 = vmin.xlane.f32.xlu0 %v4572
        %v4574 = vpop.xlane.xlu0 %4573
        %vm4575 = vcmp.eq.f32.partialorder %v4572, %v4574
        %v4576 = vsel %vm4575, %v4571, inf
        %4577 = vmin.xlane.f32.xlu0 %v4576
        %v4578 = vpop.xlane.xlu0 %4577
        %v4579 = vcvt.f32.s32 %v4578
        %v4580 = vcvt.f32.s32 %v4574
        %v4581 = vshll.u32 %v4580, 16
        %v4582 = vadd.s32 %v4581, %v4579
        %v4583 = vand.u32 %v4463, 65535
        %v4584 = vshra.s32 %v4463, 16
        %v4585 = vcvt.s32.f32 %v4583
        %v4586 = vcvt.s32.f32 %v4584
        %4587 = vmin.xlane.f32.xlu0 %v4586
        %v4588 = vpop.xlane.xlu0 %4587
        %vm4589 = vcmp.eq.f32.partialorder %v4586, %v4588
        %v4590 = vsel %vm4589, %v4585, inf
        %4591 = vmin.xlane.f32.xlu0 %v4590
        %v4592 = vpop.xlane.xlu0 %4591
        %v4593 = vcvt.f32.s32 %v4592
        %v4594 = vcvt.f32.s32 %v4588
        %v4595 = vshll.u32 %v4594, 16
        %v4596 = vadd.s32 %v4595, %v4593
        %v4597 = vand.u32 %v4464, 65535
        %v4598 = vshra.s32 %v4464, 16
        %v4599 = vcvt.s32.f32 %v4597
        %v4600 = vcvt.s32.f32 %v4598
        %4601 = vmin.xlane.f32.xlu0 %v4600
        %v4602 = vpop.xlane.xlu0 %4601
        %vm4603 = vcmp.eq.f32.partialorder %v4600, %v4602
        %v4604 = vsel %vm4603, %v4599, inf
        %4605 = vmin.xlane.f32.xlu0 %v4604
        %v4606 = vpop.xlane.xlu0 %4605
        %v4607 = vcvt.f32.s32 %v4606
        %v4608 = vcvt.f32.s32 %v4602
        %v4609 = vshll.u32 %v4608, 16
        %v4610 = vadd.s32 %v4609, %v4607
        %v4611 = vand.u32 %v4465, 65535
        %v4612 = vshra.s32 %v4465, 16
        %v4613 = vcvt.s32.f32 %v4611
        %v4614 = vcvt.s32.f32 %v4612
        %4615 = vmin.xlane.f32.xlu0 %v4614
        %v4616 = vpop.xlane.xlu0 %4615
        %vm4617 = vcmp.eq.f32.partialorder %v4614, %v4616
        %v4618 = vsel %vm4617, %v4613, inf
        %4619 = vmin.xlane.f32.xlu0 %v4618
        %v4620 = vpop.xlane.xlu0 %4619
        %v4621 = vcvt.f32.s32 %v4620
        %v4622 = vcvt.f32.s32 %v4616
        %v4623 = vshll.u32 %v4622, 16
        %v4624 = vadd.s32 %v4623, %v4621
        %v4625 = vand.u32 %v4466, 65535
        %v4626 = vshra.s32 %v4466, 16
        %v4627 = vcvt.s32.f32 %v4625
        %v4628 = vcvt.s32.f32 %v4626
        %4629 = vmin.xlane.f32.xlu0 %v4628
        %v4630 = vpop.xlane.xlu0 %4629
        %vm4631 = vcmp.eq.f32.partialorder %v4628, %v4630
        %v4632 = vsel %vm4631, %v4627, inf
        %4633 = vmin.xlane.f32.xlu0 %v4632
        %v4634 = vpop.xlane.xlu0 %4633
        %v4635 = vcvt.f32.s32 %v4634
        %v4636 = vcvt.f32.s32 %v4630
        %v4637 = vshll.u32 %v4636, 16
        %v4638 = vadd.s32 %v4637, %v4635
        %v4639 = vand.u32 %v4467, 65535
        %v4640 = vshra.s32 %v4467, 16
        %v4641 = vcvt.s32.f32 %v4639
        %v4642 = vcvt.s32.f32 %v4640
        %4643 = vmin.xlane.f32.xlu0 %v4642
        %v4644 = vpop.xlane.xlu0 %4643
        %vm4645 = vcmp.eq.f32.partialorder %v4642, %v4644
        %v4646 = vsel %vm4645, %v4641, inf
        %4647 = vmin.xlane.f32.xlu0 %v4646
        %v4648 = vpop.xlane.xlu0 %4647
        %v4649 = vcvt.f32.s32 %v4648
        %v4650 = vcvt.f32.s32 %v4644
        %v4651 = vshll.u32 %v4650, 16
        %v4652 = vadd.s32 %v4651, %v4649
        %v4653 = vand.u32 %v4468, 65535
        %v4654 = vshra.s32 %v4468, 16
        %v4655 = vcvt.s32.f32 %v4653
        %v4656 = vcvt.s32.f32 %v4654
        %4657 = vmin.xlane.f32.xlu0 %v4656
        %v4658 = vpop.xlane.xlu0 %4657
        %vm4659 = vcmp.eq.f32.partialorder %v4656, %v4658
        %v4660 = vsel %vm4659, %v4655, inf
        %4661 = vmin.xlane.f32.xlu0 %v4660
        %v4662 = vpop.xlane.xlu0 %4661
        %v4663 = vcvt.f32.s32 %v4662
        %v4664 = vcvt.f32.s32 %v4658
        %v4665 = vshll.u32 %v4664, 16
        %v4666 = vadd.s32 %v4665, %v4663
        %v4667 = vand.u32 %v4469, 65535
        %v4668 = vshra.s32 %v4469, 16
        %v4669 = vcvt.s32.f32 %v4667
        %v4670 = vcvt.s32.f32 %v4668
        %4671 = vmin.xlane.f32.xlu0 %v4670
        %v4672 = vpop.xlane.xlu0 %4671
        %vm4673 = vcmp.eq.f32.partialorder %v4670, %v4672
        %v4674 = vsel %vm4673, %v4669, inf
        %4675 = vmin.xlane.f32.xlu0 %v4674
        %v4676 = vpop.xlane.xlu0 %4675
        %v4677 = vcvt.f32.s32 %v4676
        %v4678 = vcvt.f32.s32 %v4672
        %v4679 = vshll.u32 %v4678, 16
        %v4680 = vadd.s32 %v4679, %v4677
        %v4681 = vand.u32 %v4470, 65535
        %v4682 = vshra.s32 %v4470, 16
        %v4683 = vcvt.s32.f32 %v4681
        %v4684 = vcvt.s32.f32 %v4682
        %4685 = vmin.xlane.f32.xlu0 %v4684
        %v4686 = vpop.xlane.xlu0 %4685
        %vm4687 = vcmp.eq.f32.partialorder %v4684, %v4686
        %v4688 = vsel %vm4687, %v4683, inf
        %4689 = vmin.xlane.f32.xlu0 %v4688
        %v4690 = vpop.xlane.xlu0 %4689
        %v4691 = vcvt.f32.s32 %v4690
        %v4692 = vcvt.f32.s32 %v4686
        %v4693 = vshll.u32 %v4692, 16
        %v4694 = vadd.s32 %v4693, %v4691
        %vm4695 = vcmp.eq.s32.totalorder %v943, %v4484
        %vm4696 = vcmp.eq.s32.totalorder %v943, %v4498
        %vm4697 = vcmp.eq.s32.totalorder %v943, %v4512
        %vm4698 = vcmp.eq.s32.totalorder %v943, %v4526
        %vm4699 = vcmp.eq.s32.totalorder %v943, %v4540
        %vm4700 = vcmp.eq.s32.totalorder %v943, %v4554
        %vm4701 = vcmp.eq.s32.totalorder %v943, %v4568
        %vm4702 = vcmp.eq.s32.totalorder %v943, %v4582
        %vm4703 = vcmp.eq.s32.totalorder %v943, %v4596
        %vm4704 = vcmp.eq.s32.totalorder %v943, %v4610
        %vm4705 = vcmp.eq.s32.totalorder %v943, %v4624
        %vm4706 = vcmp.eq.s32.totalorder %v943, %v4638
        %vm4707 = vcmp.eq.s32.totalorder %v943, %v4652
        %vm4708 = vcmp.eq.s32.totalorder %v943, %v4666
        %vm4709 = vcmp.eq.s32.totalorder %v943, %v4680
        %vm4710 = vcmp.eq.s32.totalorder %v943, %v4694
        %v4711 = vsel %vm4695, 1.0, 0.0
        %v4712 = vsel %vm4696, 1.0, 0.0
        %v4713 = vsel %vm4697, 1.0, 0.0
        %v4714 = vsel %vm4698, 1.0, 0.0
        %v4715 = vsel %vm4699, 1.0, 0.0
        %v4716 = vsel %vm4700, 1.0, 0.0
        %v4717 = vsel %vm4701, 1.0, 0.0
        %v4718 = vsel %vm4702, 1.0, 0.0
        %v4719 = vsel %vm4703, 1.0, 0.0
        %v4720 = vsel %vm4704, 1.0, 0.0
        %v4721 = vsel %vm4705, 1.0, 0.0
        %v4722 = vsel %vm4706, 1.0, 0.0
        %v4723 = vsel %vm4707, 1.0, 0.0
        %v4724 = vsel %vm4708, 1.0, 0.0
        %v4725 = vsel %vm4709, 1.0, 0.0
        %v4726 = vsel %vm4710, 1.0, 0.0
        %4727 = vmatprep.subr.mxu0 0.0
        %4728 = vmatpush1.msra.mxu0 %v926
        %4729 = vmatprep.subr.mxu0 0.0
        %4730 = vmatpush1.msra.mxu0 %v927
        %4731 = vmatprep.subr.mxu0 0.0
        %4732 = vmatpush1.msra.mxu0 %v928
        %4733 = vmatprep.subr.mxu0 0.0
        %4734 = vmatpush1.msra.mxu0 %v929
        %4735 = vmatprep.subr.mxu0 0.0
        %4736 = vmatpush1.msra.mxu0 %v930
        %4737 = vmatprep.subr.mxu0 0.0
        %4738 = vmatpush1.msra.mxu0 %v931
        %4739 = vmatprep.subr.mxu0 0.0
        %4740 = vmatpush1.msra.mxu0 %v932
        %4741 = vmatprep.subr.mxu0 0.0
        %4742 = vmatpush1.msra.mxu0 %v933
        %4743 = vmatprep.subr.mxu0 0.0
        %4744 = vmatpush1.msra.mxu0 %v934
        %4745 = vmatprep.subr.mxu0 0.0
        %4746 = vmatpush1.msra.mxu0 %v935
        %4747 = vmatprep.subr.mxu0 0.0
        %4748 = vmatpush1.msra.mxu0 %v936
        %4749 = vmatprep.subr.mxu0 0.0
        %4750 = vmatpush1.msra.mxu0 %v937
        %4751 = vmatprep.subr.mxu0 0.0
        %4752 = vmatpush1.msra.mxu0 %v938
        %4753 = vmatprep.subr.mxu0 0.0
        %4754 = vmatpush1.msra.mxu0 %v939
        %4755 = vmatprep.subr.mxu0 0.0
        %4756 = vmatpush1.msra.mxu0 %v940
        %4757 = vmatprep.subr.mxu0 0.0
        %4758 = vmatpush1.msra.mxu0 %v941
        %4759 = vmatprep.subr.mxu0 0.0
        %4760 = vmatpush1.msra.mxu0 0.0
        %4761 = vmatprep.subr.mxu0 0.0
        %4762 = vmatpush1.msra.mxu0 0.0
        %4763 = vmatprep.subr.mxu0 0.0
        %4764 = vmatpush1.msra.mxu0 0.0
        %4765 = vmatprep.subr.mxu0 0.0
        %4766 = vmatpush1.msra.mxu0 0.0
        %4767 = vmatprep.subr.mxu0 0.0
        %4768 = vmatpush1.msra.mxu0 0.0
        %4769 = vmatprep.subr.mxu0 0.0
        %4770 = vmatpush1.msra.mxu0 0.0
        %4771 = vmatprep.subr.mxu0 0.0
        %4772 = vmatpush1.msra.mxu0 0.0
        %4773 = vmatprep.subr.mxu0 0.0
        %4774 = vmatpush1.msra.mxu0 0.0
        %4775 = vmatprep.subr.mxu0 0.0
        %4776 = vmatpush1.msra.mxu0 0.0
        %4777 = vmatprep.subr.mxu0 0.0
        %4778 = vmatpush1.msra.mxu0 0.0
        %4779 = vmatprep.subr.mxu0 0.0
        %4780 = vmatpush1.msra.mxu0 0.0
        %4781 = vmatprep.subr.mxu0 0.0
        %4782 = vmatpush1.msra.mxu0 0.0
        %4783 = vmatprep.subr.mxu0 0.0
        %4784 = vmatpush1.msra.mxu0 0.0
        %4785 = vmatprep.subr.mxu0 0.0
        %4786 = vmatpush1.msra.mxu0 0.0
        %4787 = vmatprep.subr.mxu0 0.0
        %4788 = vmatpush1.msra.mxu0 0.0
        %4789 = vmatprep.subr.mxu0 0.0
        %4790 = vmatpush1.msra.mxu0 0.0
        %4791 = vmatprep.mubr.f32.mxu0 0.0
        %4792 = vmatmul.mubr.f32.gmra.mrb[0].mxu0 %v4711
        %v4793 = vpop.f32.mrb[0].mxu0
        %v4794 = vadd.f32 0.0, %v4793
        %v4795 = vpop.f32.mrb[0].mxu0
        %4796 = vmatprep.mubr.f32.mxu0 0.0
        %4797 = vmatmul.mubr.f32.gmra.mrb[0].mxu0 %v4712
        %v4798 = vpop.f32.mrb[0].mxu0
        %v4799 = vadd.f32 0.0, %v4798
        %v4800 = vpop.f32.mrb[0].mxu0
        %4801 = vmatprep.mubr.f32.mxu0 0.0
        %4802 = vmatmul.mubr.f32.gmra.mrb[0].mxu0 %v4713
        %v4803 = vpop.f32.mrb[0].mxu0
        %v4804 = vadd.f32 0.0, %v4803
        %v4805 = vpop.f32.mrb[0].mxu0
        %4806 = vmatprep.mubr.f32.mxu0 0.0
        %4807 = vmatmul.mubr.f32.gmra.mrb[0].mxu0 %v4714
        %v4808 = vpop.f32.mrb[0].mxu0
        %v4809 = vadd.f32 0.0, %v4808
        %v4810 = vpop.f32.mrb[0].mxu0
        %4811 = vmatprep.mubr.f32.mxu0 0.0
        %4812 = vmatmul.mubr.f32.gmra.mrb[0].mxu0 %v4715
        %v4813 = vpop.f32.mrb[0].mxu0
        %v4814 = vadd.f32 0.0, %v4813
        %v4815 = vpop.f32.mrb[0].mxu0
        %4816 = vmatprep.mubr.f32.mxu0 0.0
        %4817 = vmatmul.mubr.f32.gmra.mrb[0].mxu0 %v4716
        %v4818 = vpop.f32.mrb[0].mxu0
        %v4819 = vadd.f32 0.0, %v4818
        %v4820 = vpop.f32.mrb[0].mxu0
        %4821 = vmatprep.mubr.f32.mxu0 0.0
        %4822 = vmatmul.mubr.f32.gmra.mrb[0].mxu0 %v4717
        %v4823 = vpop.f32.mrb[0].mxu0
        %v4824 = vadd.f32 0.0, %v4823
        %v4825 = vpop.f32.mrb[0].mxu0
        %4826 = vmatprep.mubr.f32.mxu0 0.0
        %4827 = vmatmul.mubr.f32.gmra.mrb[0].mxu0 %v4718
        %v4828 = vpop.f32.mrb[0].mxu0
        %v4829 = vadd.f32 0.0, %v4828
        %v4830 = vpop.f32.mrb[0].mxu0
        %4831 = vmatprep.mubr.f32.mxu0 0.0
        %4832 = vmatmul.mubr.f32.gmra.mrb[0].mxu0 %v4719
        %v4833 = vpop.f32.mrb[0].mxu0
        %v4834 = vadd.f32 0.0, %v4833
        %v4835 = vpop.f32.mrb[0].mxu0
        %4836 = vmatprep.mubr.f32.mxu0 0.0
        %4837 = vmatmul.mubr.f32.gmra.mrb[0].mxu0 %v4720
        %v4838 = vpop.f32.mrb[0].mxu0
        %v4839 = vadd.f32 0.0, %v4838
        %v4840 = vpop.f32.mrb[0].mxu0
        %4841 = vmatprep.mubr.f32.mxu0 0.0
        %4842 = vmatmul.mubr.f32.gmra.mrb[0].mxu0 %v4721
        %v4843 = vpop.f32.mrb[0].mxu0
        %v4844 = vadd.f32 0.0, %v4843
        %v4845 = vpop.f32.mrb[0].mxu0
        %4846 = vmatprep.mubr.f32.mxu0 0.0
        %4847 = vmatmul.mubr.f32.gmra.mrb[0].mxu0 %v4722
        %v4848 = vpop.f32.mrb[0].mxu0
        %v4849 = vadd.f32 0.0, %v4848
        %v4850 = vpop.f32.mrb[0].mxu0
        %4851 = vmatprep.mubr.f32.mxu0 0.0
        %4852 = vmatmul.mubr.f32.gmra.mrb[0].mxu0 %v4723
        %v4853 = vpop.f32.mrb[0].mxu0
        %v4854 = vadd.f32 0.0, %v4853
        %v4855 = vpop.f32.mrb[0].mxu0
        %4856 = vmatprep.mubr.f32.mxu0 0.0
        %4857 = vmatmul.mubr.f32.gmra.mrb[0].mxu0 %v4724
        %v4858 = vpop.f32.mrb[0].mxu0
        %v4859 = vadd.f32 0.0, %v4858
        %v4860 = vpop.f32.mrb[0].mxu0
        %4861 = vmatprep.mubr.f32.mxu0 0.0
        %4862 = vmatmul.mubr.f32.gmra.mrb[0].mxu0 %v4725
        %v4863 = vpop.f32.mrb[0].mxu0
        %v4864 = vadd.f32 0.0, %v4863
        %v4865 = vpop.f32.mrb[0].mxu0
        %4866 = vmatprep.mubr.f32.mxu0 0.0
        %4867 = vmatmul.mubr.f32.gmra.mrb[0].mxu0 %v4726
        %v4868 = vpop.f32.mrb[0].mxu0
        %v4869 = vadd.f32 0.0, %v4868
        %v4870 = vpop.f32.mrb[0].mxu0
        %4871 = vdwg.mxu0
        %v4872 = vmax.f32 %v4375, %v4794
        %v4873 = vmax.f32 %v4376, %v4799
        %v4874 = vmax.f32 %v4377, %v4804
        %v4875 = vmax.f32 %v4378, %v4809
        %v4876 = vmax.f32 %v4379, %v4814
        %v4877 = vmax.f32 %v4380, %v4819
        %v4878 = vmax.f32 %v4381, %v4824
        %v4879 = vmax.f32 %v4382, %v4829
        %v4880 = vmax.f32 %v4383, %v4834
        %v4881 = vmax.f32 %v4384, %v4839
        %v4882 = vmax.f32 %v4385, %v4844
        %v4883 = vmax.f32 %v4386, %v4849
        %v4884 = vmax.f32 %v4387, %v4854
        %v4885 = vmax.f32 %v4388, %v4859
        %v4886 = vmax.f32 %v4389, %v4864
        %v4887 = vmax.f32 %v4390, %v4869
        %v4888 = vadd.f32 %v4872, %v848
        %v4889 = vadd.f32 %v4873, %v853
        %v4890 = vadd.f32 %v4874, %v858
        %v4891 = vadd.f32 %v4875, %v863
        %v4892 = vadd.f32 %v4876, %v868
        %v4893 = vadd.f32 %v4877, %v873
        %v4894 = vadd.f32 %v4878, %v878
        %v4895 = vadd.f32 %v4879, %v883
        %v4896 = vadd.f32 %v4880, %v888
        %v4897 = vadd.f32 %v4881, %v893
        %v4898 = vadd.f32 %v4882, %v898
        %v4899 = vadd.f32 %v4883, %v903
        %v4900 = vadd.f32 %v4884, %v908
        %v4901 = vadd.f32 %v4885, %v913
        %v4902 = vadd.f32 %v4886, %v918
        %v4903 = vadd.f32 %v4887, %v923
        %v4904 = vld [vmem:[%s6] sm:$0x1]
        %v4906 = vlaneseq
        %v4907 = vshrl.u32 %v4906, 7
        %v4908 = vsub.s32 0, %v4907
        %v4909 = vrot.slane %v4904, %v4908
        %v4911 = vadd.f32 %v4888, %v4909
        %v4912 = vadd.f32 %v4889, %v4909
        %v4913 = vadd.f32 %v4890, %v4909
        %v4914 = vadd.f32 %v4891, %v4909
        %v4915 = vadd.f32 %v4892, %v4909
        %v4916 = vadd.f32 %v4893, %v4909
        %v4917 = vadd.f32 %v4894, %v4909
        %v4918 = vadd.f32 %v4895, %v4909
        %v4919 = vadd.f32 %v4896, %v4909
        %v4920 = vadd.f32 %v4897, %v4909
        %v4921 = vadd.f32 %v4898, %v4909
        %v4922 = vadd.f32 %v4899, %v4909
        %v4923 = vadd.f32 %v4900, %v4909
        %v4924 = vadd.f32 %v4901, %v4909
        %v4925 = vadd.f32 %v4902, %v4909
        %v4926 = vadd.f32 %v4903, %v4909
        %vm4927 = vcmp.gt.f32.partialorder %v4911, 0.0
        %vm4928 = vcmp.gt.f32.partialorder %v4912, 0.0
        %vm4929 = vcmp.gt.f32.partialorder %v4913, 0.0
        %vm4930 = vcmp.gt.f32.partialorder %v4914, 0.0
        %vm4931 = vcmp.gt.f32.partialorder %v4915, 0.0
        %vm4932 = vcmp.gt.f32.partialorder %v4916, 0.0
        %vm4933 = vcmp.gt.f32.partialorder %v4917, 0.0
        %vm4934 = vcmp.gt.f32.partialorder %v4918, 0.0
        %vm4935 = vcmp.gt.f32.partialorder %v4919, 0.0
        %vm4936 = vcmp.gt.f32.partialorder %v4920, 0.0
        %vm4937 = vcmp.gt.f32.partialorder %v4921, 0.0
        %vm4938 = vcmp.gt.f32.partialorder %v4922, 0.0
        %vm4939 = vcmp.gt.f32.partialorder %v4923, 0.0
        %vm4940 = vcmp.gt.f32.partialorder %v4924, 0.0
        %vm4941 = vcmp.gt.f32.partialorder %v4925, 0.0
        %vm4942 = vcmp.gt.f32.partialorder %v4926, 0.0
        %v4943 = vmul.f32 %v4911, 0.2
        %v4944 = vmul.f32 %v4912, 0.2
        %v4945 = vmul.f32 %v4913, 0.2
        %v4946 = vmul.f32 %v4914, 0.2
        %v4947 = vmul.f32 %v4915, 0.2
        %v4948 = vmul.f32 %v4916, 0.2
        %v4949 = vmul.f32 %v4917, 0.2
        %v4950 = vmul.f32 %v4918, 0.2
        %v4951 = vmul.f32 %v4919, 0.2
        %v4952 = vmul.f32 %v4920, 0.2
        %v4953 = vmul.f32 %v4921, 0.2
        %v4954 = vmul.f32 %v4922, 0.2
        %v4955 = vmul.f32 %v4923, 0.2
        %v4956 = vmul.f32 %v4924, 0.2
        %v4957 = vmul.f32 %v4925, 0.2
        %v4958 = vmul.f32 %v4926, 0.2
        %v4959 = vsel %vm4927, %v4911, %v4943
        %v4960 = vsel %vm4928, %v4912, %v4944
        %v4961 = vsel %vm4929, %v4913, %v4945
        %v4962 = vsel %vm4930, %v4914, %v4946
        %v4963 = vsel %vm4931, %v4915, %v4947
        %v4964 = vsel %vm4932, %v4916, %v4948
        %v4965 = vsel %vm4933, %v4917, %v4949
        %v4966 = vsel %vm4934, %v4918, %v4950
        %v4967 = vsel %vm4935, %v4919, %v4951
        %v4968 = vsel %vm4936, %v4920, %v4952
        %v4969 = vsel %vm4937, %v4921, %v4953
        %v4970 = vsel %vm4938, %v4922, %v4954
        %v4971 = vsel %vm4939, %v4923, %v4955
        %v4972 = vsel %vm4940, %v4924, %v4956
        %v4973 = vsel %vm4941, %v4925, %v4957
        %v4974 = vsel %vm4942, %v4926, %v4958
        %4975 = vst [vmem:[%s363] sm:$0xff] %v4959
        %4976 = vst [vmem:[%s363 + $0x8] sm:$0xff] %v4960
        %4977 = vst [vmem:[%s363 + $0x10] sm:$0xff] %v4961
        %4978 = vst [vmem:[%s363 + $0x18] sm:$0xff] %v4962
        %4979 = vst [vmem:[%s363 + $0x20] sm:$0xff] %v4963
        %4980 = vst [vmem:[%s363 + $0x28] sm:$0xff] %v4964
        %4981 = vst [vmem:[%s363 + $0x30] sm:$0xff] %v4965
        %4982 = vst [vmem:[%s363 + $0x38] sm:$0xff] %v4966
        %4983 = vst [vmem:[%s363 + $0x40] sm:$0xff] %v4967
        %4984 = vst [vmem:[%s363 + $0x48] sm:$0xff] %v4968
        %4985 = vst [vmem:[%s363 + $0x50] sm:$0xff] %v4969
        %4986 = vst [vmem:[%s363 + $0x58] sm:$0xff] %v4970
        %4987 = vst [vmem:[%s363 + $0x60] sm:$0xff] %v4971
        %4988 = vst [vmem:[%s363 + $0x68] sm:$0xff] %v4972
        %4989 = vst [vmem:[%s363 + $0x70] sm:$0xff] %v4973
        %4990 = vst [vmem:[%s363 + $0x78] sm:$0xff] %v4974
        %s4991 = sand.u32 %s219, 1
        %s4992 = scalar_lea.sflag [#allocation3], %s4991
        %s4993 = sand.u32 %s219, 1
        %s4994 = smul.addr %s4993, 128
        %s4995 = scalar_lea.vmem [#allocation2], %s4994
        // Predicated region
        $region49: #{tpu_custom_call.1} parent=47 // pred_check
          %p4996 = pneg %p229
        $region50: #{tpu_custom_call.1} parent=47 // pred_check_branch
          %4998 = sbr.rel (%p4996) target = $region52
        $region51: #{tpu_custom_call.1} parent=47 // pred_region
          %s4999 = smul.u32 16, %s26
          %s5001 = ssub.s32 2048, 2048
          %5002 = vsyncadd %s4992, %s5001
          %s5003 = smul.addr %s25, 16
          %s5004 = sadd.s32 %s4999, %s5003
          %s5005 = smul.addr %s5004, 128
          %s5006 = scalar_lea.hbm %s7, %s5005
          %s5007 = sshll.u32 %s4995, 4
          %s5008 = int_to_ptr.vmem [resolvable:$true] %s5007
          %5013 = dma.vmem_to_hbm [thread:$0]  %s5008, 2048, %s5006, %s4992, 128, 128, 8
        $region52: #{tpu_custom_call.1} parent=47 // pred_fallthru
          _
      $region48: #{tpu_custom_call.1} parent=5 // pred_fallthru
        _
      %p5014 = scmp.le.s32.totalorder 2, %s16
      // Predicated region
      $region53: #{tpu_custom_call.1} parent=5 // pred_check
        %p5015 = pneg %p5014
      $region54: #{tpu_custom_call.1} parent=5 // pred_check_branch
        %5017 = sbr.rel (%p5015) target = $region56
      $region55: #{tpu_custom_call.1} parent=5 // pred_region
        %s5018 = ssub.s32 %s16, 2
        // Predicated region
        $region57: #{tpu_custom_call.1} parent=55 // pred_check
          %p5019 = pneg %p235
        $region58: #{tpu_custom_call.1} parent=55 // pred_check_branch
          %5021 = sbr.rel (%p5019) target = $region60
        $region59: #{tpu_custom_call.1} parent=55 // pred_region
          %s5022 = sand.u32 %s220, 1
          %s5023 = scalar_lea.sflag [#allocation3], %s5022
          %s5024 = sand.u32 %s220, 1
          %s5025 = smul.addr %s5024, 128
          %s5026 = scalar_lea.vmem [#allocation2], %s5025
          %5027 = dma.done %s5023, 2048
        $region60: #{tpu_custom_call.1} parent=55 // pred_fallthru
          _
      $region56: #{tpu_custom_call.1} parent=5 // pred_fallthru
        _
    $region6: #{tpu_custom_call.1} parent=1 // loop_footer
      %s20 = sadd.s32 1, %s16
    $region7: #{tpu_custom_call.1} parent=1 // loop_footer_branch
      %15 = sbr.rel target = $region3
    $region8: #{tpu_custom_call.1} parent=1 // loop_exit
      _
    %5028 = vsyncpa [#allocation3], 1
    %s5029 = scalar_lea.sflag [#allocation3], 1
    %5030 = vsyncpa %s5029, 1

</llo_original>
